<compile_context>
chip_gen: v7x
topology: tpu7x:2x2x1
jax: 0.10.0
libtpu: 0.0.40
codegen_flags: <defaults>
</compile_context>

<pallas_src>
import math
from functools import partial

import jax
import jax.numpy as jnp
from jax.experimental import pallas as pl
from jax.experimental.pallas import tpu as pltpu

# ---------------- config (small, consistent with the module) ----------------
D_MODEL = 32
NUM_HEADS = 4
FFN_DIM = 64
D_K = D_MODEL // NUM_HEADS
LN_EPS = 1e-5
NEG_INF = -1e9          # additive mask value
SLAB_W = max(D_MODEL, FFN_DIM)   # lane width of the packed parameter slabs (=64)

# ---------------- unpacked parameter bookkeeping (init + pure-JAX reference) ----------------
def _attn_param_shapes(prefix):
    return [
        (f"{prefix}_qn_g", (1, D_MODEL)), (f"{prefix}_qn_b", (1, D_MODEL)),
        (f"{prefix}_kn_g", (1, D_MODEL)), (f"{prefix}_kn_b", (1, D_MODEL)),
        (f"{prefix}_vn_g", (1, D_MODEL)), (f"{prefix}_vn_b", (1, D_MODEL)),
        (f"{prefix}_wq", (D_MODEL, D_MODEL)), (f"{prefix}_bq", (1, D_MODEL)),
        (f"{prefix}_wk", (D_MODEL, D_MODEL)), (f"{prefix}_bk", (1, D_MODEL)),
        (f"{prefix}_wv", (D_MODEL, D_MODEL)), (f"{prefix}_bv", (1, D_MODEL)),
        (f"{prefix}_wfc", (D_MODEL, D_MODEL)), (f"{prefix}_bfc", (1, D_MODEL)),
    ]


PARAM_SHAPES = (
    _attn_param_shapes("sa")          # self-attention
    + _attn_param_shapes("ca")        # cross-attention
    + [
        ("ffn_norm_g", (1, D_MODEL)), ("ffn_norm_b", (1, D_MODEL)),
        ("ffn_w1", (FFN_DIM, D_MODEL)), ("ffn_b1", (1, FFN_DIM)),
        ("ffn_w2", (D_MODEL, FFN_DIM)), ("ffn_b2", (1, D_MODEL)),
    ]
)


def make_params(key):
    params = {}
    keys = jax.random.split(key, len(PARAM_SHAPES))
    for (name, shape), k in zip(PARAM_SHAPES, keys):
        last = name.rsplit("_", 1)[-1]
        if last == "g":  # LayerNorm gamma
            params[name] = jnp.ones(shape, jnp.float32) + 0.01 * jax.random.normal(k, shape, jnp.float32)
        elif shape[0] > 1:  # 2-D weight matrix (PyTorch [out, in] layout)
            params[name] = 0.05 * jax.random.normal(k, shape, jnp.float32)
        else:  # bias / LayerNorm beta
            params[name] = 0.02 * jax.random.normal(k, shape, jnp.float32)
    return params


# ---------------- packed-slab layout ----------------
# Weight slab: every 2-D weight, pre-transposed to [in, out], right-padded to 64 lanes,
# stacked along rows.  (name, rows=in_dim, cols=out_dim) of the TRANSPOSED matrix.
_W_MATS = [
    ("sa_wq", D_MODEL, D_MODEL), ("sa_wk", D_MODEL, D_MODEL),
    ("sa_wv", D_MODEL, D_MODEL), ("sa_wfc", D_MODEL, D_MODEL),
    ("ca_wq", D_MODEL, D_MODEL), ("ca_wk", D_MODEL, D_MODEL),
    ("ca_wv", D_MODEL, D_MODEL), ("ca_wfc", D_MODEL, D_MODEL),
    ("ffn_w1", D_MODEL, FFN_DIM), ("ffn_w2", FFN_DIM, D_MODEL),
]
W_OFF = {}
_r = 0
for _n, _rows, _cols in _W_MATS:
    W_OFF[_n] = _r
    _r += _rows
W_ROWS = _r  # 352

# Vector slab: one 64-wide row per bias / LN vector (zero-padded past its true width).
_V_NAMES = (
    [f"sa_{s}" for s in ("qn_g", "qn_b", "kn_g", "kn_b", "vn_g", "vn_b", "bq", "bk", "bv", "bfc")]
    + [f"ca_{s}" for s in ("qn_g", "qn_b", "kn_g", "kn_b", "vn_g", "vn_b", "bq", "bk", "bv", "bfc")]
    + ["ffn_norm_g", "ffn_norm_b", "ffn_b1", "ffn_b2"]
)
V_IDX = {n: i for i, n in enumerate(_V_NAMES)}
V_ROWS = len(_V_NAMES)  # 24


def pack_params(params):
    w_rows = []
    for name, rows, cols in _W_MATS:
        wt = params[name].T  # [in, out]
        w_rows.append(jnp.pad(wt, ((0, 0), (0, SLAB_W - cols))))
    w_slab = jnp.concatenate(w_rows, axis=0).astype(jnp.float32)          # (352, 64)

    v_rows = []
    for name in _V_NAMES:
        v = params[name]
        v_rows.append(jnp.pad(v, ((0, 0), (0, SLAB_W - v.shape[1]))))
    v_slab = jnp.concatenate(v_rows, axis=0).astype(jnp.float32)          # (24, 64)
    return w_slab, v_slab


# ---------------- in-kernel helpers (use-site loads via static ref slices) ----------------
def _layernorm(x, g, b):
    mu = jnp.mean(x, axis=-1, keepdims=True)
    var = jnp.mean(jnp.square(x - mu), axis=-1, keepdims=True)
    return (x - mu) * jax.lax.rsqrt(var + LN_EPS) * g + b


def _wmat(w_ref, name, rows, cols):
    off = W_OFF[name]
    return w_ref[off:off + rows, 0:cols]          # [in, out] — no in-kernel transpose


def _vrow(vec_ref, name, cols=D_MODEL):
    i = V_IDX[name]
    return vec_ref[i:i + 1, 0:cols]               # (1, cols), broadcasts over rows


def _attn_block(x_q, x_kv, mask, B, Lq, Lk, w_ref, vec_ref, pfx):
    """Pre-LN multi-head attention + output (fc) projection. Returns fc(attn(...)) + bias."""
    g = lambda s: _vrow(vec_ref, f"{pfx}_{s}")
    w = lambda s: _wmat(w_ref, f"{pfx}_{s}", D_MODEL, D_MODEL)

    q = jnp.dot(_layernorm(x_q, g("qn_g"), g("qn_b")), w("wq"),
                preferred_element_type=jnp.float32) + g("bq")
    k = jnp.dot(_layernorm(x_kv, g("kn_g"), g("kn_b")), w("wk"),
                preferred_element_type=jnp.float32) + g("bk")
    v = jnp.dot(_layernorm(x_kv, g("vn_g"), g("vn_b")), w("wv"),
                preferred_element_type=jnp.float32) + g("bv")

    q3 = q.reshape(B, Lq, D_MODEL)
    k3 = k.reshape(B, Lk, D_MODEL)
    v3 = v.reshape(B, Lk, D_MODEL)
    mask3 = jnp.broadcast_to(mask, (B, Lq, Lk))   # hoisted once, reused by all heads
    scale = 1.0 / math.sqrt(D_K)
    wfc_off = W_OFF[f"{pfx}_wfc"]

    acc = jnp.zeros((B * Lq, D_MODEL), jnp.float32)
    for h in range(NUM_HEADS):                    # short static unroll (NUM_HEADS=4)
        sl = slice(h * D_K, (h + 1) * D_K)
        s = jnp.einsum("bqd,bkd->bqk", q3[:, :, sl], k3[:, :, sl],
                       preferred_element_type=jnp.float32)
        s = (s + mask3) * scale                   # mask added BEFORE 1/sqrt(d_k), as in reference
        s = s - jnp.max(s, axis=-1, keepdims=True)
        e = jnp.exp(s)
        p = e * pl.reciprocal(jnp.sum(e, axis=-1, keepdims=True), approx=True)
        o_h = jnp.einsum("bqk,bkd->bqd", p, v3[:, :, sl],
                         preferred_element_type=jnp.float32)
        # concat-over-heads folded into the fc projection:
        #   fc(concat_h o_h) = sum_h o_h @ (Wfc^T)[h*dk:(h+1)*dk, :]
        wfc_h = w_ref[wfc_off + h * D_K: wfc_off + (h + 1) * D_K, 0:D_MODEL]
        acc = acc + jnp.dot(o_h.reshape(B * Lq, D_K), wfc_h,
                            preferred_element_type=jnp.float32)
    return acc + g("bfc")


# ---------------- Pallas kernel (single invocation, whole batch) ----------------
def decoder_block_kernel(src_ref, dst_ref, cmask_ref, pmask_ref, w_ref, vec_ref,
                         out_ref, *, B, Ls, Ld):
    src = src_ref[...]        # (B*Ls, D)
    dst = dst_ref[...]        # (B*Ld, D)

    # --- MultiHeadSelfAttention: attention + fc + dropout(id) + residual ---
    dst = _attn_block(dst, dst, cmask_ref[...], B, Ld, Ld, w_ref, vec_ref, "sa") + dst

    # --- MultiHeadCrossAttention: q = dst, k = v = src ---
    dst = _attn_block(dst, src, pmask_ref[...], B, Ld, Ls, w_ref, vec_ref, "ca") + dst

    # --- FFN: LN -> Linear -> ReLU -> Linear -> dropout(id) -> residual ---
    h = _layernorm(dst, _vrow(vec_ref, "ffn_norm_g"), _vrow(vec_ref, "ffn_norm_b"))
    h = jnp.dot(h, _wmat(w_ref, "ffn_w1", D_MODEL, FFN_DIM),
                preferred_element_type=jnp.float32) + _vrow(vec_ref, "ffn_b1", FFN_DIM)
    h = jnp.maximum(h, 0.0)
    h = jnp.dot(h, _wmat(w_ref, "ffn_w2", FFN_DIM, D_MODEL),
                preferred_element_type=jnp.float32) + _vrow(vec_ref, "ffn_b2")
    dst = h + dst

    out_ref[...] = dst.astype(out_ref.dtype)


def decoder_block_with_cross_attention(src, dst, causal_mask, padding_mask, params):
    B, Ld, D = dst.shape
    _, Ls, _ = src.shape
    assert D == D_MODEL

    w_slab, v_slab = pack_params(params)
    src2 = src.reshape(B * Ls, D).astype(jnp.float32)
    dst2 = dst.reshape(B * Ld, D).astype(jnp.float32)

    vmem = pl.BlockSpec(memory_space=pltpu.MemorySpace.VMEM)  # whole array staged in VMEM
    out2 = pl.pallas_call(
        partial(decoder_block_kernel, B=B, Ls=Ls, Ld=Ld),
        out_shape=jax.ShapeDtypeStruct((B * Ld, D), jnp.float32),
        in_specs=[vmem] * 6,
        out_specs=vmem,
        # No grid: one invocation handles the whole batch (everything fits in VMEM).
    )(src2, dst2, causal_mask.astype(jnp.float32), padding_mask.astype(jnp.float32),
      w_slab, v_slab)
    return out2.reshape(B, Ld, D)


# ---------------- pure-JAX reference (sanity check) ----------------
def reference(src, dst, cmask, pmask, params):
    def layernorm(x, g, b):
        mu = jnp.mean(x, axis=-1, keepdims=True)
        var = jnp.mean(jnp.square(x - mu), axis=-1, keepdims=True)
        return (x - mu) * jax.lax.rsqrt(var + LN_EPS) * g + b

    def linear(x, w, b):
        return x @ w.T + b

    def mha(q_in, k_in, v_in, mask, pfx):
        p = lambda s: params[f"{pfx}_{s}"]
        q = linear(layernorm(q_in, p("qn_g"), p("qn_b")), p("wq"), p("bq"))
        k = linear(layernorm(k_in, p("kn_g"), p("kn_b")), p("wk"), p("bk"))
        v = linear(layernorm(v_in, p("vn_g"), p("vn_b")), p("wv"), p("bv"))
        B, Lq, _ = q.shape
        Lk = k.shape[1]
        qh = q.reshape(B, Lq, NUM_HEADS, D_K).transpose(0, 2, 1, 3)
        kh = k.reshape(B, Lk, NUM_HEADS, D_K).transpose(0, 2, 1, 3)
        vh = v.reshape(B, Lk, NUM_HEADS, D_K).transpose(0, 2, 1, 3)
        s = jnp.einsum("bhqd,bhkd->bhqk", qh, kh)
        s = (s + mask) / math.sqrt(D_K)
        a = jax.nn.softmax(s, axis=-1)
        o = jnp.einsum("bhqk,bhkd->bhqd", a, vh)
        return o.transpose(0, 2, 1, 3).reshape(B, Lq, NUM_HEADS * D_K)

    x = dst
    x = linear(mha(x, x, x, cmask, "sa"), params["sa_wfc"], params["sa_bfc"]) + x
    x = linear(mha(x, src, src, pmask, "ca"), params["ca_wfc"], params["ca_bfc"]) + x
    h = layernorm(x, params["ffn_norm_g"], params["ffn_norm_b"])
    h = jnp.maximum(linear(h, params["ffn_w1"], params["ffn_b1"]), 0.0)
    h = linear(h, params["ffn_w2"], params["ffn_b2"])
    return h + x


# ---------------- main ----------------
if __name__ == "__main__":
    key = jax.random.PRNGKey(0)
    k_src, k_dst, k_params = jax.random.split(key, 3)

    B, L_SRC, L_DST = 2, 8, 8
    src = jax.random.normal(k_src, (B, L_SRC, D_MODEL), jnp.float32)
    dst = jax.random.normal(k_dst, (B, L_DST, D_MODEL), jnp.float32)

    # causal mask for decoder self-attention (upper triangle masked)
    causal_mask = jnp.where(
        jnp.triu(jnp.ones((L_DST, L_DST), jnp.float32), k=1) > 0, NEG_INF, 0.0
    )
    # padding mask for cross-attention: last 2 source positions are padding
    padding_mask = jnp.zeros((L_DST, L_SRC), jnp.float32).at[:, -2:].set(NEG_INF)

    params = make_params(k_params)

    out = decoder_block_with_cross_attention(src, dst, causal_mask, padding_mask, params)
    out = jax.block_until_ready(out)

    ref = jax.block_until_ready(reference(src, dst, causal_mask, padding_mask, params))
    assert out.shape == (B, L_DST, D_MODEL)
    # Tight tolerance; only deviation beyond f32 roundoff is the EUP approximate
    # reciprocal used for the softmax denominator.
    assert jnp.allclose(out, ref, atol=2e-3, rtol=2e-3), "mismatch vs pure-JAX reference"

    print("KERNEL_OK")
</pallas_src>

<mosaic_0001>
module attributes {stable_mosaic.version = 11 : i64} {
  func.func @decoder_block_kernel(%arg0: memref<16x32xf32, #tpu.memory_space<vmem>>, %arg1: memref<16x32xf32, #tpu.memory_space<vmem>>, %arg2: memref<8x8xf32, #tpu.memory_space<vmem>>, %arg3: memref<8x8xf32, #tpu.memory_space<vmem>>, %arg4: memref<352x64xf32, #tpu.memory_space<vmem>>, %arg5: memref<24x64xf32, #tpu.memory_space<vmem>>, %arg6: memref<16x32xf32, #tpu.memory_space<vmem>>) attributes {dimension_semantics = [], scalar_prefetch = 0 : i64, scratch_operands = 0 : i64, tpu.core_type = #tpu.core_type<tc>} {
    %c0 = arith.constant 0 : index
    %c0_0 = arith.constant 0 : index
    %0 = vector.load %arg0[%c0, %c0_0] : memref<16x32xf32, #tpu.memory_space<vmem>>, vector<16x32xf32>
    %c0_1 = arith.constant 0 : index
    %c0_2 = arith.constant 0 : index
    %1 = vector.load %arg1[%c0_1, %c0_2] : memref<16x32xf32, #tpu.memory_space<vmem>>, vector<16x32xf32>
    %c0_3 = arith.constant 0 : index
    %c0_4 = arith.constant 0 : index
    %2 = vector.load %arg2[%c0_3, %c0_4] : memref<8x8xf32, #tpu.memory_space<vmem>>, vector<8x8xf32>
    %c0_5 = arith.constant 0 : index
    %c0_6 = arith.constant 0 : index
    %3 = vector.load %arg5[%c0_5, %c0_6] : memref<24x64xf32, #tpu.memory_space<vmem>>, vector<1x32xf32>
    %c1 = arith.constant 1 : index
    %c0_7 = arith.constant 0 : index
    %4 = vector.load %arg5[%c1, %c0_7] : memref<24x64xf32, #tpu.memory_space<vmem>>, vector<1x32xf32>
    %cst = arith.constant dense<0.000000e+00> : vector<16xf32>
    %5 = vector.multi_reduction <add>, %1, %cst [1] : vector<16x32xf32> to vector<16xf32>
    %6 = vector.shape_cast %5 : vector<16xf32> to vector<16x1xf32>
    %cst_8 = arith.constant 3.200000e+01 : f32
    %7 = vector.broadcast %cst_8 : f32 to vector<16x1xf32>
    %8 = arith.divf %6, %7 : vector<16x1xf32>
    %9 = vector.broadcast %8 : vector<16x1xf32> to vector<16x32xf32>
    %10 = arith.subf %1, %9 : vector<16x32xf32>
    %11 = arith.mulf %10, %10 : vector<16x32xf32>
    %cst_9 = arith.constant dense<0.000000e+00> : vector<16xf32>
    %12 = vector.multi_reduction <add>, %11, %cst_9 [1] : vector<16x32xf32> to vector<16xf32>
    %13 = vector.shape_cast %12 : vector<16xf32> to vector<16x1xf32>
    %cst_10 = arith.constant 3.200000e+01 : f32
    %14 = vector.broadcast %cst_10 : f32 to vector<16x1xf32>
    %15 = arith.divf %13, %14 : vector<16x1xf32>
    %16 = vector.broadcast %8 : vector<16x1xf32> to vector<16x32xf32>
    %17 = arith.subf %1, %16 : vector<16x32xf32>
    %cst_11 = arith.constant 9.99999974E-6 : f32
    %18 = vector.broadcast %cst_11 : f32 to vector<16x1xf32>
    %19 = arith.addf %15, %18 : vector<16x1xf32>
    %20 = math.rsqrt %19 : vector<16x1xf32>
    %21 = vector.broadcast %20 : vector<16x1xf32> to vector<16x32xf32>
    %22 = arith.mulf %17, %21 : vector<16x32xf32>
    %23 = vector.broadcast %3 : vector<1x32xf32> to vector<16x32xf32>
    %24 = arith.mulf %22, %23 : vector<16x32xf32>
    %25 = vector.broadcast %4 : vector<1x32xf32> to vector<16x32xf32>
    %26 = arith.addf %24, %25 : vector<16x32xf32>
    %c0_12 = arith.constant 0 : index
    %c0_13 = arith.constant 0 : index
    %27 = vector.load %arg4[%c0_12, %c0_13] : memref<352x64xf32, #tpu.memory_space<vmem>>, vector<32x32xf32>
    %cst_14 = arith.constant dense<0.000000e+00> : vector<16x32xf32>
    %28 = tpu.matmul %26, %27, %cst_14 {dimension_numbers = #tpu.dot_dimension_numbers<[1], [0], [0], [1], [0, 0, 1, 1], [], []>} : vector<16x32xf32>, vector<32x32xf32>, vector<16x32xf32> -> vector<16x32xf32>
    %c6 = arith.constant 6 : index
    %c0_15 = arith.constant 0 : index
    %29 = vector.load %arg5[%c6, %c0_15] : memref<24x64xf32, #tpu.memory_space<vmem>>, vector<1x32xf32>
    %30 = vector.broadcast %29 : vector<1x32xf32> to vector<16x32xf32>
    %31 = arith.addf %28, %30 : vector<16x32xf32>
    %c2 = arith.constant 2 : index
    %c0_16 = arith.constant 0 : index
    %32 = vector.load %arg5[%c2, %c0_16] : memref<24x64xf32, #tpu.memory_space<vmem>>, vector<1x32xf32>
    %c3 = arith.constant 3 : index
    %c0_17 = arith.constant 0 : index
    %33 = vector.load %arg5[%c3, %c0_17] : memref<24x64xf32, #tpu.memory_space<vmem>>, vector<1x32xf32>
    %cst_18 = arith.constant dense<0.000000e+00> : vector<16xf32>
    %34 = vector.multi_reduction <add>, %1, %cst_18 [1] : vector<16x32xf32> to vector<16xf32>
    %35 = vector.shape_cast %34 : vector<16xf32> to vector<16x1xf32>
    %cst_19 = arith.constant 3.200000e+01 : f32
    %36 = vector.broadcast %cst_19 : f32 to vector<16x1xf32>
    %37 = arith.divf %35, %36 : vector<16x1xf32>
    %38 = vector.broadcast %37 : vector<16x1xf32> to vector<16x32xf32>
    %39 = arith.subf %1, %38 : vector<16x32xf32>
    %40 = arith.mulf %39, %39 : vector<16x32xf32>
    %cst_20 = arith.constant dense<0.000000e+00> : vector<16xf32>
    %41 = vector.multi_reduction <add>, %40, %cst_20 [1] : vector<16x32xf32> to vector<16xf32>
    %42 = vector.shape_cast %41 : vector<16xf32> to vector<16x1xf32>
    %cst_21 = arith.constant 3.200000e+01 : f32
    %43 = vector.broadcast %cst_21 : f32 to vector<16x1xf32>
    %44 = arith.divf %42, %43 : vector<16x1xf32>
    %45 = vector.broadcast %37 : vector<16x1xf32> to vector<16x32xf32>
    %46 = arith.subf %1, %45 : vector<16x32xf32>
    %cst_22 = arith.constant 9.99999974E-6 : f32
    %47 = vector.broadcast %cst_22 : f32 to vector<16x1xf32>
    %48 = arith.addf %44, %47 : vector<16x1xf32>
    %49 = math.rsqrt %48 : vector<16x1xf32>
    %50 = vector.broadcast %49 : vector<16x1xf32> to vector<16x32xf32>
    %51 = arith.mulf %46, %50 : vector<16x32xf32>
    %52 = vector.broadcast %32 : vector<1x32xf32> to vector<16x32xf32>
    %53 = arith.mulf %51, %52 : vector<16x32xf32>
    %54 = vector.broadcast %33 : vector<1x32xf32> to vector<16x32xf32>
    %55 = arith.addf %53, %54 : vector<16x32xf32>
    %c32 = arith.constant 32 : index
    %c0_23 = arith.constant 0 : index
    %56 = vector.load %arg4[%c32, %c0_23] : memref<352x64xf32, #tpu.memory_space<vmem>>, vector<32x32xf32>
    %cst_24 = arith.constant dense<0.000000e+00> : vector<16x32xf32>
    %57 = tpu.matmul %55, %56, %cst_24 {dimension_numbers = #tpu.dot_dimension_numbers<[1], [0], [0], [1], [0, 0, 1, 1], [], []>} : vector<16x32xf32>, vector<32x32xf32>, vector<16x32xf32> -> vector<16x32xf32>
    %c7 = arith.constant 7 : index
    %c0_25 = arith.constant 0 : index
    %58 = vector.load %arg5[%c7, %c0_25] : memref<24x64xf32, #tpu.memory_space<vmem>>, vector<1x32xf32>
    %59 = vector.broadcast %58 : vector<1x32xf32> to vector<16x32xf32>
    %60 = arith.addf %57, %59 : vector<16x32xf32>
    %c4 = arith.constant 4 : index
    %c0_26 = arith.constant 0 : index
    %61 = vector.load %arg5[%c4, %c0_26] : memref<24x64xf32, #tpu.memory_space<vmem>>, vector<1x32xf32>
    %c5 = arith.constant 5 : index
    %c0_27 = arith.constant 0 : index
    %62 = vector.load %arg5[%c5, %c0_27] : memref<24x64xf32, #tpu.memory_space<vmem>>, vector<1x32xf32>
    %cst_28 = arith.constant dense<0.000000e+00> : vector<16xf32>
    %63 = vector.multi_reduction <add>, %1, %cst_28 [1] : vector<16x32xf32> to vector<16xf32>
    %64 = vector.shape_cast %63 : vector<16xf32> to vector<16x1xf32>
    %cst_29 = arith.constant 3.200000e+01 : f32
    %65 = vector.broadcast %cst_29 : f32 to vector<16x1xf32>
    %66 = arith.divf %64, %65 : vector<16x1xf32>
    %67 = vector.broadcast %66 : vector<16x1xf32> to vector<16x32xf32>
    %68 = arith.subf %1, %67 : vector<16x32xf32>
    %69 = arith.mulf %68, %68 : vector<16x32xf32>
    %cst_30 = arith.constant dense<0.000000e+00> : vector<16xf32>
    %70 = vector.multi_reduction <add>, %69, %cst_30 [1] : vector<16x32xf32> to vector<16xf32>
    %71 = vector.shape_cast %70 : vector<16xf32> to vector<16x1xf32>
    %cst_31 = arith.constant 3.200000e+01 : f32
    %72 = vector.broadcast %cst_31 : f32 to vector<16x1xf32>
    %73 = arith.divf %71, %72 : vector<16x1xf32>
    %74 = vector.broadcast %66 : vector<16x1xf32> to vector<16x32xf32>
    %75 = arith.subf %1, %74 : vector<16x32xf32>
    %cst_32 = arith.constant 9.99999974E-6 : f32
    %76 = vector.broadcast %cst_32 : f32 to vector<16x1xf32>
    %77 = arith.addf %73, %76 : vector<16x1xf32>
    %78 = math.rsqrt %77 : vector<16x1xf32>
    %79 = vector.broadcast %78 : vector<16x1xf32> to vector<16x32xf32>
    %80 = arith.mulf %75, %79 : vector<16x32xf32>
    %81 = vector.broadcast %61 : vector<1x32xf32> to vector<16x32xf32>
    %82 = arith.mulf %80, %81 : vector<16x32xf32>
    %83 = vector.broadcast %62 : vector<1x32xf32> to vector<16x32xf32>
    %84 = arith.addf %82, %83 : vector<16x32xf32>
    %c64 = arith.constant 64 : index
    %c0_33 = arith.constant 0 : index
    %85 = vector.load %arg4[%c64, %c0_33] : memref<352x64xf32, #tpu.memory_space<vmem>>, vector<32x32xf32>
    %cst_34 = arith.constant dense<0.000000e+00> : vector<16x32xf32>
    %86 = tpu.matmul %84, %85, %cst_34 {dimension_numbers = #tpu.dot_dimension_numbers<[1], [0], [0], [1], [0, 0, 1, 1], [], []>} : vector<16x32xf32>, vector<32x32xf32>, vector<16x32xf32> -> vector<16x32xf32>
    %c8 = arith.constant 8 : index
    %c0_35 = arith.constant 0 : index
    %87 = vector.load %arg5[%c8, %c0_35] : memref<24x64xf32, #tpu.memory_space<vmem>>, vector<1x32xf32>
    %88 = vector.broadcast %87 : vector<1x32xf32> to vector<16x32xf32>
    %89 = arith.addf %86, %88 : vector<16x32xf32>
    %90 = vector.shape_cast %31 : vector<16x32xf32> to vector<2x8x32xf32>
    %91 = vector.shape_cast %60 : vector<16x32xf32> to vector<2x8x32xf32>
    %92 = vector.shape_cast %89 : vector<16x32xf32> to vector<2x8x32xf32>
    %93 = vector.shape_cast %2 : vector<8x8xf32> to vector<1x8x8xf32>
    %94 = vector.broadcast %93 : vector<1x8x8xf32> to vector<2x8x8xf32>
    %cst_36 = arith.constant 0.000000e+00 : f32
    %95 = vector.broadcast %cst_36 : f32 to vector<16x32xf32>
    %96 = vector.extract_strided_slice %90 {offsets = [0, 0, 0], sizes = [2, 8, 8], strides = [1, 1, 1]} : vector<2x8x32xf32> to vector<2x8x8xf32>
    %97 = vector.extract_strided_slice %91 {offsets = [0, 0, 0], sizes = [2, 8, 8], strides = [1, 1, 1]} : vector<2x8x32xf32> to vector<2x8x8xf32>
    "tpu.trace_start"() <{level = 10 : i32, message = "bqd,bkd->bqk"}> : () -> ()
    %cst_37 = arith.constant dense<0.000000e+00> : vector<2x8x8xf32>
    %98 = tpu.matmul %96, %97, %cst_37 {dimension_numbers = #tpu.dot_dimension_numbers<[2], [2], [1], [1], [0, 0, 0, 1, 1, 1], [0], [0]>} : vector<2x8x8xf32>, vector<2x8x8xf32>, vector<2x8x8xf32> -> vector<2x8x8xf32>
    "tpu.trace_stop"() : () -> ()
    %99 = arith.addf %98, %94 : vector<2x8x8xf32>
    %cst_38 = arith.constant 0.353553385 : f32
    %100 = vector.broadcast %cst_38 : f32 to vector<2x8x8xf32>
    %101 = arith.mulf %99, %100 : vector<2x8x8xf32>
    %cst_39 = arith.constant dense<0xFF800000> : vector<2x8xf32>
    %102 = vector.multi_reduction <maximumf>, %101, %cst_39 [2] : vector<2x8x8xf32> to vector<2x8xf32>
    %103 = vector.shape_cast %102 : vector<2x8xf32> to vector<2x8x1xf32>
    %104 = vector.broadcast %103 : vector<2x8x1xf32> to vector<2x8x8xf32>
    %105 = arith.subf %101, %104 : vector<2x8x8xf32>
    %106 = math.exp %105 : vector<2x8x8xf32>
    %cst_40 = arith.constant dense<0.000000e+00> : vector<2x8xf32>
    %107 = vector.multi_reduction <add>, %106, %cst_40 [2] : vector<2x8x8xf32> to vector<2x8xf32>
    %108 = vector.shape_cast %107 : vector<2x8xf32> to vector<2x8x1xf32>
    %109 = tpu.reciprocal %108 {approx = true} : vector<2x8x1xf32> -> vector<2x8x1xf32>
    %110 = vector.broadcast %109 : vector<2x8x1xf32> to vector<2x8x8xf32>
    %111 = arith.mulf %106, %110 : vector<2x8x8xf32>
    %112 = vector.extract_strided_slice %92 {offsets = [0, 0, 0], sizes = [2, 8, 8], strides = [1, 1, 1]} : vector<2x8x32xf32> to vector<2x8x8xf32>
    "tpu.trace_start"() <{level = 10 : i32, message = "bqk,bkd->bqd"}> : () -> ()
    %cst_41 = arith.constant dense<0.000000e+00> : vector<2x8x8xf32>
    %113 = tpu.matmul %111, %112, %cst_41 {dimension_numbers = #tpu.dot_dimension_numbers<[2], [1], [1], [2], [0, 0, 0, 1, 1, 2], [0], [0]>} : vector<2x8x8xf32>, vector<2x8x8xf32>, vector<2x8x8xf32> -> vector<2x8x8xf32>
    "tpu.trace_stop"() : () -> ()
    %c96 = arith.constant 96 : index
    %c0_42 = arith.constant 0 : index
    %114 = vector.load %arg4[%c96, %c0_42] : memref<352x64xf32, #tpu.memory_space<vmem>>, vector<8x32xf32>
    %115 = vector.shape_cast %113 : vector<2x8x8xf32> to vector<16x8xf32>
    %cst_43 = arith.constant dense<0.000000e+00> : vector<16x32xf32>
    %116 = tpu.matmul %115, %114, %cst_43 {dimension_numbers = #tpu.dot_dimension_numbers<[1], [0], [0], [1], [0, 0, 1, 1], [], []>} : vector<16x8xf32>, vector<8x32xf32>, vector<16x32xf32> -> vector<16x32xf32>
    %117 = arith.addf %95, %116 : vector<16x32xf32>
    %118 = vector.extract_strided_slice %90 {offsets = [0, 0, 8], sizes = [2, 8, 8], strides = [1, 1, 1]} : vector<2x8x32xf32> to vector<2x8x8xf32>
    %119 = vector.extract_strided_slice %91 {offsets = [0, 0, 8], sizes = [2, 8, 8], strides = [1, 1, 1]} : vector<2x8x32xf32> to vector<2x8x8xf32>
    "tpu.trace_start"() <{level = 10 : i32, message = "bqd,bkd->bqk"}> : () -> ()
    %cst_44 = arith.constant dense<0.000000e+00> : vector<2x8x8xf32>
    %120 = tpu.matmul %118, %119, %cst_44 {dimension_numbers = #tpu.dot_dimension_numbers<[2], [2], [1], [1], [0, 0, 0, 1, 1, 1], [0], [0]>} : vector<2x8x8xf32>, vector<2x8x8xf32>, vector<2x8x8xf32> -> vector<2x8x8xf32>
    "tpu.trace_stop"() : () -> ()
    %121 = arith.addf %120, %94 : vector<2x8x8xf32>
    %cst_45 = arith.constant 0.353553385 : f32
    %122 = vector.broadcast %cst_45 : f32 to vector<2x8x8xf32>
    %123 = arith.mulf %121, %122 : vector<2x8x8xf32>
    %cst_46 = arith.constant dense<0xFF800000> : vector<2x8xf32>
    %124 = vector.multi_reduction <maximumf>, %123, %cst_46 [2] : vector<2x8x8xf32> to vector<2x8xf32>
    %125 = vector.shape_cast %124 : vector<2x8xf32> to vector<2x8x1xf32>
    %126 = vector.broadcast %125 : vector<2x8x1xf32> to vector<2x8x8xf32>
    %127 = arith.subf %123, %126 : vector<2x8x8xf32>
    %128 = math.exp %127 : vector<2x8x8xf32>
    %cst_47 = arith.constant dense<0.000000e+00> : vector<2x8xf32>
    %129 = vector.multi_reduction <add>, %128, %cst_47 [2] : vector<2x8x8xf32> to vector<2x8xf32>
    %130 = vector.shape_cast %129 : vector<2x8xf32> to vector<2x8x1xf32>
    %131 = tpu.reciprocal %130 {approx = true} : vector<2x8x1xf32> -> vector<2x8x1xf32>
    %132 = vector.broadcast %131 : vector<2x8x1xf32> to vector<2x8x8xf32>
    %133 = arith.mulf %128, %132 : vector<2x8x8xf32>
    %134 = vector.extract_strided_slice %92 {offsets = [0, 0, 8], sizes = [2, 8, 8], strides = [1, 1, 1]} : vector<2x8x32xf32> to vector<2x8x8xf32>
    "tpu.trace_start"() <{level = 10 : i32, message = "bqk,bkd->bqd"}> : () -> ()
    %cst_48 = arith.constant dense<0.000000e+00> : vector<2x8x8xf32>
    %135 = tpu.matmul %133, %134, %cst_48 {dimension_numbers = #tpu.dot_dimension_numbers<[2], [1], [1], [2], [0, 0, 0, 1, 1, 2], [0], [0]>} : vector<2x8x8xf32>, vector<2x8x8xf32>, vector<2x8x8xf32> -> vector<2x8x8xf32>
    "tpu.trace_stop"() : () -> ()
    %c104 = arith.constant 104 : index
    %c0_49 = arith.constant 0 : index
    %136 = vector.load %arg4[%c104, %c0_49] : memref<352x64xf32, #tpu.memory_space<vmem>>, vector<8x32xf32>
    %137 = vector.shape_cast %135 : vector<2x8x8xf32> to vector<16x8xf32>
    %cst_50 = arith.constant dense<0.000000e+00> : vector<16x32xf32>
    %138 = tpu.matmul %137, %136, %cst_50 {dimension_numbers = #tpu.dot_dimension_numbers<[1], [0], [0], [1], [0, 0, 1, 1], [], []>} : vector<16x8xf32>, vector<8x32xf32>, vector<16x32xf32> -> vector<16x32xf32>
    %139 = arith.addf %117, %138 : vector<16x32xf32>
    %140 = vector.extract_strided_slice %90 {offsets = [0, 0, 16], sizes = [2, 8, 8], strides = [1, 1, 1]} : vector<2x8x32xf32> to vector<2x8x8xf32>
    %141 = vector.extract_strided_slice %91 {offsets = [0, 0, 16], sizes = [2, 8, 8], strides = [1, 1, 1]} : vector<2x8x32xf32> to vector<2x8x8xf32>
    "tpu.trace_start"() <{level = 10 : i32, message = "bqd,bkd->bqk"}> : () -> ()
    %cst_51 = arith.constant dense<0.000000e+00> : vector<2x8x8xf32>
    %142 = tpu.matmul %140, %141, %cst_51 {dimension_numbers = #tpu.dot_dimension_numbers<[2], [2], [1], [1], [0, 0, 0, 1, 1, 1], [0], [0]>} : vector<2x8x8xf32>, vector<2x8x8xf32>, vector<2x8x8xf32> -> vector<2x8x8xf32>
    "tpu.trace_stop"() : () -> ()
    %143 = arith.addf %142, %94 : vector<2x8x8xf32>
    %cst_52 = arith.constant 0.353553385 : f32
    %144 = vector.broadcast %cst_52 : f32 to vector<2x8x8xf32>
    %145 = arith.mulf %143, %144 : vector<2x8x8xf32>
    %cst_53 = arith.constant dense<0xFF800000> : vector<2x8xf32>
    %146 = vector.multi_reduction <maximumf>, %145, %cst_53 [2] : vector<2x8x8xf32> to vector<2x8xf32>
    %147 = vector.shape_cast %146 : vector<2x8xf32> to vector<2x8x1xf32>
    %148 = vector.broadcast %147 : vector<2x8x1xf32> to vector<2x8x8xf32>
    %149 = arith.subf %145, %148 : vector<2x8x8xf32>
    %150 = math.exp %149 : vector<2x8x8xf32>
    %cst_54 = arith.constant dense<0.000000e+00> : vector<2x8xf32>
    %151 = vector.multi_reduction <add>, %150, %cst_54 [2] : vector<2x8x8xf32> to vector<2x8xf32>
    %152 = vector.shape_cast %151 : vector<2x8xf32> to vector<2x8x1xf32>
    %153 = tpu.reciprocal %152 {approx = true} : vector<2x8x1xf32> -> vector<2x8x1xf32>
    %154 = vector.broadcast %153 : vector<2x8x1xf32> to vector<2x8x8xf32>
    %155 = arith.mulf %150, %154 : vector<2x8x8xf32>
    %156 = vector.extract_strided_slice %92 {offsets = [0, 0, 16], sizes = [2, 8, 8], strides = [1, 1, 1]} : vector<2x8x32xf32> to vector<2x8x8xf32>
    "tpu.trace_start"() <{level = 10 : i32, message = "bqk,bkd->bqd"}> : () -> ()
    %cst_55 = arith.constant dense<0.000000e+00> : vector<2x8x8xf32>
    %157 = tpu.matmul %155, %156, %cst_55 {dimension_numbers = #tpu.dot_dimension_numbers<[2], [1], [1], [2], [0, 0, 0, 1, 1, 2], [0], [0]>} : vector<2x8x8xf32>, vector<2x8x8xf32>, vector<2x8x8xf32> -> vector<2x8x8xf32>
    "tpu.trace_stop"() : () -> ()
    %c112 = arith.constant 112 : index
    %c0_56 = arith.constant 0 : index
    %158 = vector.load %arg4[%c112, %c0_56] : memref<352x64xf32, #tpu.memory_space<vmem>>, vector<8x32xf32>
    %159 = vector.shape_cast %157 : vector<2x8x8xf32> to vector<16x8xf32>
    %cst_57 = arith.constant dense<0.000000e+00> : vector<16x32xf32>
    %160 = tpu.matmul %159, %158, %cst_57 {dimension_numbers = #tpu.dot_dimension_numbers<[1], [0], [0], [1], [0, 0, 1, 1], [], []>} : vector<16x8xf32>, vector<8x32xf32>, vector<16x32xf32> -> vector<16x32xf32>
    %161 = arith.addf %139, %160 : vector<16x32xf32>
    %162 = vector.extract_strided_slice %90 {offsets = [0, 0, 24], sizes = [2, 8, 8], strides = [1, 1, 1]} : vector<2x8x32xf32> to vector<2x8x8xf32>
    %163 = vector.extract_strided_slice %91 {offsets = [0, 0, 24], sizes = [2, 8, 8], strides = [1, 1, 1]} : vector<2x8x32xf32> to vector<2x8x8xf32>
    "tpu.trace_start"() <{level = 10 : i32, message = "bqd,bkd->bqk"}> : () -> ()
    %cst_58 = arith.constant dense<0.000000e+00> : vector<2x8x8xf32>
    %164 = tpu.matmul %162, %163, %cst_58 {dimension_numbers = #tpu.dot_dimension_numbers<[2], [2], [1], [1], [0, 0, 0, 1, 1, 1], [0], [0]>} : vector<2x8x8xf32>, vector<2x8x8xf32>, vector<2x8x8xf32> -> vector<2x8x8xf32>
    "tpu.trace_stop"() : () -> ()
    %165 = arith.addf %164, %94 : vector<2x8x8xf32>
    %cst_59 = arith.constant 0.353553385 : f32
    %166 = vector.broadcast %cst_59 : f32 to vector<2x8x8xf32>
    %167 = arith.mulf %165, %166 : vector<2x8x8xf32>
    %cst_60 = arith.constant dense<0xFF800000> : vector<2x8xf32>
    %168 = vector.multi_reduction <maximumf>, %167, %cst_60 [2] : vector<2x8x8xf32> to vector<2x8xf32>
    %169 = vector.shape_cast %168 : vector<2x8xf32> to vector<2x8x1xf32>
    %170 = vector.broadcast %169 : vector<2x8x1xf32> to vector<2x8x8xf32>
    %171 = arith.subf %167, %170 : vector<2x8x8xf32>
    %172 = math.exp %171 : vector<2x8x8xf32>
    %cst_61 = arith.constant dense<0.000000e+00> : vector<2x8xf32>
    %173 = vector.multi_reduction <add>, %172, %cst_61 [2] : vector<2x8x8xf32> to vector<2x8xf32>
    %174 = vector.shape_cast %173 : vector<2x8xf32> to vector<2x8x1xf32>
    %175 = tpu.reciprocal %174 {approx = true} : vector<2x8x1xf32> -> vector<2x8x1xf32>
    %176 = vector.broadcast %175 : vector<2x8x1xf32> to vector<2x8x8xf32>
    %177 = arith.mulf %172, %176 : vector<2x8x8xf32>
    %178 = vector.extract_strided_slice %92 {offsets = [0, 0, 24], sizes = [2, 8, 8], strides = [1, 1, 1]} : vector<2x8x32xf32> to vector<2x8x8xf32>
    "tpu.trace_start"() <{level = 10 : i32, message = "bqk,bkd->bqd"}> : () -> ()
    %cst_62 = arith.constant dense<0.000000e+00> : vector<2x8x8xf32>
    %179 = tpu.matmul %177, %178, %cst_62 {dimension_numbers = #tpu.dot_dimension_numbers<[2], [1], [1], [2], [0, 0, 0, 1, 1, 2], [0], [0]>} : vector<2x8x8xf32>, vector<2x8x8xf32>, vector<2x8x8xf32> -> vector<2x8x8xf32>
    "tpu.trace_stop"() : () -> ()
    %c120 = arith.constant 120 : index
    %c0_63 = arith.constant 0 : index
    %180 = vector.load %arg4[%c120, %c0_63] : memref<352x64xf32, #tpu.memory_space<vmem>>, vector<8x32xf32>
    %181 = vector.shape_cast %179 : vector<2x8x8xf32> to vector<16x8xf32>
    %cst_64 = arith.constant dense<0.000000e+00> : vector<16x32xf32>
    %182 = tpu.matmul %181, %180, %cst_64 {dimension_numbers = #tpu.dot_dimension_numbers<[1], [0], [0], [1], [0, 0, 1, 1], [], []>} : vector<16x8xf32>, vector<8x32xf32>, vector<16x32xf32> -> vector<16x32xf32>
    %183 = arith.addf %161, %182 : vector<16x32xf32>
    %c9 = arith.constant 9 : index
    %c0_65 = arith.constant 0 : index
    %184 = vector.load %arg5[%c9, %c0_65] : memref<24x64xf32, #tpu.memory_space<vmem>>, vector<1x32xf32>
    %185 = vector.broadcast %184 : vector<1x32xf32> to vector<16x32xf32>
    %186 = arith.addf %183, %185 : vector<16x32xf32>
    %187 = arith.addf %186, %1 : vector<16x32xf32>
    %c0_66 = arith.constant 0 : index
    %c0_67 = arith.constant 0 : index
    %188 = vector.load %arg3[%c0_66, %c0_67] : memref<8x8xf32, #tpu.memory_space<vmem>>, vector<8x8xf32>
    %c10 = arith.constant 10 : index
    %c0_68 = arith.constant 0 : index
    %189 = vector.load %arg5[%c10, %c0_68] : memref<24x64xf32, #tpu.memory_space<vmem>>, vector<1x32xf32>
    %c11 = arith.constant 11 : index
    %c0_69 = arith.constant 0 : index
    %190 = vector.load %arg5[%c11, %c0_69] : memref<24x64xf32, #tpu.memory_space<vmem>>, vector<1x32xf32>
    %cst_70 = arith.constant dense<0.000000e+00> : vector<16xf32>
    %191 = vector.multi_reduction <add>, %187, %cst_70 [1] : vector<16x32xf32> to vector<16xf32>
    %192 = vector.shape_cast %191 : vector<16xf32> to vector<16x1xf32>
    %cst_71 = arith.constant 3.200000e+01 : f32
    %193 = vector.broadcast %cst_71 : f32 to vector<16x1xf32>
    %194 = arith.divf %192, %193 : vector<16x1xf32>
    %195 = vector.broadcast %194 : vector<16x1xf32> to vector<16x32xf32>
    %196 = arith.subf %187, %195 : vector<16x32xf32>
    %197 = arith.mulf %196, %196 : vector<16x32xf32>
    %cst_72 = arith.constant dense<0.000000e+00> : vector<16xf32>
    %198 = vector.multi_reduction <add>, %197, %cst_72 [1] : vector<16x32xf32> to vector<16xf32>
    %199 = vector.shape_cast %198 : vector<16xf32> to vector<16x1xf32>
    %cst_73 = arith.constant 3.200000e+01 : f32
    %200 = vector.broadcast %cst_73 : f32 to vector<16x1xf32>
    %201 = arith.divf %199, %200 : vector<16x1xf32>
    %202 = vector.broadcast %194 : vector<16x1xf32> to vector<16x32xf32>
    %203 = arith.subf %187, %202 : vector<16x32xf32>
    %cst_74 = arith.constant 9.99999974E-6 : f32
    %204 = vector.broadcast %cst_74 : f32 to vector<16x1xf32>
    %205 = arith.addf %201, %204 : vector<16x1xf32>
    %206 = math.rsqrt %205 : vector<16x1xf32>
    %207 = vector.broadcast %206 : vector<16x1xf32> to vector<16x32xf32>
    %208 = arith.mulf %203, %207 : vector<16x32xf32>
    %209 = vector.broadcast %189 : vector<1x32xf32> to vector<16x32xf32>
    %210 = arith.mulf %208, %209 : vector<16x32xf32>
    %211 = vector.broadcast %190 : vector<1x32xf32> to vector<16x32xf32>
    %212 = arith.addf %210, %211 : vector<16x32xf32>
    %c128 = arith.constant 128 : index
    %c0_75 = arith.constant 0 : index
    %213 = vector.load %arg4[%c128, %c0_75] : memref<352x64xf32, #tpu.memory_space<vmem>>, vector<32x32xf32>
    %cst_76 = arith.constant dense<0.000000e+00> : vector<16x32xf32>
    %214 = tpu.matmul %212, %213, %cst_76 {dimension_numbers = #tpu.dot_dimension_numbers<[1], [0], [0], [1], [0, 0, 1, 1], [], []>} : vector<16x32xf32>, vector<32x32xf32>, vector<16x32xf32> -> vector<16x32xf32>
    %c16 = arith.constant 16 : index
    %c0_77 = arith.constant 0 : index
    %215 = vector.load %arg5[%c16, %c0_77] : memref<24x64xf32, #tpu.memory_space<vmem>>, vector<1x32xf32>
    %216 = vector.broadcast %215 : vector<1x32xf32> to vector<16x32xf32>
    %217 = arith.addf %214, %216 : vector<16x32xf32>
    %c12 = arith.constant 12 : index
    %c0_78 = arith.constant 0 : index
    %218 = vector.load %arg5[%c12, %c0_78] : memref<24x64xf32, #tpu.memory_space<vmem>>, vector<1x32xf32>
    %c13 = arith.constant 13 : index
    %c0_79 = arith.constant 0 : index
    %219 = vector.load %arg5[%c13, %c0_79] : memref<24x64xf32, #tpu.memory_space<vmem>>, vector<1x32xf32>
    %cst_80 = arith.constant dense<0.000000e+00> : vector<16xf32>
    %220 = vector.multi_reduction <add>, %0, %cst_80 [1] : vector<16x32xf32> to vector<16xf32>
    %221 = vector.shape_cast %220 : vector<16xf32> to vector<16x1xf32>
    %cst_81 = arith.constant 3.200000e+01 : f32
    %222 = vector.broadcast %cst_81 : f32 to vector<16x1xf32>
    %223 = arith.divf %221, %222 : vector<16x1xf32>
    %224 = vector.broadcast %223 : vector<16x1xf32> to vector<16x32xf32>
    %225 = arith.subf %0, %224 : vector<16x32xf32>
    %226 = arith.mulf %225, %225 : vector<16x32xf32>
    %cst_82 = arith.constant dense<0.000000e+00> : vector<16xf32>
    %227 = vector.multi_reduction <add>, %226, %cst_82 [1] : vector<16x32xf32> to vector<16xf32>
    %228 = vector.shape_cast %227 : vector<16xf32> to vector<16x1xf32>
    %cst_83 = arith.constant 3.200000e+01 : f32
    %229 = vector.broadcast %cst_83 : f32 to vector<16x1xf32>
    %230 = arith.divf %228, %229 : vector<16x1xf32>
    %231 = vector.broadcast %223 : vector<16x1xf32> to vector<16x32xf32>
    %232 = arith.subf %0, %231 : vector<16x32xf32>
    %cst_84 = arith.constant 9.99999974E-6 : f32
    %233 = vector.broadcast %cst_84 : f32 to vector<16x1xf32>
    %234 = arith.addf %230, %233 : vector<16x1xf32>
    %235 = math.rsqrt %234 : vector<16x1xf32>
    %236 = vector.broadcast %235 : vector<16x1xf32> to vector<16x32xf32>
    %237 = arith.mulf %232, %236 : vector<16x32xf32>
    %238 = vector.broadcast %218 : vector<1x32xf32> to vector<16x32xf32>
    %239 = arith.mulf %237, %238 : vector<16x32xf32>
    %240 = vector.broadcast %219 : vector<1x32xf32> to vector<16x32xf32>
    %241 = arith.addf %239, %240 : vector<16x32xf32>
    %c160 = arith.constant 160 : index
    %c0_85 = arith.constant 0 : index
    %242 = vector.load %arg4[%c160, %c0_85] : memref<352x64xf32, #tpu.memory_space<vmem>>, vector<32x32xf32>
    %cst_86 = arith.constant dense<0.000000e+00> : vector<16x32xf32>
    %243 = tpu.matmul %241, %242, %cst_86 {dimension_numbers = #tpu.dot_dimension_numbers<[1], [0], [0], [1], [0, 0, 1, 1], [], []>} : vector<16x32xf32>, vector<32x32xf32>, vector<16x32xf32> -> vector<16x32xf32>
    %c17 = arith.constant 17 : index
    %c0_87 = arith.constant 0 : index
    %244 = vector.load %arg5[%c17, %c0_87] : memref<24x64xf32, #tpu.memory_space<vmem>>, vector<1x32xf32>
    %245 = vector.broadcast %244 : vector<1x32xf32> to vector<16x32xf32>
    %246 = arith.addf %243, %245 : vector<16x32xf32>
    %c14 = arith.constant 14 : index
    %c0_88 = arith.constant 0 : index
    %247 = vector.load %arg5[%c14, %c0_88] : memref<24x64xf32, #tpu.memory_space<vmem>>, vector<1x32xf32>
    %c15 = arith.constant 15 : index
    %c0_89 = arith.constant 0 : index
    %248 = vector.load %arg5[%c15, %c0_89] : memref<24x64xf32, #tpu.memory_space<vmem>>, vector<1x32xf32>
    %cst_90 = arith.constant dense<0.000000e+00> : vector<16xf32>
    %249 = vector.multi_reduction <add>, %0, %cst_90 [1] : vector<16x32xf32> to vector<16xf32>
    %250 = vector.shape_cast %249 : vector<16xf32> to vector<16x1xf32>
    %cst_91 = arith.constant 3.200000e+01 : f32
    %251 = vector.broadcast %cst_91 : f32 to vector<16x1xf32>
    %252 = arith.divf %250, %251 : vector<16x1xf32>
    %253 = vector.broadcast %252 : vector<16x1xf32> to vector<16x32xf32>
    %254 = arith.subf %0, %253 : vector<16x32xf32>
    %255 = arith.mulf %254, %254 : vector<16x32xf32>
    %cst_92 = arith.constant dense<0.000000e+00> : vector<16xf32>
    %256 = vector.multi_reduction <add>, %255, %cst_92 [1] : vector<16x32xf32> to vector<16xf32>
    %257 = vector.shape_cast %256 : vector<16xf32> to vector<16x1xf32>
    %cst_93 = arith.constant 3.200000e+01 : f32
    %258 = vector.broadcast %cst_93 : f32 to vector<16x1xf32>
    %259 = arith.divf %257, %258 : vector<16x1xf32>
    %260 = vector.broadcast %252 : vector<16x1xf32> to vector<16x32xf32>
    %261 = arith.subf %0, %260 : vector<16x32xf32>
    %cst_94 = arith.constant 9.99999974E-6 : f32
    %262 = vector.broadcast %cst_94 : f32 to vector<16x1xf32>
    %263 = arith.addf %259, %262 : vector<16x1xf32>
    %264 = math.rsqrt %263 : vector<16x1xf32>
    %265 = vector.broadcast %264 : vector<16x1xf32> to vector<16x32xf32>
    %266 = arith.mulf %261, %265 : vector<16x32xf32>
    %267 = vector.broadcast %247 : vector<1x32xf32> to vector<16x32xf32>
    %268 = arith.mulf %266, %267 : vector<16x32xf32>
    %269 = vector.broadcast %248 : vector<1x32xf32> to vector<16x32xf32>
    %270 = arith.addf %268, %269 : vector<16x32xf32>
    %c192 = arith.constant 192 : index
    %c0_95 = arith.constant 0 : index
    %271 = vector.load %arg4[%c192, %c0_95] : memref<352x64xf32, #tpu.memory_space<vmem>>, vector<32x32xf32>
    %cst_96 = arith.constant dense<0.000000e+00> : vector<16x32xf32>
    %272 = tpu.matmul %270, %271, %cst_96 {dimension_numbers = #tpu.dot_dimension_numbers<[1], [0], [0], [1], [0, 0, 1, 1], [], []>} : vector<16x32xf32>, vector<32x32xf32>, vector<16x32xf32> -> vector<16x32xf32>
    %c18 = arith.constant 18 : index
    %c0_97 = arith.constant 0 : index
    %273 = vector.load %arg5[%c18, %c0_97] : memref<24x64xf32, #tpu.memory_space<vmem>>, vector<1x32xf32>
    %274 = vector.broadcast %273 : vector<1x32xf32> to vector<16x32xf32>
    %275 = arith.addf %272, %274 : vector<16x32xf32>
    %276 = vector.shape_cast %217 : vector<16x32xf32> to vector<2x8x32xf32>
    %277 = vector.shape_cast %246 : vector<16x32xf32> to vector<2x8x32xf32>
    %278 = vector.shape_cast %275 : vector<16x32xf32> to vector<2x8x32xf32>
    %279 = vector.shape_cast %188 : vector<8x8xf32> to vector<1x8x8xf32>
    %280 = vector.broadcast %279 : vector<1x8x8xf32> to vector<2x8x8xf32>
    %cst_98 = arith.constant 0.000000e+00 : f32
    %281 = vector.broadcast %cst_98 : f32 to vector<16x32xf32>
    %282 = vector.extract_strided_slice %276 {offsets = [0, 0, 0], sizes = [2, 8, 8], strides = [1, 1, 1]} : vector<2x8x32xf32> to vector<2x8x8xf32>
    %283 = vector.extract_strided_slice %277 {offsets = [0, 0, 0], sizes = [2, 8, 8], strides = [1, 1, 1]} : vector<2x8x32xf32> to vector<2x8x8xf32>
    "tpu.trace_start"() <{level = 10 : i32, message = "bqd,bkd->bqk"}> : () -> ()
    %cst_99 = arith.constant dense<0.000000e+00> : vector<2x8x8xf32>
    %284 = tpu.matmul %282, %283, %cst_99 {dimension_numbers = #tpu.dot_dimension_numbers<[2], [2], [1], [1], [0, 0, 0, 1, 1, 1], [0], [0]>} : vector<2x8x8xf32>, vector<2x8x8xf32>, vector<2x8x8xf32> -> vector<2x8x8xf32>
    "tpu.trace_stop"() : () -> ()
    %285 = arith.addf %284, %280 : vector<2x8x8xf32>
    %cst_100 = arith.constant 0.353553385 : f32
    %286 = vector.broadcast %cst_100 : f32 to vector<2x8x8xf32>
    %287 = arith.mulf %285, %286 : vector<2x8x8xf32>
    %cst_101 = arith.constant dense<0xFF800000> : vector<2x8xf32>
    %288 = vector.multi_reduction <maximumf>, %287, %cst_101 [2] : vector<2x8x8xf32> to vector<2x8xf32>
    %289 = vector.shape_cast %288 : vector<2x8xf32> to vector<2x8x1xf32>
    %290 = vector.broadcast %289 : vector<2x8x1xf32> to vector<2x8x8xf32>
    %291 = arith.subf %287, %290 : vector<2x8x8xf32>
    %292 = math.exp %291 : vector<2x8x8xf32>
    %cst_102 = arith.constant dense<0.000000e+00> : vector<2x8xf32>
    %293 = vector.multi_reduction <add>, %292, %cst_102 [2] : vector<2x8x8xf32> to vector<2x8xf32>
    %294 = vector.shape_cast %293 : vector<2x8xf32> to vector<2x8x1xf32>
    %295 = tpu.reciprocal %294 {approx = true} : vector<2x8x1xf32> -> vector<2x8x1xf32>
    %296 = vector.broadcast %295 : vector<2x8x1xf32> to vector<2x8x8xf32>
    %297 = arith.mulf %292, %296 : vector<2x8x8xf32>
    %298 = vector.extract_strided_slice %278 {offsets = [0, 0, 0], sizes = [2, 8, 8], strides = [1, 1, 1]} : vector<2x8x32xf32> to vector<2x8x8xf32>
    "tpu.trace_start"() <{level = 10 : i32, message = "bqk,bkd->bqd"}> : () -> ()
    %cst_103 = arith.constant dense<0.000000e+00> : vector<2x8x8xf32>
    %299 = tpu.matmul %297, %298, %cst_103 {dimension_numbers = #tpu.dot_dimension_numbers<[2], [1], [1], [2], [0, 0, 0, 1, 1, 2], [0], [0]>} : vector<2x8x8xf32>, vector<2x8x8xf32>, vector<2x8x8xf32> -> vector<2x8x8xf32>
    "tpu.trace_stop"() : () -> ()
    %c224 = arith.constant 224 : index
    %c0_104 = arith.constant 0 : index
    %300 = vector.load %arg4[%c224, %c0_104] : memref<352x64xf32, #tpu.memory_space<vmem>>, vector<8x32xf32>
    %301 = vector.shape_cast %299 : vector<2x8x8xf32> to vector<16x8xf32>
    %cst_105 = arith.constant dense<0.000000e+00> : vector<16x32xf32>
    %302 = tpu.matmul %301, %300, %cst_105 {dimension_numbers = #tpu.dot_dimension_numbers<[1], [0], [0], [1], [0, 0, 1, 1], [], []>} : vector<16x8xf32>, vector<8x32xf32>, vector<16x32xf32> -> vector<16x32xf32>
    %303 = arith.addf %281, %302 : vector<16x32xf32>
    %304 = vector.extract_strided_slice %276 {offsets = [0, 0, 8], sizes = [2, 8, 8], strides = [1, 1, 1]} : vector<2x8x32xf32> to vector<2x8x8xf32>
    %305 = vector.extract_strided_slice %277 {offsets = [0, 0, 8], sizes = [2, 8, 8], strides = [1, 1, 1]} : vector<2x8x32xf32> to vector<2x8x8xf32>
    "tpu.trace_start"() <{level = 10 : i32, message = "bqd,bkd->bqk"}> : () -> ()
    %cst_106 = arith.constant dense<0.000000e+00> : vector<2x8x8xf32>
    %306 = tpu.matmul %304, %305, %cst_106 {dimension_numbers = #tpu.dot_dimension_numbers<[2], [2], [1], [1], [0, 0, 0, 1, 1, 1], [0], [0]>} : vector<2x8x8xf32>, vector<2x8x8xf32>, vector<2x8x8xf32> -> vector<2x8x8xf32>
    "tpu.trace_stop"() : () -> ()
    %307 = arith.addf %306, %280 : vector<2x8x8xf32>
    %cst_107 = arith.constant 0.353553385 : f32
    %308 = vector.broadcast %cst_107 : f32 to vector<2x8x8xf32>
    %309 = arith.mulf %307, %308 : vector<2x8x8xf32>
    %cst_108 = arith.constant dense<0xFF800000> : vector<2x8xf32>
    %310 = vector.multi_reduction <maximumf>, %309, %cst_108 [2] : vector<2x8x8xf32> to vector<2x8xf32>
    %311 = vector.shape_cast %310 : vector<2x8xf32> to vector<2x8x1xf32>
    %312 = vector.broadcast %311 : vector<2x8x1xf32> to vector<2x8x8xf32>
    %313 = arith.subf %309, %312 : vector<2x8x8xf32>
    %314 = math.exp %313 : vector<2x8x8xf32>
    %cst_109 = arith.constant dense<0.000000e+00> : vector<2x8xf32>
    %315 = vector.multi_reduction <add>, %314, %cst_109 [2] : vector<2x8x8xf32> to vector<2x8xf32>
    %316 = vector.shape_cast %315 : vector<2x8xf32> to vector<2x8x1xf32>
    %317 = tpu.reciprocal %316 {approx = true} : vector<2x8x1xf32> -> vector<2x8x1xf32>
    %318 = vector.broadcast %317 : vector<2x8x1xf32> to vector<2x8x8xf32>
    %319 = arith.mulf %314, %318 : vector<2x8x8xf32>
    %320 = vector.extract_strided_slice %278 {offsets = [0, 0, 8], sizes = [2, 8, 8], strides = [1, 1, 1]} : vector<2x8x32xf32> to vector<2x8x8xf32>
    "tpu.trace_start"() <{level = 10 : i32, message = "bqk,bkd->bqd"}> : () -> ()
    %cst_110 = arith.constant dense<0.000000e+00> : vector<2x8x8xf32>
    %321 = tpu.matmul %319, %320, %cst_110 {dimension_numbers = #tpu.dot_dimension_numbers<[2], [1], [1], [2], [0, 0, 0, 1, 1, 2], [0], [0]>} : vector<2x8x8xf32>, vector<2x8x8xf32>, vector<2x8x8xf32> -> vector<2x8x8xf32>
    "tpu.trace_stop"() : () -> ()
    %c232 = arith.constant 232 : index
    %c0_111 = arith.constant 0 : index
    %322 = vector.load %arg4[%c232, %c0_111] : memref<352x64xf32, #tpu.memory_space<vmem>>, vector<8x32xf32>
    %323 = vector.shape_cast %321 : vector<2x8x8xf32> to vector<16x8xf32>
    %cst_112 = arith.constant dense<0.000000e+00> : vector<16x32xf32>
    %324 = tpu.matmul %323, %322, %cst_112 {dimension_numbers = #tpu.dot_dimension_numbers<[1], [0], [0], [1], [0, 0, 1, 1], [], []>} : vector<16x8xf32>, vector<8x32xf32>, vector<16x32xf32> -> vector<16x32xf32>
    %325 = arith.addf %303, %324 : vector<16x32xf32>
    %326 = vector.extract_strided_slice %276 {offsets = [0, 0, 16], sizes = [2, 8, 8], strides = [1, 1, 1]} : vector<2x8x32xf32> to vector<2x8x8xf32>
    %327 = vector.extract_strided_slice %277 {offsets = [0, 0, 16], sizes = [2, 8, 8], strides = [1, 1, 1]} : vector<2x8x32xf32> to vector<2x8x8xf32>
    "tpu.trace_start"() <{level = 10 : i32, message = "bqd,bkd->bqk"}> : () -> ()
    %cst_113 = arith.constant dense<0.000000e+00> : vector<2x8x8xf32>
    %328 = tpu.matmul %326, %327, %cst_113 {dimension_numbers = #tpu.dot_dimension_numbers<[2], [2], [1], [1], [0, 0, 0, 1, 1, 1], [0], [0]>} : vector<2x8x8xf32>, vector<2x8x8xf32>, vector<2x8x8xf32> -> vector<2x8x8xf32>
    "tpu.trace_stop"() : () -> ()
    %329 = arith.addf %328, %280 : vector<2x8x8xf32>
    %cst_114 = arith.constant 0.353553385 : f32
    %330 = vector.broadcast %cst_114 : f32 to vector<2x8x8xf32>
    %331 = arith.mulf %329, %330 : vector<2x8x8xf32>
    %cst_115 = arith.constant dense<0xFF800000> : vector<2x8xf32>
    %332 = vector.multi_reduction <maximumf>, %331, %cst_115 [2] : vector<2x8x8xf32> to vector<2x8xf32>
    %333 = vector.shape_cast %332 : vector<2x8xf32> to vector<2x8x1xf32>
    %334 = vector.broadcast %333 : vector<2x8x1xf32> to vector<2x8x8xf32>
    %335 = arith.subf %331, %334 : vector<2x8x8xf32>
    %336 = math.exp %335 : vector<2x8x8xf32>
    %cst_116 = arith.constant dense<0.000000e+00> : vector<2x8xf32>
    %337 = vector.multi_reduction <add>, %336, %cst_116 [2] : vector<2x8x8xf32> to vector<2x8xf32>
    %338 = vector.shape_cast %337 : vector<2x8xf32> to vector<2x8x1xf32>
    %339 = tpu.reciprocal %338 {approx = true} : vector<2x8x1xf32> -> vector<2x8x1xf32>
    %340 = vector.broadcast %339 : vector<2x8x1xf32> to vector<2x8x8xf32>
    %341 = arith.mulf %336, %340 : vector<2x8x8xf32>
    %342 = vector.extract_strided_slice %278 {offsets = [0, 0, 16], sizes = [2, 8, 8], strides = [1, 1, 1]} : vector<2x8x32xf32> to vector<2x8x8xf32>
    "tpu.trace_start"() <{level = 10 : i32, message = "bqk,bkd->bqd"}> : () -> ()
    %cst_117 = arith.constant dense<0.000000e+00> : vector<2x8x8xf32>
    %343 = tpu.matmul %341, %342, %cst_117 {dimension_numbers = #tpu.dot_dimension_numbers<[2], [1], [1], [2], [0, 0, 0, 1, 1, 2], [0], [0]>} : vector<2x8x8xf32>, vector<2x8x8xf32>, vector<2x8x8xf32> -> vector<2x8x8xf32>
    "tpu.trace_stop"() : () -> ()
    %c240 = arith.constant 240 : index
    %c0_118 = arith.constant 0 : index
    %344 = vector.load %arg4[%c240, %c0_118] : memref<352x64xf32, #tpu.memory_space<vmem>>, vector<8x32xf32>
    %345 = vector.shape_cast %343 : vector<2x8x8xf32> to vector<16x8xf32>
    %cst_119 = arith.constant dense<0.000000e+00> : vector<16x32xf32>
    %346 = tpu.matmul %345, %344, %cst_119 {dimension_numbers = #tpu.dot_dimension_numbers<[1], [0], [0], [1], [0, 0, 1, 1], [], []>} : vector<16x8xf32>, vector<8x32xf32>, vector<16x32xf32> -> vector<16x32xf32>
    %347 = arith.addf %325, %346 : vector<16x32xf32>
    %348 = vector.extract_strided_slice %276 {offsets = [0, 0, 24], sizes = [2, 8, 8], strides = [1, 1, 1]} : vector<2x8x32xf32> to vector<2x8x8xf32>
    %349 = vector.extract_strided_slice %277 {offsets = [0, 0, 24], sizes = [2, 8, 8], strides = [1, 1, 1]} : vector<2x8x32xf32> to vector<2x8x8xf32>
    "tpu.trace_start"() <{level = 10 : i32, message = "bqd,bkd->bqk"}> : () -> ()
    %cst_120 = arith.constant dense<0.000000e+00> : vector<2x8x8xf32>
    %350 = tpu.matmul %348, %349, %cst_120 {dimension_numbers = #tpu.dot_dimension_numbers<[2], [2], [1], [1], [0, 0, 0, 1, 1, 1], [0], [0]>} : vector<2x8x8xf32>, vector<2x8x8xf32>, vector<2x8x8xf32> -> vector<2x8x8xf32>
    "tpu.trace_stop"() : () -> ()
    %351 = arith.addf %350, %280 : vector<2x8x8xf32>
    %cst_121 = arith.constant 0.353553385 : f32
    %352 = vector.broadcast %cst_121 : f32 to vector<2x8x8xf32>
    %353 = arith.mulf %351, %352 : vector<2x8x8xf32>
    %cst_122 = arith.constant dense<0xFF800000> : vector<2x8xf32>
    %354 = vector.multi_reduction <maximumf>, %353, %cst_122 [2] : vector<2x8x8xf32> to vector<2x8xf32>
    %355 = vector.shape_cast %354 : vector<2x8xf32> to vector<2x8x1xf32>
    %356 = vector.broadcast %355 : vector<2x8x1xf32> to vector<2x8x8xf32>
    %357 = arith.subf %353, %356 : vector<2x8x8xf32>
    %358 = math.exp %357 : vector<2x8x8xf32>
    %cst_123 = arith.constant dense<0.000000e+00> : vector<2x8xf32>
    %359 = vector.multi_reduction <add>, %358, %cst_123 [2] : vector<2x8x8xf32> to vector<2x8xf32>
    %360 = vector.shape_cast %359 : vector<2x8xf32> to vector<2x8x1xf32>
    %361 = tpu.reciprocal %360 {approx = true} : vector<2x8x1xf32> -> vector<2x8x1xf32>
    %362 = vector.broadcast %361 : vector<2x8x1xf32> to vector<2x8x8xf32>
    %363 = arith.mulf %358, %362 : vector<2x8x8xf32>
    %364 = vector.extract_strided_slice %278 {offsets = [0, 0, 24], sizes = [2, 8, 8], strides = [1, 1, 1]} : vector<2x8x32xf32> to vector<2x8x8xf32>
    "tpu.trace_start"() <{level = 10 : i32, message = "bqk,bkd->bqd"}> : () -> ()
    %cst_124 = arith.constant dense<0.000000e+00> : vector<2x8x8xf32>
    %365 = tpu.matmul %363, %364, %cst_124 {dimension_numbers = #tpu.dot_dimension_numbers<[2], [1], [1], [2], [0, 0, 0, 1, 1, 2], [0], [0]>} : vector<2x8x8xf32>, vector<2x8x8xf32>, vector<2x8x8xf32> -> vector<2x8x8xf32>
    "tpu.trace_stop"() : () -> ()
    %c248 = arith.constant 248 : index
    %c0_125 = arith.constant 0 : index
    %366 = vector.load %arg4[%c248, %c0_125] : memref<352x64xf32, #tpu.memory_space<vmem>>, vector<8x32xf32>
    %367 = vector.shape_cast %365 : vector<2x8x8xf32> to vector<16x8xf32>
    %cst_126 = arith.constant dense<0.000000e+00> : vector<16x32xf32>
    %368 = tpu.matmul %367, %366, %cst_126 {dimension_numbers = #tpu.dot_dimension_numbers<[1], [0], [0], [1], [0, 0, 1, 1], [], []>} : vector<16x8xf32>, vector<8x32xf32>, vector<16x32xf32> -> vector<16x32xf32>
    %369 = arith.addf %347, %368 : vector<16x32xf32>
    %c19 = arith.constant 19 : index
    %c0_127 = arith.constant 0 : index
    %370 = vector.load %arg5[%c19, %c0_127] : memref<24x64xf32, #tpu.memory_space<vmem>>, vector<1x32xf32>
    %371 = vector.broadcast %370 : vector<1x32xf32> to vector<16x32xf32>
    %372 = arith.addf %369, %371 : vector<16x32xf32>
    %373 = arith.addf %372, %187 : vector<16x32xf32>
    %c20 = arith.constant 20 : index
    %c0_128 = arith.constant 0 : index
    %374 = vector.load %arg5[%c20, %c0_128] : memref<24x64xf32, #tpu.memory_space<vmem>>, vector<1x32xf32>
    %c21 = arith.constant 21 : index
    %c0_129 = arith.constant 0 : index
    %375 = vector.load %arg5[%c21, %c0_129] : memref<24x64xf32, #tpu.memory_space<vmem>>, vector<1x32xf32>
    %cst_130 = arith.constant dense<0.000000e+00> : vector<16xf32>
    %376 = vector.multi_reduction <add>, %373, %cst_130 [1] : vector<16x32xf32> to vector<16xf32>
    %377 = vector.shape_cast %376 : vector<16xf32> to vector<16x1xf32>
    %cst_131 = arith.constant 3.200000e+01 : f32
    %378 = vector.broadcast %cst_131 : f32 to vector<16x1xf32>
    %379 = arith.divf %377, %378 : vector<16x1xf32>
    %380 = vector.broadcast %379 : vector<16x1xf32> to vector<16x32xf32>
    %381 = arith.subf %373, %380 : vector<16x32xf32>
    %382 = arith.mulf %381, %381 : vector<16x32xf32>
    %cst_132 = arith.constant dense<0.000000e+00> : vector<16xf32>
    %383 = vector.multi_reduction <add>, %382, %cst_132 [1] : vector<16x32xf32> to vector<16xf32>
    %384 = vector.shape_cast %383 : vector<16xf32> to vector<16x1xf32>
    %cst_133 = arith.constant 3.200000e+01 : f32
    %385 = vector.broadcast %cst_133 : f32 to vector<16x1xf32>
    %386 = arith.divf %384, %385 : vector<16x1xf32>
    %387 = vector.broadcast %379 : vector<16x1xf32> to vector<16x32xf32>
    %388 = arith.subf %373, %387 : vector<16x32xf32>
    %cst_134 = arith.constant 9.99999974E-6 : f32
    %389 = vector.broadcast %cst_134 : f32 to vector<16x1xf32>
    %390 = arith.addf %386, %389 : vector<16x1xf32>
    %391 = math.rsqrt %390 : vector<16x1xf32>
    %392 = vector.broadcast %391 : vector<16x1xf32> to vector<16x32xf32>
    %393 = arith.mulf %388, %392 : vector<16x32xf32>
    %394 = vector.broadcast %374 : vector<1x32xf32> to vector<16x32xf32>
    %395 = arith.mulf %393, %394 : vector<16x32xf32>
    %396 = vector.broadcast %375 : vector<1x32xf32> to vector<16x32xf32>
    %397 = arith.addf %395, %396 : vector<16x32xf32>
    %c256 = arith.constant 256 : index
    %c0_135 = arith.constant 0 : index
    %398 = vector.load %arg4[%c256, %c0_135] : memref<352x64xf32, #tpu.memory_space<vmem>>, vector<32x64xf32>
    %cst_136 = arith.constant dense<0.000000e+00> : vector<16x64xf32>
    %399 = tpu.matmul %397, %398, %cst_136 {dimension_numbers = #tpu.dot_dimension_numbers<[1], [0], [0], [1], [0, 0, 1, 1], [], []>} : vector<16x32xf32>, vector<32x64xf32>, vector<16x64xf32> -> vector<16x64xf32>
    %c22 = arith.constant 22 : index
    %c0_137 = arith.constant 0 : index
    %400 = vector.load %arg5[%c22, %c0_137] : memref<24x64xf32, #tpu.memory_space<vmem>>, vector<1x64xf32>
    %401 = vector.broadcast %400 : vector<1x64xf32> to vector<16x64xf32>
    %402 = arith.addf %399, %401 : vector<16x64xf32>
    %cst_138 = arith.constant 0.000000e+00 : f32
    %403 = vector.broadcast %cst_138 : f32 to vector<16x64xf32>
    %404 = arith.maximumf %402, %403 : vector<16x64xf32>
    %c288 = arith.constant 288 : index
    %c0_139 = arith.constant 0 : index
    %405 = vector.load %arg4[%c288, %c0_139] : memref<352x64xf32, #tpu.memory_space<vmem>>, vector<64x32xf32>
    %cst_140 = arith.constant dense<0.000000e+00> : vector<16x32xf32>
    %406 = tpu.matmul %404, %405, %cst_140 {dimension_numbers = #tpu.dot_dimension_numbers<[1], [0], [0], [1], [0, 0, 1, 1], [], []>} : vector<16x64xf32>, vector<64x32xf32>, vector<16x32xf32> -> vector<16x32xf32>
    %c23 = arith.constant 23 : index
    %c0_141 = arith.constant 0 : index
    %407 = vector.load %arg5[%c23, %c0_141] : memref<24x64xf32, #tpu.memory_space<vmem>>, vector<1x32xf32>
    %408 = vector.broadcast %407 : vector<1x32xf32> to vector<16x32xf32>
    %409 = arith.addf %406, %408 : vector<16x32xf32>
    %410 = arith.addf %409, %373 : vector<16x32xf32>
    %c0_142 = arith.constant 0 : index
    %c0_143 = arith.constant 0 : index
    %411 = vector.load %arg6[%c0_142, %c0_143] : memref<16x32xf32, #tpu.memory_space<vmem>>, vector<16x32xf32>
    tpu.vector_store %arg6[%c0_142, %c0_143], %410 {strides = array<i32>} : memref<16x32xf32, #tpu.memory_space<vmem>>, vector<16x32xf32>,
    return
  }
}

</mosaic_0001>

<llo_original>
// kernel: tpu_custom_call.1
$region0: #{tpu_custom_call.1}
  #allocation0 [shape = 'u32[]', space=smem, size = 0x4, offset = 0x4, fixed_abs, tag = 'smem constant byte address 0x4 - core index']
  #allocation1 [shape = 'u32[144,128]{1,0:T(1,128)}', space=vmem, size = 0x12000, scoped, tag = 'internal scratch']
  %s0 = inlined_call_operand.vmem [shape: f32[16,32], index: 0, kind: input, shape index: {}]
  %s1 = inlined_call_operand.vmem [shape: f32[16,32], index: 1, kind: input, shape index: {}]
  %s2 = inlined_call_operand.vmem [shape: f32[8,8], index: 2, kind: input, shape index: {}]
  %s3 = inlined_call_operand.vmem [shape: f32[8,8], index: 3, kind: input, shape index: {}]
  %s4 = inlined_call_operand.vmem [shape: f32[352,64], index: 4, kind: input, shape index: {}]
  %s5 = inlined_call_operand.vmem [shape: f32[24,64], index: 5, kind: input, shape index: {}]
  %s6 = inlined_call_operand.hbm [shape: f32[16,32], index: 6, kind: output, shape index: {}]
  %s7 = sld [smem:[#allocation0]]
  $region34: #{tpu_custom_call.1} parent=0
    _
  %s9 = ssub.s32 1, %s7
  %s10 = scalar_select 0, %s9, %s7
  $region1: #{tpu_custom_call.1} parent=0
    #allocation2 [shape = 'u8[8192]{0}', space=vmem, size = 0x2000, scoped, tag = 'output window, operand 0, single buffered']
    #allocation3 [shape = 's32[1]{0}', space=sflag, size = 0x4, scoped, tag = 'scoped memory for tpu_custom_call.1']
    %11 = vsyncpa [#allocation3], 0
    // Predicated region
    $region2: #{tpu_custom_call.1} parent=1 // pred_check
      _
    $region3: #{tpu_custom_call.1} parent=1 // pred_check_branch
      %13 = sbr.rel (0) target = $region5
    $region4: #{tpu_custom_call.1} parent=1 // pred_region
      _
    $region5: #{tpu_custom_call.1} parent=1 // pred_fallthru
      _
    // Predicated region
    $region6: #{tpu_custom_call.1} parent=1 // pred_check
      _
    $region7: #{tpu_custom_call.1} parent=1 // pred_check_branch
      %15 = sbr.rel (0) target = $region9
    $region8: #{tpu_custom_call.1} parent=1 // pred_region
      _
    $region9: #{tpu_custom_call.1} parent=1 // pred_fallthru
      _
    // Predicated region
    $region10: #{tpu_custom_call.1} parent=1 // pred_check
      _
    $region11: #{tpu_custom_call.1} parent=1 // pred_check_branch
      %17 = sbr.rel (0) target = $region13
    $region12: #{tpu_custom_call.1} parent=1 // pred_region
      _
    $region13: #{tpu_custom_call.1} parent=1 // pred_fallthru
      _
    // Predicated region
    $region14: #{tpu_custom_call.1} parent=1 // pred_check
      _
    $region15: #{tpu_custom_call.1} parent=1 // pred_check_branch
      %19 = sbr.rel (0) target = $region17
    $region16: #{tpu_custom_call.1} parent=1 // pred_region
      _
    $region17: #{tpu_custom_call.1} parent=1 // pred_fallthru
      _
    // Predicated region
    $region18: #{tpu_custom_call.1} parent=1 // pred_check
      _
    $region19: #{tpu_custom_call.1} parent=1 // pred_check_branch
      %21 = sbr.rel (0) target = $region21
    $region20: #{tpu_custom_call.1} parent=1 // pred_region
      _
    $region21: #{tpu_custom_call.1} parent=1 // pred_fallthru
      _
    // Predicated region
    $region22: #{tpu_custom_call.1} parent=1 // pred_check
      _
    $region23: #{tpu_custom_call.1} parent=1 // pred_check_branch
      %23 = sbr.rel (0) target = $region25
    $region24: #{tpu_custom_call.1} parent=1 // pred_region
      _
    $region25: #{tpu_custom_call.1} parent=1 // pred_fallthru
      _
    %v24 = vld [vmem:[%s0] sm:$0xff]
    %v25 = vld [vmem:[%s0 + $0x8] sm:$0xff]
    %v26 = vld [vmem:[%s1] sm:$0xff]
    %v27 = vld [vmem:[%s1 + $0x8] sm:$0xff]
    %v28 = vld [vmem:[%s2] sm:$0xff]
    %v29 = vld [vmem:[%s5] sm:$0x1]
    %v30 = vld [vmem:[%s5 + $0x1] sm:$0x1]
    %vm31 = vcmask 261120
    %v32 = vsel %vm31, %v26, 0.0
    %33 = vadd.xlane.f32.xlu0 %v32
    %v34 = vpop.xlane.xlu0 %33
    %v35 = vsel %vm31, %v27, 0.0
    %36 = vadd.xlane.f32.xlu0 %v35
    %v37 = vpop.xlane.xlu0 %36
    %v38 = vrcp.pop 32.0
    %v39 = vmul.f32 %v34, %v38
    %v40 = vmul.f32 %v37, %v38
    %v41 = vsub.f32 %v26, %v39
    %v42 = vsub.f32 %v27, %v40
    %v43 = vmul.f32 %v41, %v41
    %v44 = vmul.f32 %v42, %v42
    %v45 = vsel %vm31, %v43, 0.0
    %46 = vadd.xlane.f32.xlu0 %v45
    %v47 = vpop.xlane.xlu0 %46
    %v48 = vsel %vm31, %v44, 0.0
    %49 = vadd.xlane.f32.xlu0 %v48
    %v50 = vpop.xlane.xlu0 %49
    %v51 = vmul.f32 %v47, %v38
    %v52 = vmul.f32 %v50, %v38
    %v53 = vadd.f32 %v51, 1e-05
    %v54 = vadd.f32 %v52, 1e-05
    %v55 = vrsqrt.pop %v53
    %v56 = vrsqrt.pop %v54
    %v57 = vmul.f32 %v41, %v55
    %v58 = vmul.f32 %v42, %v56
    %v59 = vlaneseq
    %v60 = vshrl.u32 %v59, 7
    %v61 = vsub.s32 0, %v60
    %v62 = vrot.slane %v29, %v61
    %v63 = vmul.f32 %v57, %v62
    %v64 = vmul.f32 %v58, %v62
    %v65 = vlaneseq
    %v66 = vshrl.u32 %v65, 7
    %v67 = vsub.s32 0, %v66
    %v68 = vrot.slane %v30, %v67
    %v69 = vadd.f32 %v63, %v68
    %v70 = vadd.f32 %v64, %v68
    %v71 = vld [vmem:[%s4] sm:$0xff]
    %v72 = vld [vmem:[%s4 + $0x8] sm:$0xff]
    %v73 = vld [vmem:[%s4 + $0x10] sm:$0xff]
    %v74 = vld [vmem:[%s4 + $0x18] sm:$0xff]
    %v75 = vld [vmem:[%s5 + $0x6] sm:$0x1]
    %v76 = vlaneseq
    %v77 = vshrl.u32 %v76, 7
    %v78 = vsub.s32 0, %v77
    %v79 = vrot.slane %v75, %v78
    %v81 = vsel %vm31, %v69, 0
    %v84 = vsel %vm31, %v70, 0
    %86 = vmatprep.subr.mxu0 0.0
    %87 = vmatpush1.msra.mxu0 %v71
    %88 = vmatprep.subr.mxu0 0.0
    %89 = vmatpush1.msra.mxu0 %v72
    %90 = vmatprep.subr.mxu0 0.0
    %91 = vmatpush1.msra.mxu0 %v73
    %92 = vmatprep.subr.mxu0 0.0
    %93 = vmatpush1.msra.mxu0 %v74
    %94 = vmatprep.subr.mxu0 0.0
    %95 = vmatpush1.msra.mxu0 0.0
    %96 = vmatprep.subr.mxu0 0.0
    %97 = vmatpush1.msra.mxu0 0.0
    %98 = vmatprep.subr.mxu0 0.0
    %99 = vmatpush1.msra.mxu0 0.0
    %100 = vmatprep.subr.mxu0 0.0
    %101 = vmatpush1.msra.mxu0 0.0
    %102 = vmatprep.subr.mxu0 0.0
    %103 = vmatpush1.msra.mxu0 0.0
    %104 = vmatprep.subr.mxu0 0.0
    %105 = vmatpush1.msra.mxu0 0.0
    %106 = vmatprep.subr.mxu0 0.0
    %107 = vmatpush1.msra.mxu0 0.0
    %108 = vmatprep.subr.mxu0 0.0
    %109 = vmatpush1.msra.mxu0 0.0
    %110 = vmatprep.subr.mxu0 0.0
    %111 = vmatpush1.msra.mxu0 0.0
    %112 = vmatprep.subr.mxu0 0.0
    %113 = vmatpush1.msra.mxu0 0.0
    %114 = vmatprep.subr.mxu0 0.0
    %115 = vmatpush1.msra.mxu0 0.0
    %116 = vmatprep.subr.mxu0 0.0
    %117 = vmatpush1.msra.mxu0 0.0
    %118 = vmatprep.subr.mxu0 0.0
    %119 = vmatpush1.msra.mxu0 0.0
    %120 = vmatprep.subr.mxu0 0.0
    %121 = vmatpush1.msra.mxu0 0.0
    %122 = vmatprep.subr.mxu0 0.0
    %123 = vmatpush1.msra.mxu0 0.0
    %124 = vmatprep.subr.mxu0 0.0
    %125 = vmatpush1.msra.mxu0 0.0
    %126 = vmatprep.subr.mxu0 0.0
    %127 = vmatpush1.msra.mxu0 0.0
    %128 = vmatprep.subr.mxu0 0.0
    %129 = vmatpush1.msra.mxu0 0.0
    %130 = vmatprep.subr.mxu0 0.0
    %131 = vmatpush1.msra.mxu0 0.0
    %132 = vmatprep.subr.mxu0 0.0
    %133 = vmatpush1.msra.mxu0 0.0
    %134 = vmatprep.subr.mxu0 0.0
    %135 = vmatpush1.msra.mxu0 0.0
    %136 = vmatprep.subr.mxu0 0.0
    %137 = vmatpush1.msra.mxu0 0.0
    %138 = vmatprep.subr.mxu0 0.0
    %139 = vmatpush1.msra.mxu0 0.0
    %140 = vmatprep.subr.mxu0 0.0
    %141 = vmatpush1.msra.mxu0 0.0
    %142 = vmatprep.subr.mxu0 0.0
    %143 = vmatpush1.msra.mxu0 0.0
    %144 = vmatprep.subr.mxu0 0.0
    %145 = vmatpush1.msra.mxu0 0.0
    %146 = vmatprep.subr.mxu0 0.0
    %147 = vmatpush1.msra.mxu0 0.0
    %148 = vmatprep.subr.mxu0 0.0
    %149 = vmatpush1.msra.mxu0 0.0
    %150 = vmatprep.mubr.f32.mxu0 0.0
    %151 = vmatmul.mubr.f32.gmra.mrb[0].mxu0 %v81
    %v152 = vpop.f32.mrb[0].mxu0
    %v153 = vadd.f32 %v79, %v152
    %v154 = vpop.f32.mrb[0].mxu0
    %155 = vmatprep.mubr.f32.mxu0 0.0
    %156 = vmatmul.mubr.f32.gmra.mrb[0].mxu0 %v84
    %v157 = vpop.f32.mrb[0].mxu0
    %v158 = vadd.f32 %v79, %v157
    %v159 = vpop.f32.mrb[0].mxu0
    %160 = vdwg.mxu0
    %v161 = vld [vmem:[%s5 + $0x2] sm:$0x1]
    %v162 = vld [vmem:[%s5 + $0x3] sm:$0x1]
    %v163 = vlaneseq
    %v164 = vshrl.u32 %v163, 7
    %v165 = vsub.s32 0, %v164
    %v166 = vrot.slane %v161, %v165
    %v167 = vmul.f32 %v57, %v166
    %v168 = vmul.f32 %v58, %v166
    %v169 = vlaneseq
    %v170 = vshrl.u32 %v169, 7
    %v171 = vsub.s32 0, %v170
    %v172 = vrot.slane %v162, %v171
    %v173 = vadd.f32 %v167, %v172
    %v174 = vadd.f32 %v168, %v172
    %v175 = vld [vmem:[%s4 + $0x20] sm:$0xff]
    %v176 = vld [vmem:[%s4 + $0x28] sm:$0xff]
    %v177 = vld [vmem:[%s4 + $0x30] sm:$0xff]
    %v178 = vld [vmem:[%s4 + $0x38] sm:$0xff]
    %v179 = vld [vmem:[%s5 + $0x7] sm:$0x1]
    %v180 = vlaneseq
    %v181 = vshrl.u32 %v180, 7
    %v182 = vsub.s32 0, %v181
    %v183 = vrot.slane %v179, %v182
    %v185 = vsel %vm31, %v173, 0
    %v188 = vsel %vm31, %v174, 0
    %190 = vmatprep.subr.mxu0 0.0
    %191 = vmatpush1.msra.mxu0 %v175
    %192 = vmatprep.subr.mxu0 0.0
    %193 = vmatpush1.msra.mxu0 %v176
    %194 = vmatprep.subr.mxu0 0.0
    %195 = vmatpush1.msra.mxu0 %v177
    %196 = vmatprep.subr.mxu0 0.0
    %197 = vmatpush1.msra.mxu0 %v178
    %198 = vmatprep.subr.mxu0 0.0
    %199 = vmatpush1.msra.mxu0 0.0
    %200 = vmatprep.subr.mxu0 0.0
    %201 = vmatpush1.msra.mxu0 0.0
    %202 = vmatprep.subr.mxu0 0.0
    %203 = vmatpush1.msra.mxu0 0.0
    %204 = vmatprep.subr.mxu0 0.0
    %205 = vmatpush1.msra.mxu0 0.0
    %206 = vmatprep.subr.mxu0 0.0
    %207 = vmatpush1.msra.mxu0 0.0
    %208 = vmatprep.subr.mxu0 0.0
    %209 = vmatpush1.msra.mxu0 0.0
    %210 = vmatprep.subr.mxu0 0.0
    %211 = vmatpush1.msra.mxu0 0.0
    %212 = vmatprep.subr.mxu0 0.0
    %213 = vmatpush1.msra.mxu0 0.0
    %214 = vmatprep.subr.mxu0 0.0
    %215 = vmatpush1.msra.mxu0 0.0
    %216 = vmatprep.subr.mxu0 0.0
    %217 = vmatpush1.msra.mxu0 0.0
    %218 = vmatprep.subr.mxu0 0.0
    %219 = vmatpush1.msra.mxu0 0.0
    %220 = vmatprep.subr.mxu0 0.0
    %221 = vmatpush1.msra.mxu0 0.0
    %222 = vmatprep.subr.mxu0 0.0
    %223 = vmatpush1.msra.mxu0 0.0
    %224 = vmatprep.subr.mxu0 0.0
    %225 = vmatpush1.msra.mxu0 0.0
    %226 = vmatprep.subr.mxu0 0.0
    %227 = vmatpush1.msra.mxu0 0.0
    %228 = vmatprep.subr.mxu0 0.0
    %229 = vmatpush1.msra.mxu0 0.0
    %230 = vmatprep.subr.mxu0 0.0
    %231 = vmatpush1.msra.mxu0 0.0
    %232 = vmatprep.subr.mxu0 0.0
    %233 = vmatpush1.msra.mxu0 0.0
    %234 = vmatprep.subr.mxu0 0.0
    %235 = vmatpush1.msra.mxu0 0.0
    %236 = vmatprep.subr.mxu0 0.0
    %237 = vmatpush1.msra.mxu0 0.0
    %238 = vmatprep.subr.mxu0 0.0
    %239 = vmatpush1.msra.mxu0 0.0
    %240 = vmatprep.subr.mxu0 0.0
    %241 = vmatpush1.msra.mxu0 0.0
    %242 = vmatprep.subr.mxu0 0.0
    %243 = vmatpush1.msra.mxu0 0.0
    %244 = vmatprep.subr.mxu0 0.0
    %245 = vmatpush1.msra.mxu0 0.0
    %246 = vmatprep.subr.mxu0 0.0
    %247 = vmatpush1.msra.mxu0 0.0
    %248 = vmatprep.subr.mxu0 0.0
    %249 = vmatpush1.msra.mxu0 0.0
    %250 = vmatprep.subr.mxu0 0.0
    %251 = vmatpush1.msra.mxu0 0.0
    %252 = vmatprep.subr.mxu0 0.0
    %253 = vmatpush1.msra.mxu0 0.0
    %254 = vmatprep.mubr.f32.mxu0 0.0
    %255 = vmatmul.mubr.f32.gmra.mrb[0].mxu0 %v185
    %v256 = vpop.f32.mrb[0].mxu0
    %v257 = vadd.f32 %v183, %v256
    %v258 = vpop.f32.mrb[0].mxu0
    %259 = vmatprep.mubr.f32.mxu0 0.0
    %260 = vmatmul.mubr.f32.gmra.mrb[0].mxu0 %v188
    %v261 = vpop.f32.mrb[0].mxu0
    %v262 = vadd.f32 %v183, %v261
    %v263 = vpop.f32.mrb[0].mxu0
    %264 = vdwg.mxu0
    %v265 = vld [vmem:[%s5 + $0x4] sm:$0x1]
    %v266 = vld [vmem:[%s5 + $0x5] sm:$0x1]
    %v267 = vlaneseq
    %v268 = vshrl.u32 %v267, 7
    %v269 = vsub.s32 0, %v268
    %v270 = vrot.slane %v265, %v269
    %v271 = vmul.f32 %v57, %v270
    %v272 = vmul.f32 %v58, %v270
    %v273 = vlaneseq
    %v274 = vshrl.u32 %v273, 7
    %v275 = vsub.s32 0, %v274
    %v276 = vrot.slane %v266, %v275
    %v277 = vadd.f32 %v271, %v276
    %v278 = vadd.f32 %v272, %v276
    %v279 = vld [vmem:[%s4 + $0x40] sm:$0xff]
    %v280 = vld [vmem:[%s4 + $0x48] sm:$0xff]
    %v281 = vld [vmem:[%s4 + $0x50] sm:$0xff]
    %v282 = vld [vmem:[%s4 + $0x58] sm:$0xff]
    %v283 = vld [vmem:[%s5 + $0x8] sm:$0x1]
    %v284 = vlaneseq
    %v285 = vshrl.u32 %v284, 7
    %v286 = vsub.s32 0, %v285
    %v287 = vrot.slane %v283, %v286
    %v289 = vsel %vm31, %v277, 0
    %v292 = vsel %vm31, %v278, 0
    %294 = vmatprep.subr.mxu0 0.0
    %295 = vmatpush1.msra.mxu0 %v279
    %296 = vmatprep.subr.mxu0 0.0
    %297 = vmatpush1.msra.mxu0 %v280
    %298 = vmatprep.subr.mxu0 0.0
    %299 = vmatpush1.msra.mxu0 %v281
    %300 = vmatprep.subr.mxu0 0.0
    %301 = vmatpush1.msra.mxu0 %v282
    %302 = vmatprep.subr.mxu0 0.0
    %303 = vmatpush1.msra.mxu0 0.0
    %304 = vmatprep.subr.mxu0 0.0
    %305 = vmatpush1.msra.mxu0 0.0
    %306 = vmatprep.subr.mxu0 0.0
    %307 = vmatpush1.msra.mxu0 0.0
    %308 = vmatprep.subr.mxu0 0.0
    %309 = vmatpush1.msra.mxu0 0.0
    %310 = vmatprep.subr.mxu0 0.0
    %311 = vmatpush1.msra.mxu0 0.0
    %312 = vmatprep.subr.mxu0 0.0
    %313 = vmatpush1.msra.mxu0 0.0
    %314 = vmatprep.subr.mxu0 0.0
    %315 = vmatpush1.msra.mxu0 0.0
    %316 = vmatprep.subr.mxu0 0.0
    %317 = vmatpush1.msra.mxu0 0.0
    %318 = vmatprep.subr.mxu0 0.0
    %319 = vmatpush1.msra.mxu0 0.0
    %320 = vmatprep.subr.mxu0 0.0
    %321 = vmatpush1.msra.mxu0 0.0
    %322 = vmatprep.subr.mxu0 0.0
    %323 = vmatpush1.msra.mxu0 0.0
    %324 = vmatprep.subr.mxu0 0.0
    %325 = vmatpush1.msra.mxu0 0.0
    %326 = vmatprep.subr.mxu0 0.0
    %327 = vmatpush1.msra.mxu0 0.0
    %328 = vmatprep.subr.mxu0 0.0
    %329 = vmatpush1.msra.mxu0 0.0
    %330 = vmatprep.subr.mxu0 0.0
    %331 = vmatpush1.msra.mxu0 0.0
    %332 = vmatprep.subr.mxu0 0.0
    %333 = vmatpush1.msra.mxu0 0.0
    %334 = vmatprep.subr.mxu0 0.0
    %335 = vmatpush1.msra.mxu0 0.0
    %336 = vmatprep.subr.mxu0 0.0
    %337 = vmatpush1.msra.mxu0 0.0
    %338 = vmatprep.subr.mxu0 0.0
    %339 = vmatpush1.msra.mxu0 0.0
    %340 = vmatprep.subr.mxu0 0.0
    %341 = vmatpush1.msra.mxu0 0.0
    %342 = vmatprep.subr.mxu0 0.0
    %343 = vmatpush1.msra.mxu0 0.0
    %344 = vmatprep.subr.mxu0 0.0
    %345 = vmatpush1.msra.mxu0 0.0
    %346 = vmatprep.subr.mxu0 0.0
    %347 = vmatpush1.msra.mxu0 0.0
    %348 = vmatprep.subr.mxu0 0.0
    %349 = vmatpush1.msra.mxu0 0.0
    %350 = vmatprep.subr.mxu0 0.0
    %351 = vmatpush1.msra.mxu0 0.0
    %352 = vmatprep.subr.mxu0 0.0
    %353 = vmatpush1.msra.mxu0 0.0
    %354 = vmatprep.subr.mxu0 0.0
    %355 = vmatpush1.msra.mxu0 0.0
    %356 = vmatprep.subr.mxu0 0.0
    %357 = vmatpush1.msra.mxu0 0.0
    %358 = vmatprep.mubr.f32.mxu0 0.0
    %359 = vmatmul.mubr.f32.gmra.mrb[0].mxu0 %v289
    %v360 = vpop.f32.mrb[0].mxu0
    %v361 = vadd.f32 %v287, %v360
    %v362 = vpop.f32.mrb[0].mxu0
    %363 = vmatprep.mubr.f32.mxu0 0.0
    %364 = vmatmul.mubr.f32.gmra.mrb[0].mxu0 %v292
    %v365 = vpop.f32.mrb[0].mxu0
    %v366 = vadd.f32 %v287, %v365
    %v367 = vpop.f32.mrb[0].mxu0
    %368 = vdwg.mxu0
    %vm369 = vcmask 64512
    %v371 = vsel %vm369, %v153, 0
    %v374 = vsel %vm369, %v257, 0
    %376 = vmatprep.subr.mxu0 0.0
    %377 = vmatpush1.xpose.msra.mxu0 %v374
    %378 = vmatprep.subr.mxu0 0.0
    %379 = vmatpush1.xpose.msra.mxu0 0.0
    %380 = vmatprep.subr.mxu0 0.0
    %381 = vmatpush1.xpose.msra.mxu0 0.0
    %382 = vmatprep.subr.mxu0 0.0
    %383 = vmatpush1.xpose.msra.mxu0 0.0
    %384 = vmatprep.subr.mxu0 0.0
    %385 = vmatpush1.xpose.msra.mxu0 0.0
    %386 = vmatprep.subr.mxu0 0.0
    %387 = vmatpush1.xpose.msra.mxu0 0.0
    %388 = vmatprep.subr.mxu0 0.0
    %389 = vmatpush1.xpose.msra.mxu0 0.0
    %390 = vmatprep.subr.mxu0 0.0
    %391 = vmatpush1.xpose.msra.mxu0 0.0
    %392 = vmatprep.subr.mxu0 0.0
    %393 = vmatpush1.xpose.msra.mxu0 0.0
    %394 = vmatprep.subr.mxu0 0.0
    %395 = vmatpush1.xpose.msra.mxu0 0.0
    %396 = vmatprep.subr.mxu0 0.0
    %397 = vmatpush1.xpose.msra.mxu0 0.0
    %398 = vmatprep.subr.mxu0 0.0
    %399 = vmatpush1.xpose.msra.mxu0 0.0
    %400 = vmatprep.subr.mxu0 0.0
    %401 = vmatpush1.xpose.msra.mxu0 0.0
    %402 = vmatprep.subr.mxu0 0.0
    %403 = vmatpush1.xpose.msra.mxu0 0.0
    %404 = vmatprep.subr.mxu0 0.0
    %405 = vmatpush1.xpose.msra.mxu0 0.0
    %406 = vmatprep.subr.mxu0 0.0
    %407 = vmatpush1.xpose.msra.mxu0 0.0
    %408 = vmatprep.subr.mxu0 0.0
    %409 = vmatpush1.xpose.msra.mxu0 0.0
    %410 = vmatprep.subr.mxu0 0.0
    %411 = vmatpush1.xpose.msra.mxu0 0.0
    %412 = vmatprep.subr.mxu0 0.0
    %413 = vmatpush1.xpose.msra.mxu0 0.0
    %414 = vmatprep.subr.mxu0 0.0
    %415 = vmatpush1.xpose.msra.mxu0 0.0
    %416 = vmatprep.subr.mxu0 0.0
    %417 = vmatpush1.xpose.msra.mxu0 0.0
    %418 = vmatprep.subr.mxu0 0.0
    %419 = vmatpush1.xpose.msra.mxu0 0.0
    %420 = vmatprep.subr.mxu0 0.0
    %421 = vmatpush1.xpose.msra.mxu0 0.0
    %422 = vmatprep.subr.mxu0 0.0
    %423 = vmatpush1.xpose.msra.mxu0 0.0
    %424 = vmatprep.subr.mxu0 0.0
    %425 = vmatpush1.xpose.msra.mxu0 0.0
    %426 = vmatprep.subr.mxu0 0.0
    %427 = vmatpush1.xpose.msra.mxu0 0.0
    %428 = vmatprep.subr.mxu0 0.0
    %429 = vmatpush1.xpose.msra.mxu0 0.0
    %430 = vmatprep.subr.mxu0 0.0
    %431 = vmatpush1.xpose.msra.mxu0 0.0
    %432 = vmatprep.subr.mxu0 0.0
    %433 = vmatpush1.xpose.msra.mxu0 0.0
    %434 = vmatprep.subr.mxu0 0.0
    %435 = vmatpush1.xpose.msra.mxu0 0.0
    %436 = vmatprep.subr.mxu0 0.0
    %437 = vmatpush1.xpose.msra.mxu0 0.0
    %438 = vmatprep.subr.mxu0 0.0
    %439 = vmatpush1.xpose.msra.mxu0 0.0
    %440 = vmatprep.mubr.f32.mxu0 0.0
    %441 = vmatmul.mubr.f32.gmra.mrb[0].mxu0 %v371
    %v442 = vpop.f32.mrb[0].mxu0
    %v443 = vadd.f32 %v28, %v442
    %v444 = vpop.f32.mrb[0].mxu0
    %445 = vdwg.mxu0
    %v447 = vsel %vm369, %v158, 0
    %v450 = vsel %vm369, %v262, 0
    %452 = vmatprep.subr.mxu0 0.0
    %453 = vmatpush1.xpose.msra.mxu0 %v450
    %454 = vmatprep.subr.mxu0 0.0
    %455 = vmatpush1.xpose.msra.mxu0 0.0
    %456 = vmatprep.subr.mxu0 0.0
    %457 = vmatpush1.xpose.msra.mxu0 0.0
    %458 = vmatprep.subr.mxu0 0.0
    %459 = vmatpush1.xpose.msra.mxu0 0.0
    %460 = vmatprep.subr.mxu0 0.0
    %461 = vmatpush1.xpose.msra.mxu0 0.0
    %462 = vmatprep.subr.mxu0 0.0
    %463 = vmatpush1.xpose.msra.mxu0 0.0
    %464 = vmatprep.subr.mxu0 0.0
    %465 = vmatpush1.xpose.msra.mxu0 0.0
    %466 = vmatprep.subr.mxu0 0.0
    %467 = vmatpush1.xpose.msra.mxu0 0.0
    %468 = vmatprep.subr.mxu0 0.0
    %469 = vmatpush1.xpose.msra.mxu0 0.0
    %470 = vmatprep.subr.mxu0 0.0
    %471 = vmatpush1.xpose.msra.mxu0 0.0
    %472 = vmatprep.subr.mxu0 0.0
    %473 = vmatpush1.xpose.msra.mxu0 0.0
    %474 = vmatprep.subr.mxu0 0.0
    %475 = vmatpush1.xpose.msra.mxu0 0.0
    %476 = vmatprep.subr.mxu0 0.0
    %477 = vmatpush1.xpose.msra.mxu0 0.0
    %478 = vmatprep.subr.mxu0 0.0
    %479 = vmatpush1.xpose.msra.mxu0 0.0
    %480 = vmatprep.subr.mxu0 0.0
    %481 = vmatpush1.xpose.msra.mxu0 0.0
    %482 = vmatprep.subr.mxu0 0.0
    %483 = vmatpush1.xpose.msra.mxu0 0.0
    %484 = vmatprep.subr.mxu0 0.0
    %485 = vmatpush1.xpose.msra.mxu0 0.0
    %486 = vmatprep.subr.mxu0 0.0
    %487 = vmatpush1.xpose.msra.mxu0 0.0
    %488 = vmatprep.subr.mxu0 0.0
    %489 = vmatpush1.xpose.msra.mxu0 0.0
    %490 = vmatprep.subr.mxu0 0.0
    %491 = vmatpush1.xpose.msra.mxu0 0.0
    %492 = vmatprep.subr.mxu0 0.0
    %493 = vmatpush1.xpose.msra.mxu0 0.0
    %494 = vmatprep.subr.mxu0 0.0
    %495 = vmatpush1.xpose.msra.mxu0 0.0
    %496 = vmatprep.subr.mxu0 0.0
    %497 = vmatpush1.xpose.msra.mxu0 0.0
    %498 = vmatprep.subr.mxu0 0.0
    %499 = vmatpush1.xpose.msra.mxu0 0.0
    %500 = vmatprep.subr.mxu0 0.0
    %501 = vmatpush1.xpose.msra.mxu0 0.0
    %502 = vmatprep.subr.mxu0 0.0
    %503 = vmatpush1.xpose.msra.mxu0 0.0
    %504 = vmatprep.subr.mxu0 0.0
    %505 = vmatpush1.xpose.msra.mxu0 0.0
    %506 = vmatprep.subr.mxu0 0.0
    %507 = vmatpush1.xpose.msra.mxu0 0.0
    %508 = vmatprep.subr.mxu0 0.0
    %509 = vmatpush1.xpose.msra.mxu0 0.0
    %510 = vmatprep.subr.mxu0 0.0
    %511 = vmatpush1.xpose.msra.mxu0 0.0
    %512 = vmatprep.subr.mxu0 0.0
    %513 = vmatpush1.xpose.msra.mxu0 0.0
    %514 = vmatprep.subr.mxu0 0.0
    %515 = vmatpush1.xpose.msra.mxu0 0.0
    %516 = vmatprep.mubr.f32.mxu0 0.0
    %517 = vmatmul.mubr.f32.gmra.mrb[0].mxu0 %v447
    %v518 = vpop.f32.mrb[0].mxu0
    %v519 = vadd.f32 %v28, %v518
    %v520 = vpop.f32.mrb[0].mxu0
    %521 = vdwg.mxu0
    %v522 = vmul.f32 %v443, 0.35355338
    %v523 = vmul.f32 %v519, 0.35355338
    %v524 = vsel %vm369, %v522, -inf
    %525 = vmax.xlane.f32.xlu0 %v524
    %v526 = vpop.xlane.xlu0 %525
    %v527 = vsel %vm369, %v523, -inf
    %528 = vmax.xlane.f32.xlu0 %v527
    %v529 = vpop.xlane.xlu0 %528
    %v530 = vsub.f32 %v522, %v526
    %v531 = vsub.f32 %v523, %v529
    %v532 = vmul.f32 %v530, 1.442695
    %v533 = vpow.pop %v532
    %v534 = vmul.f32 %v531, 1.442695
    %v535 = vpow.pop %v534
    %v536 = vsel %vm369, %v533, 0.0
    %537 = vadd.xlane.f32.xlu0 %v536
    %v538 = vpop.xlane.xlu0 %537
    %v539 = vsel %vm369, %v535, 0.0
    %540 = vadd.xlane.f32.xlu0 %v539
    %v541 = vpop.xlane.xlu0 %540
    %v542 = vrcp.pop %v538
    %v543 = vrcp.pop %v541
    %v544 = vmul.f32 %v533, %v542
    %v545 = vmul.f32 %v535, %v543
    %v547 = vsel %vm369, %v544, 0
    %549 = vmatprep.subr.mxu0 0.0
    %550 = vmatpush1.msra.mxu0 %v361
    %551 = vmatprep.subr.mxu0 0.0
    %552 = vmatpush1.msra.mxu0 0.0
    %553 = vmatprep.subr.mxu0 0.0
    %554 = vmatpush1.msra.mxu0 0.0
    %555 = vmatprep.subr.mxu0 0.0
    %556 = vmatpush1.msra.mxu0 0.0
    %557 = vmatprep.subr.mxu0 0.0
    %558 = vmatpush1.msra.mxu0 0.0
    %559 = vmatprep.subr.mxu0 0.0
    %560 = vmatpush1.msra.mxu0 0.0
    %561 = vmatprep.subr.mxu0 0.0
    %562 = vmatpush1.msra.mxu0 0.0
    %563 = vmatprep.subr.mxu0 0.0
    %564 = vmatpush1.msra.mxu0 0.0
    %565 = vmatprep.subr.mxu0 0.0
    %566 = vmatpush1.msra.mxu0 0.0
    %567 = vmatprep.subr.mxu0 0.0
    %568 = vmatpush1.msra.mxu0 0.0
    %569 = vmatprep.subr.mxu0 0.0
    %570 = vmatpush1.msra.mxu0 0.0
    %571 = vmatprep.subr.mxu0 0.0
    %572 = vmatpush1.msra.mxu0 0.0
    %573 = vmatprep.subr.mxu0 0.0
    %574 = vmatpush1.msra.mxu0 0.0
    %575 = vmatprep.subr.mxu0 0.0
    %576 = vmatpush1.msra.mxu0 0.0
    %577 = vmatprep.subr.mxu0 0.0
    %578 = vmatpush1.msra.mxu0 0.0
    %579 = vmatprep.subr.mxu0 0.0
    %580 = vmatpush1.msra.mxu0 0.0
    %581 = vmatprep.subr.mxu0 0.0
    %582 = vmatpush1.msra.mxu0 0.0
    %583 = vmatprep.subr.mxu0 0.0
    %584 = vmatpush1.msra.mxu0 0.0
    %585 = vmatprep.subr.mxu0 0.0
    %586 = vmatpush1.msra.mxu0 0.0
    %587 = vmatprep.subr.mxu0 0.0
    %588 = vmatpush1.msra.mxu0 0.0
    %589 = vmatprep.subr.mxu0 0.0
    %590 = vmatpush1.msra.mxu0 0.0
    %591 = vmatprep.subr.mxu0 0.0
    %592 = vmatpush1.msra.mxu0 0.0
    %593 = vmatprep.subr.mxu0 0.0
    %594 = vmatpush1.msra.mxu0 0.0
    %595 = vmatprep.subr.mxu0 0.0
    %596 = vmatpush1.msra.mxu0 0.0
    %597 = vmatprep.subr.mxu0 0.0
    %598 = vmatpush1.msra.mxu0 0.0
    %599 = vmatprep.subr.mxu0 0.0
    %600 = vmatpush1.msra.mxu0 0.0
    %601 = vmatprep.subr.mxu0 0.0
    %602 = vmatpush1.msra.mxu0 0.0
    %603 = vmatprep.subr.mxu0 0.0
    %604 = vmatpush1.msra.mxu0 0.0
    %605 = vmatprep.subr.mxu0 0.0
    %606 = vmatpush1.msra.mxu0 0.0
    %607 = vmatprep.subr.mxu0 0.0
    %608 = vmatpush1.msra.mxu0 0.0
    %609 = vmatprep.subr.mxu0 0.0
    %610 = vmatpush1.msra.mxu0 0.0
    %611 = vmatprep.subr.mxu0 0.0
    %612 = vmatpush1.msra.mxu0 0.0
    %613 = vmatprep.mubr.f32.mxu0 0.0
    %614 = vmatmul.mubr.f32.gmra.mrb[0].mxu0 %v547
    %v615 = vpop.f32.mrb[0].mxu0
    %v616 = vadd.f32 0.0, %v615
    %v617 = vpop.f32.mrb[0].mxu0
    %618 = vdwg.mxu0
    %v620 = vsel %vm369, %v545, 0
    %622 = vmatprep.subr.mxu0 0.0
    %623 = vmatpush1.msra.mxu0 %v366
    %624 = vmatprep.subr.mxu0 0.0
    %625 = vmatpush1.msra.mxu0 0.0
    %626 = vmatprep.subr.mxu0 0.0
    %627 = vmatpush1.msra.mxu0 0.0
    %628 = vmatprep.subr.mxu0 0.0
    %629 = vmatpush1.msra.mxu0 0.0
    %630 = vmatprep.subr.mxu0 0.0
    %631 = vmatpush1.msra.mxu0 0.0
    %632 = vmatprep.subr.mxu0 0.0
    %633 = vmatpush1.msra.mxu0 0.0
    %634 = vmatprep.subr.mxu0 0.0
    %635 = vmatpush1.msra.mxu0 0.0
    %636 = vmatprep.subr.mxu0 0.0
    %637 = vmatpush1.msra.mxu0 0.0
    %638 = vmatprep.subr.mxu0 0.0
    %639 = vmatpush1.msra.mxu0 0.0
    %640 = vmatprep.subr.mxu0 0.0
    %641 = vmatpush1.msra.mxu0 0.0
    %642 = vmatprep.subr.mxu0 0.0
    %643 = vmatpush1.msra.mxu0 0.0
    %644 = vmatprep.subr.mxu0 0.0
    %645 = vmatpush1.msra.mxu0 0.0
    %646 = vmatprep.subr.mxu0 0.0
    %647 = vmatpush1.msra.mxu0 0.0
    %648 = vmatprep.subr.mxu0 0.0
    %649 = vmatpush1.msra.mxu0 0.0
    %650 = vmatprep.subr.mxu0 0.0
    %651 = vmatpush1.msra.mxu0 0.0
    %652 = vmatprep.subr.mxu0 0.0
    %653 = vmatpush1.msra.mxu0 0.0
    %654 = vmatprep.subr.mxu0 0.0
    %655 = vmatpush1.msra.mxu0 0.0
    %656 = vmatprep.subr.mxu0 0.0
    %657 = vmatpush1.msra.mxu0 0.0
    %658 = vmatprep.subr.mxu0 0.0
    %659 = vmatpush1.msra.mxu0 0.0
    %660 = vmatprep.subr.mxu0 0.0
    %661 = vmatpush1.msra.mxu0 0.0
    %662 = vmatprep.subr.mxu0 0.0
    %663 = vmatpush1.msra.mxu0 0.0
    %664 = vmatprep.subr.mxu0 0.0
    %665 = vmatpush1.msra.mxu0 0.0
    %666 = vmatprep.subr.mxu0 0.0
    %667 = vmatpush1.msra.mxu0 0.0
    %668 = vmatprep.subr.mxu0 0.0
    %669 = vmatpush1.msra.mxu0 0.0
    %670 = vmatprep.subr.mxu0 0.0
    %671 = vmatpush1.msra.mxu0 0.0
    %672 = vmatprep.subr.mxu0 0.0
    %673 = vmatpush1.msra.mxu0 0.0
    %674 = vmatprep.subr.mxu0 0.0
    %675 = vmatpush1.msra.mxu0 0.0
    %676 = vmatprep.subr.mxu0 0.0
    %677 = vmatpush1.msra.mxu0 0.0
    %678 = vmatprep.subr.mxu0 0.0
    %679 = vmatpush1.msra.mxu0 0.0
    %680 = vmatprep.subr.mxu0 0.0
    %681 = vmatpush1.msra.mxu0 0.0
    %682 = vmatprep.subr.mxu0 0.0
    %683 = vmatpush1.msra.mxu0 0.0
    %684 = vmatprep.subr.mxu0 0.0
    %685 = vmatpush1.msra.mxu0 0.0
    %686 = vmatprep.mubr.f32.mxu0 0.0
    %687 = vmatmul.mubr.f32.gmra.mrb[0].mxu0 %v620
    %v688 = vpop.f32.mrb[0].mxu0
    %v689 = vadd.f32 0.0, %v688
    %v690 = vpop.f32.mrb[0].mxu0
    %691 = vdwg.mxu0
    %v692 = vld [vmem:[%s4 + $0x60] sm:$0xff]
    %693 = vrot.lane.b32.xlu0 %v153, 120
    %v694 = vpop.permute.xlu0 %693
    %695 = vrot.lane.b32.xlu0 %v257, 120
    %v696 = vpop.permute.xlu0 %695
    %v697 = vsel %vm369, %v694, 0
    %v699 = vsel %vm369, %v696, 0
    %701 = vmatprep.subr.mxu0 0.0
    %702 = vmatpush1.xpose.msra.mxu0 %v699
    %703 = vmatprep.subr.mxu0 0.0
    %704 = vmatpush1.xpose.msra.mxu0 0.0
    %705 = vmatprep.subr.mxu0 0.0
    %706 = vmatpush1.xpose.msra.mxu0 0.0
    %707 = vmatprep.subr.mxu0 0.0
    %708 = vmatpush1.xpose.msra.mxu0 0.0
    %709 = vmatprep.subr.mxu0 0.0
    %710 = vmatpush1.xpose.msra.mxu0 0.0
    %711 = vmatprep.subr.mxu0 0.0
    %712 = vmatpush1.xpose.msra.mxu0 0.0
    %713 = vmatprep.subr.mxu0 0.0
    %714 = vmatpush1.xpose.msra.mxu0 0.0
    %715 = vmatprep.subr.mxu0 0.0
    %716 = vmatpush1.xpose.msra.mxu0 0.0
    %717 = vmatprep.subr.mxu0 0.0
    %718 = vmatpush1.xpose.msra.mxu0 0.0
    %719 = vmatprep.subr.mxu0 0.0
    %720 = vmatpush1.xpose.msra.mxu0 0.0
    %721 = vmatprep.subr.mxu0 0.0
    %722 = vmatpush1.xpose.msra.mxu0 0.0
    %723 = vmatprep.subr.mxu0 0.0
    %724 = vmatpush1.xpose.msra.mxu0 0.0
    %725 = vmatprep.subr.mxu0 0.0
    %726 = vmatpush1.xpose.msra.mxu0 0.0
    %727 = vmatprep.subr.mxu0 0.0
    %728 = vmatpush1.xpose.msra.mxu0 0.0
    %729 = vmatprep.subr.mxu0 0.0
    %730 = vmatpush1.xpose.msra.mxu0 0.0
    %731 = vmatprep.subr.mxu0 0.0
    %732 = vmatpush1.xpose.msra.mxu0 0.0
    %733 = vmatprep.subr.mxu0 0.0
    %734 = vmatpush1.xpose.msra.mxu0 0.0
    %735 = vmatprep.subr.mxu0 0.0
    %736 = vmatpush1.xpose.msra.mxu0 0.0
    %737 = vmatprep.subr.mxu0 0.0
    %738 = vmatpush1.xpose.msra.mxu0 0.0
    %739 = vmatprep.subr.mxu0 0.0
    %740 = vmatpush1.xpose.msra.mxu0 0.0
    %741 = vmatprep.subr.mxu0 0.0
    %742 = vmatpush1.xpose.msra.mxu0 0.0
    %743 = vmatprep.subr.mxu0 0.0
    %744 = vmatpush1.xpose.msra.mxu0 0.0
    %745 = vmatprep.subr.mxu0 0.0
    %746 = vmatpush1.xpose.msra.mxu0 0.0
    %747 = vmatprep.subr.mxu0 0.0
    %748 = vmatpush1.xpose.msra.mxu0 0.0
    %749 = vmatprep.subr.mxu0 0.0
    %750 = vmatpush1.xpose.msra.mxu0 0.0
    %751 = vmatprep.subr.mxu0 0.0
    %752 = vmatpush1.xpose.msra.mxu0 0.0
    %753 = vmatprep.subr.mxu0 0.0
    %754 = vmatpush1.xpose.msra.mxu0 0.0
    %755 = vmatprep.subr.mxu0 0.0
    %756 = vmatpush1.xpose.msra.mxu0 0.0
    %757 = vmatprep.subr.mxu0 0.0
    %758 = vmatpush1.xpose.msra.mxu0 0.0
    %759 = vmatprep.subr.mxu0 0.0
    %760 = vmatpush1.xpose.msra.mxu0 0.0
    %761 = vmatprep.subr.mxu0 0.0
    %762 = vmatpush1.xpose.msra.mxu0 0.0
    %763 = vmatprep.subr.mxu0 0.0
    %764 = vmatpush1.xpose.msra.mxu0 0.0
    %765 = vmatprep.mubr.f32.mxu0 0.0
    %766 = vmatmul.mubr.f32.gmra.mrb[0].mxu0 %v697
    %v767 = vpop.f32.mrb[0].mxu0
    %v768 = vadd.f32 %v28, %v767
    %v769 = vpop.f32.mrb[0].mxu0
    %770 = vdwg.mxu0
    %771 = vrot.lane.b32.xlu0 %v158, 120
    %v772 = vpop.permute.xlu0 %771
    %773 = vrot.lane.b32.xlu0 %v262, 120
    %v774 = vpop.permute.xlu0 %773
    %v775 = vsel %vm369, %v772, 0
    %v777 = vsel %vm369, %v774, 0
    %779 = vmatprep.subr.mxu0 0.0
    %780 = vmatpush1.xpose.msra.mxu0 %v777
    %781 = vmatprep.subr.mxu0 0.0
    %782 = vmatpush1.xpose.msra.mxu0 0.0
    %783 = vmatprep.subr.mxu0 0.0
    %784 = vmatpush1.xpose.msra.mxu0 0.0
    %785 = vmatprep.subr.mxu0 0.0
    %786 = vmatpush1.xpose.msra.mxu0 0.0
    %787 = vmatprep.subr.mxu0 0.0
    %788 = vmatpush1.xpose.msra.mxu0 0.0
    %789 = vmatprep.subr.mxu0 0.0
    %790 = vmatpush1.xpose.msra.mxu0 0.0
    %791 = vmatprep.subr.mxu0 0.0
    %792 = vmatpush1.xpose.msra.mxu0 0.0
    %793 = vmatprep.subr.mxu0 0.0
    %794 = vmatpush1.xpose.msra.mxu0 0.0
    %795 = vmatprep.subr.mxu0 0.0
    %796 = vmatpush1.xpose.msra.mxu0 0.0
    %797 = vmatprep.subr.mxu0 0.0
    %798 = vmatpush1.xpose.msra.mxu0 0.0
    %799 = vmatprep.subr.mxu0 0.0
    %800 = vmatpush1.xpose.msra.mxu0 0.0
    %801 = vmatprep.subr.mxu0 0.0
    %802 = vmatpush1.xpose.msra.mxu0 0.0
    %803 = vmatprep.subr.mxu0 0.0
    %804 = vmatpush1.xpose.msra.mxu0 0.0
    %805 = vmatprep.subr.mxu0 0.0
    %806 = vmatpush1.xpose.msra.mxu0 0.0
    %807 = vmatprep.subr.mxu0 0.0
    %808 = vmatpush1.xpose.msra.mxu0 0.0
    %809 = vmatprep.subr.mxu0 0.0
    %810 = vmatpush1.xpose.msra.mxu0 0.0
    %811 = vmatprep.subr.mxu0 0.0
    %812 = vmatpush1.xpose.msra.mxu0 0.0
    %813 = vmatprep.subr.mxu0 0.0
    %814 = vmatpush1.xpose.msra.mxu0 0.0
    %815 = vmatprep.subr.mxu0 0.0
    %816 = vmatpush1.xpose.msra.mxu0 0.0
    %817 = vmatprep.subr.mxu0 0.0
    %818 = vmatpush1.xpose.msra.mxu0 0.0
    %819 = vmatprep.subr.mxu0 0.0
    %820 = vmatpush1.xpose.msra.mxu0 0.0
    %821 = vmatprep.subr.mxu0 0.0
    %822 = vmatpush1.xpose.msra.mxu0 0.0
    %823 = vmatprep.subr.mxu0 0.0
    %824 = vmatpush1.xpose.msra.mxu0 0.0
    %825 = vmatprep.subr.mxu0 0.0
    %826 = vmatpush1.xpose.msra.mxu0 0.0
    %827 = vmatprep.subr.mxu0 0.0
    %828 = vmatpush1.xpose.msra.mxu0 0.0
    %829 = vmatprep.subr.mxu0 0.0
    %830 = vmatpush1.xpose.msra.mxu0 0.0
    %831 = vmatprep.subr.mxu0 0.0
    %832 = vmatpush1.xpose.msra.mxu0 0.0
    %833 = vmatprep.subr.mxu0 0.0
    %834 = vmatpush1.xpose.msra.mxu0 0.0
    %835 = vmatprep.subr.mxu0 0.0
    %836 = vmatpush1.xpose.msra.mxu0 0.0
    %837 = vmatprep.subr.mxu0 0.0
    %838 = vmatpush1.xpose.msra.mxu0 0.0
    %839 = vmatprep.subr.mxu0 0.0
    %840 = vmatpush1.xpose.msra.mxu0 0.0
    %841 = vmatprep.subr.mxu0 0.0
    %842 = vmatpush1.xpose.msra.mxu0 0.0
    %843 = vmatprep.mubr.f32.mxu0 0.0
    %844 = vmatmul.mubr.f32.gmra.mrb[0].mxu0 %v775
    %v845 = vpop.f32.mrb[0].mxu0
    %v846 = vadd.f32 %v28, %v845
    %v847 = vpop.f32.mrb[0].mxu0
    %848 = vdwg.mxu0
    %v849 = vmul.f32 %v768, 0.35355338
    %v850 = vmul.f32 %v846, 0.35355338
    %v851 = vsel %vm369, %v849, -inf
    %852 = vmax.xlane.f32.xlu0 %v851
    %v853 = vpop.xlane.xlu0 %852
    %v854 = vsel %vm369, %v850, -inf
    %855 = vmax.xlane.f32.xlu0 %v854
    %v856 = vpop.xlane.xlu0 %855
    %v857 = vsub.f32 %v849, %v853
    %v858 = vsub.f32 %v850, %v856
    %v859 = vmul.f32 %v857, 1.442695
    %v860 = vpow.pop %v859
    %v861 = vmul.f32 %v858, 1.442695
    %v862 = vpow.pop %v861
    %v863 = vsel %vm369, %v860, 0.0
    %864 = vadd.xlane.f32.xlu0 %v863
    %v865 = vpop.xlane.xlu0 %864
    %v866 = vsel %vm369, %v862, 0.0
    %867 = vadd.xlane.f32.xlu0 %v866
    %v868 = vpop.xlane.xlu0 %867
    %v869 = vrcp.pop %v865
    %v870 = vrcp.pop %v868
    %v871 = vmul.f32 %v860, %v869
    %v872 = vmul.f32 %v862, %v870
    %874 = vrot.lane.b32.xlu0 %v361, 120
    %v875 = vpop.permute.xlu0 %874
    %v878 = vsel %vm369, %v871, 0
    %880 = vmatprep.subr.mxu0 0.0
    %881 = vmatpush1.msra.mxu0 %v875
    %882 = vmatprep.subr.mxu0 0.0
    %883 = vmatpush1.msra.mxu0 0.0
    %884 = vmatprep.subr.mxu0 0.0
    %885 = vmatpush1.msra.mxu0 0.0
    %886 = vmatprep.subr.mxu0 0.0
    %887 = vmatpush1.msra.mxu0 0.0
    %888 = vmatprep.subr.mxu0 0.0
    %889 = vmatpush1.msra.mxu0 0.0
    %890 = vmatprep.subr.mxu0 0.0
    %891 = vmatpush1.msra.mxu0 0.0
    %892 = vmatprep.subr.mxu0 0.0
    %893 = vmatpush1.msra.mxu0 0.0
    %894 = vmatprep.subr.mxu0 0.0
    %895 = vmatpush1.msra.mxu0 0.0
    %896 = vmatprep.subr.mxu0 0.0
    %897 = vmatpush1.msra.mxu0 0.0
    %898 = vmatprep.subr.mxu0 0.0
    %899 = vmatpush1.msra.mxu0 0.0
    %900 = vmatprep.subr.mxu0 0.0
    %901 = vmatpush1.msra.mxu0 0.0
    %902 = vmatprep.subr.mxu0 0.0
    %903 = vmatpush1.msra.mxu0 0.0
    %904 = vmatprep.subr.mxu0 0.0
    %905 = vmatpush1.msra.mxu0 0.0
    %906 = vmatprep.subr.mxu0 0.0
    %907 = vmatpush1.msra.mxu0 0.0
    %908 = vmatprep.subr.mxu0 0.0
    %909 = vmatpush1.msra.mxu0 0.0
    %910 = vmatprep.subr.mxu0 0.0
    %911 = vmatpush1.msra.mxu0 0.0
    %912 = vmatprep.subr.mxu0 0.0
    %913 = vmatpush1.msra.mxu0 0.0
    %914 = vmatprep.subr.mxu0 0.0
    %915 = vmatpush1.msra.mxu0 0.0
    %916 = vmatprep.subr.mxu0 0.0
    %917 = vmatpush1.msra.mxu0 0.0
    %918 = vmatprep.subr.mxu0 0.0
    %919 = vmatpush1.msra.mxu0 0.0
    %920 = vmatprep.subr.mxu0 0.0
    %921 = vmatpush1.msra.mxu0 0.0
    %922 = vmatprep.subr.mxu0 0.0
    %923 = vmatpush1.msra.mxu0 0.0
    %924 = vmatprep.subr.mxu0 0.0
    %925 = vmatpush1.msra.mxu0 0.0
    %926 = vmatprep.subr.mxu0 0.0
    %927 = vmatpush1.msra.mxu0 0.0
    %928 = vmatprep.subr.mxu0 0.0
    %929 = vmatpush1.msra.mxu0 0.0
    %930 = vmatprep.subr.mxu0 0.0
    %931 = vmatpush1.msra.mxu0 0.0
    %932 = vmatprep.subr.mxu0 0.0
    %933 = vmatpush1.msra.mxu0 0.0
    %934 = vmatprep.subr.mxu0 0.0
    %935 = vmatpush1.msra.mxu0 0.0
    %936 = vmatprep.subr.mxu0 0.0
    %937 = vmatpush1.msra.mxu0 0.0
    %938 = vmatprep.subr.mxu0 0.0
    %939 = vmatpush1.msra.mxu0 0.0
    %940 = vmatprep.subr.mxu0 0.0
    %941 = vmatpush1.msra.mxu0 0.0
    %942 = vmatprep.subr.mxu0 0.0
    %943 = vmatpush1.msra.mxu0 0.0
    %944 = vmatprep.mubr.f32.mxu0 0.0
    %945 = vmatmul.mubr.f32.gmra.mrb[0].mxu0 %v878
    %v946 = vpop.f32.mrb[0].mxu0
    %v947 = vadd.f32 0.0, %v946
    %v948 = vpop.f32.mrb[0].mxu0
    %949 = vdwg.mxu0
    %951 = vrot.lane.b32.xlu0 %v366, 120
    %v952 = vpop.permute.xlu0 %951
    %v955 = vsel %vm369, %v872, 0
    %957 = vmatprep.subr.mxu0 0.0
    %958 = vmatpush1.msra.mxu0 %v952
    %959 = vmatprep.subr.mxu0 0.0
    %960 = vmatpush1.msra.mxu0 0.0
    %961 = vmatprep.subr.mxu0 0.0
    %962 = vmatpush1.msra.mxu0 0.0
    %963 = vmatprep.subr.mxu0 0.0
    %964 = vmatpush1.msra.mxu0 0.0
    %965 = vmatprep.subr.mxu0 0.0
    %966 = vmatpush1.msra.mxu0 0.0
    %967 = vmatprep.subr.mxu0 0.0
    %968 = vmatpush1.msra.mxu0 0.0
    %969 = vmatprep.subr.mxu0 0.0
    %970 = vmatpush1.msra.mxu0 0.0
    %971 = vmatprep.subr.mxu0 0.0
    %972 = vmatpush1.msra.mxu0 0.0
    %973 = vmatprep.subr.mxu0 0.0
    %974 = vmatpush1.msra.mxu0 0.0
    %975 = vmatprep.subr.mxu0 0.0
    %976 = vmatpush1.msra.mxu0 0.0
    %977 = vmatprep.subr.mxu0 0.0
    %978 = vmatpush1.msra.mxu0 0.0
    %979 = vmatprep.subr.mxu0 0.0
    %980 = vmatpush1.msra.mxu0 0.0
    %981 = vmatprep.subr.mxu0 0.0
    %982 = vmatpush1.msra.mxu0 0.0
    %983 = vmatprep.subr.mxu0 0.0
    %984 = vmatpush1.msra.mxu0 0.0
    %985 = vmatprep.subr.mxu0 0.0
    %986 = vmatpush1.msra.mxu0 0.0
    %987 = vmatprep.subr.mxu0 0.0
    %988 = vmatpush1.msra.mxu0 0.0
    %989 = vmatprep.subr.mxu0 0.0
    %990 = vmatpush1.msra.mxu0 0.0
    %991 = vmatprep.subr.mxu0 0.0
    %992 = vmatpush1.msra.mxu0 0.0
    %993 = vmatprep.subr.mxu0 0.0
    %994 = vmatpush1.msra.mxu0 0.0
    %995 = vmatprep.subr.mxu0 0.0
    %996 = vmatpush1.msra.mxu0 0.0
    %997 = vmatprep.subr.mxu0 0.0
    %998 = vmatpush1.msra.mxu0 0.0
    %999 = vmatprep.subr.mxu0 0.0
    %1000 = vmatpush1.msra.mxu0 0.0
    %1001 = vmatprep.subr.mxu0 0.0
    %1002 = vmatpush1.msra.mxu0 0.0
    %1003 = vmatprep.subr.mxu0 0.0
    %1004 = vmatpush1.msra.mxu0 0.0
    %1005 = vmatprep.subr.mxu0 0.0
    %1006 = vmatpush1.msra.mxu0 0.0
    %1007 = vmatprep.subr.mxu0 0.0
    %1008 = vmatpush1.msra.mxu0 0.0
    %1009 = vmatprep.subr.mxu0 0.0
    %1010 = vmatpush1.msra.mxu0 0.0
    %1011 = vmatprep.subr.mxu0 0.0
    %1012 = vmatpush1.msra.mxu0 0.0
    %1013 = vmatprep.subr.mxu0 0.0
    %1014 = vmatpush1.msra.mxu0 0.0
    %1015 = vmatprep.subr.mxu0 0.0
    %1016 = vmatpush1.msra.mxu0 0.0
    %1017 = vmatprep.subr.mxu0 0.0
    %1018 = vmatpush1.msra.mxu0 0.0
    %1019 = vmatprep.subr.mxu0 0.0
    %1020 = vmatpush1.msra.mxu0 0.0
    %1021 = vmatprep.mubr.f32.mxu0 0.0
    %1022 = vmatmul.mubr.f32.gmra.mrb[0].mxu0 %v955
    %v1023 = vpop.f32.mrb[0].mxu0
    %v1024 = vadd.f32 0.0, %v1023
    %v1025 = vpop.f32.mrb[0].mxu0
    %1026 = vdwg.mxu0
    %v1027 = vld [vmem:[%s4 + $0x68] sm:$0xff]
    %v1029 = vsel %vm369, %v947, 0
    %v1032 = vsel %vm369, %v1024, 0
    %1034 = vmatprep.subr.mxu0 0.0
    %1035 = vmatpush1.msra.mxu0 %v1027
    %1036 = vmatprep.subr.mxu0 0.0
    %1037 = vmatpush1.msra.mxu0 0.0
    %1038 = vmatprep.subr.mxu0 0.0
    %1039 = vmatpush1.msra.mxu0 0.0
    %1040 = vmatprep.subr.mxu0 0.0
    %1041 = vmatpush1.msra.mxu0 0.0
    %1042 = vmatprep.subr.mxu0 0.0
    %1043 = vmatpush1.msra.mxu0 0.0
    %1044 = vmatprep.subr.mxu0 0.0
    %1045 = vmatpush1.msra.mxu0 0.0
    %1046 = vmatprep.subr.mxu0 0.0
    %1047 = vmatpush1.msra.mxu0 0.0
    %1048 = vmatprep.subr.mxu0 0.0
    %1049 = vmatpush1.msra.mxu0 0.0
    %1050 = vmatprep.subr.mxu0 0.0
    %1051 = vmatpush1.msra.mxu0 0.0
    %1052 = vmatprep.subr.mxu0 0.0
    %1053 = vmatpush1.msra.mxu0 0.0
    %1054 = vmatprep.subr.mxu0 0.0
    %1055 = vmatpush1.msra.mxu0 0.0
    %1056 = vmatprep.subr.mxu0 0.0
    %1057 = vmatpush1.msra.mxu0 0.0
    %1058 = vmatprep.subr.mxu0 0.0
    %1059 = vmatpush1.msra.mxu0 0.0
    %1060 = vmatprep.subr.mxu0 0.0
    %1061 = vmatpush1.msra.mxu0 0.0
    %1062 = vmatprep.subr.mxu0 0.0
    %1063 = vmatpush1.msra.mxu0 0.0
    %1064 = vmatprep.subr.mxu0 0.0
    %1065 = vmatpush1.msra.mxu0 0.0
    %1066 = vmatprep.subr.mxu0 0.0
    %1067 = vmatpush1.msra.mxu0 0.0
    %1068 = vmatprep.subr.mxu0 0.0
    %1069 = vmatpush1.msra.mxu0 0.0
    %1070 = vmatprep.subr.mxu0 0.0
    %1071 = vmatpush1.msra.mxu0 0.0
    %1072 = vmatprep.subr.mxu0 0.0
    %1073 = vmatpush1.msra.mxu0 0.0
    %1074 = vmatprep.subr.mxu0 0.0
    %1075 = vmatpush1.msra.mxu0 0.0
    %1076 = vmatprep.subr.mxu0 0.0
    %1077 = vmatpush1.msra.mxu0 0.0
    %1078 = vmatprep.subr.mxu0 0.0
    %1079 = vmatpush1.msra.mxu0 0.0
    %1080 = vmatprep.subr.mxu0 0.0
    %1081 = vmatpush1.msra.mxu0 0.0
    %1082 = vmatprep.subr.mxu0 0.0
    %1083 = vmatpush1.msra.mxu0 0.0
    %1084 = vmatprep.subr.mxu0 0.0
    %1085 = vmatpush1.msra.mxu0 0.0
    %1086 = vmatprep.subr.mxu0 0.0
    %1087 = vmatpush1.msra.mxu0 0.0
    %1088 = vmatprep.subr.mxu0 0.0
    %1089 = vmatpush1.msra.mxu0 0.0
    %1090 = vmatprep.subr.mxu0 0.0
    %1091 = vmatpush1.msra.mxu0 0.0
    %1092 = vmatprep.subr.mxu0 0.0
    %1093 = vmatpush1.msra.mxu0 0.0
    %1094 = vmatprep.subr.mxu0 0.0
    %1095 = vmatpush1.msra.mxu0 0.0
    %1096 = vmatprep.subr.mxu0 0.0
    %1097 = vmatpush1.msra.mxu0 0.0
    %1098 = vmatprep.mubr.f32.mxu0 0.0
    %1099 = vmatmul.mubr.f32.gmra.mrb[0].mxu0 %v1029
    %v1100 = vpop.f32.mrb[0].mxu0
    %v1101 = vadd.f32 0.0, %v1100
    %v1102 = vpop.f32.mrb[0].mxu0
    %1103 = vmatprep.mubr.f32.mxu0 0.0
    %1104 = vmatmul.mubr.f32.gmra.mrb[0].mxu0 %v1032
    %v1105 = vpop.f32.mrb[0].mxu0
    %v1106 = vadd.f32 0.0, %v1105
    %v1107 = vpop.f32.mrb[0].mxu0
    %1108 = vdwg.mxu0
    %v1110 = vsel %vm369, %v616, 0
    %v1113 = vsel %vm369, %v689, 0
    %1115 = vmatprep.subr.mxu0 0.0
    %1116 = vmatpush1.msra.mxu0 %v692
    %1117 = vmatprep.subr.mxu0 0.0
    %1118 = vmatpush1.msra.mxu0 0.0
    %1119 = vmatprep.subr.mxu0 0.0
    %1120 = vmatpush1.msra.mxu0 0.0
    %1121 = vmatprep.subr.mxu0 0.0
    %1122 = vmatpush1.msra.mxu0 0.0
    %1123 = vmatprep.subr.mxu0 0.0
    %1124 = vmatpush1.msra.mxu0 0.0
    %1125 = vmatprep.subr.mxu0 0.0
    %1126 = vmatpush1.msra.mxu0 0.0
    %1127 = vmatprep.subr.mxu0 0.0
    %1128 = vmatpush1.msra.mxu0 0.0
    %1129 = vmatprep.subr.mxu0 0.0
    %1130 = vmatpush1.msra.mxu0 0.0
    %1131 = vmatprep.subr.mxu0 0.0
    %1132 = vmatpush1.msra.mxu0 0.0
    %1133 = vmatprep.subr.mxu0 0.0
    %1134 = vmatpush1.msra.mxu0 0.0
    %1135 = vmatprep.subr.mxu0 0.0
    %1136 = vmatpush1.msra.mxu0 0.0
    %1137 = vmatprep.subr.mxu0 0.0
    %1138 = vmatpush1.msra.mxu0 0.0
    %1139 = vmatprep.subr.mxu0 0.0
    %1140 = vmatpush1.msra.mxu0 0.0
    %1141 = vmatprep.subr.mxu0 0.0
    %1142 = vmatpush1.msra.mxu0 0.0
    %1143 = vmatprep.subr.mxu0 0.0
    %1144 = vmatpush1.msra.mxu0 0.0
    %1145 = vmatprep.subr.mxu0 0.0
    %1146 = vmatpush1.msra.mxu0 0.0
    %1147 = vmatprep.subr.mxu0 0.0
    %1148 = vmatpush1.msra.mxu0 0.0
    %1149 = vmatprep.subr.mxu0 0.0
    %1150 = vmatpush1.msra.mxu0 0.0
    %1151 = vmatprep.subr.mxu0 0.0
    %1152 = vmatpush1.msra.mxu0 0.0
    %1153 = vmatprep.subr.mxu0 0.0
    %1154 = vmatpush1.msra.mxu0 0.0
    %1155 = vmatprep.subr.mxu0 0.0
    %1156 = vmatpush1.msra.mxu0 0.0
    %1157 = vmatprep.subr.mxu0 0.0
    %1158 = vmatpush1.msra.mxu0 0.0
    %1159 = vmatprep.subr.mxu0 0.0
    %1160 = vmatpush1.msra.mxu0 0.0
    %1161 = vmatprep.subr.mxu0 0.0
    %1162 = vmatpush1.msra.mxu0 0.0
    %1163 = vmatprep.subr.mxu0 0.0
    %1164 = vmatpush1.msra.mxu0 0.0
    %1165 = vmatprep.subr.mxu0 0.0
    %1166 = vmatpush1.msra.mxu0 0.0
    %1167 = vmatprep.subr.mxu0 0.0
    %1168 = vmatpush1.msra.mxu0 0.0
    %1169 = vmatprep.subr.mxu0 0.0
    %1170 = vmatpush1.msra.mxu0 0.0
    %1171 = vmatprep.subr.mxu0 0.0
    %1172 = vmatpush1.msra.mxu0 0.0
    %1173 = vmatprep.subr.mxu0 0.0
    %1174 = vmatpush1.msra.mxu0 0.0
    %1175 = vmatprep.subr.mxu0 0.0
    %1176 = vmatpush1.msra.mxu0 0.0
    %1177 = vmatprep.subr.mxu0 0.0
    %1178 = vmatpush1.msra.mxu0 0.0
    %1179 = vmatprep.mubr.f32.mxu0 0.0
    %1180 = vmatmul.mubr.f32.gmra.mrb[0].mxu0 %v1110
    %v1181 = vpop.f32.mrb[0].mxu0
    %v1182 = vadd.f32 %v1101, %v1181
    %v1183 = vpop.f32.mrb[0].mxu0
    %1184 = vmatprep.mubr.f32.mxu0 0.0
    %1185 = vmatmul.mubr.f32.gmra.mrb[0].mxu0 %v1113
    %v1186 = vpop.f32.mrb[0].mxu0
    %v1187 = vadd.f32 %v1106, %v1186
    %v1188 = vpop.f32.mrb[0].mxu0
    %1189 = vdwg.mxu0
    %1190 = vrot.lane.b32.xlu0 %v153, 112
    %v1191 = vpop.permute.xlu0 %1190
    %1192 = vrot.lane.b32.xlu0 %v257, 112
    %v1193 = vpop.permute.xlu0 %1192
    %v1194 = vsel %vm369, %v1191, 0
    %v1196 = vsel %vm369, %v1193, 0
    %1198 = vmatprep.subr.mxu0 0.0
    %1199 = vmatpush1.xpose.msra.mxu0 %v1196
    %1200 = vmatprep.subr.mxu0 0.0
    %1201 = vmatpush1.xpose.msra.mxu0 0.0
    %1202 = vmatprep.subr.mxu0 0.0
    %1203 = vmatpush1.xpose.msra.mxu0 0.0
    %1204 = vmatprep.subr.mxu0 0.0
    %1205 = vmatpush1.xpose.msra.mxu0 0.0
    %1206 = vmatprep.subr.mxu0 0.0
    %1207 = vmatpush1.xpose.msra.mxu0 0.0
    %1208 = vmatprep.subr.mxu0 0.0
    %1209 = vmatpush1.xpose.msra.mxu0 0.0
    %1210 = vmatprep.subr.mxu0 0.0
    %1211 = vmatpush1.xpose.msra.mxu0 0.0
    %1212 = vmatprep.subr.mxu0 0.0
    %1213 = vmatpush1.xpose.msra.mxu0 0.0
    %1214 = vmatprep.subr.mxu0 0.0
    %1215 = vmatpush1.xpose.msra.mxu0 0.0
    %1216 = vmatprep.subr.mxu0 0.0
    %1217 = vmatpush1.xpose.msra.mxu0 0.0
    %1218 = vmatprep.subr.mxu0 0.0
    %1219 = vmatpush1.xpose.msra.mxu0 0.0
    %1220 = vmatprep.subr.mxu0 0.0
    %1221 = vmatpush1.xpose.msra.mxu0 0.0
    %1222 = vmatprep.subr.mxu0 0.0
    %1223 = vmatpush1.xpose.msra.mxu0 0.0
    %1224 = vmatprep.subr.mxu0 0.0
    %1225 = vmatpush1.xpose.msra.mxu0 0.0
    %1226 = vmatprep.subr.mxu0 0.0
    %1227 = vmatpush1.xpose.msra.mxu0 0.0
    %1228 = vmatprep.subr.mxu0 0.0
    %1229 = vmatpush1.xpose.msra.mxu0 0.0
    %1230 = vmatprep.subr.mxu0 0.0
    %1231 = vmatpush1.xpose.msra.mxu0 0.0
    %1232 = vmatprep.subr.mxu0 0.0
    %1233 = vmatpush1.xpose.msra.mxu0 0.0
    %1234 = vmatprep.subr.mxu0 0.0
    %1235 = vmatpush1.xpose.msra.mxu0 0.0
    %1236 = vmatprep.subr.mxu0 0.0
    %1237 = vmatpush1.xpose.msra.mxu0 0.0
    %1238 = vmatprep.subr.mxu0 0.0
    %1239 = vmatpush1.xpose.msra.mxu0 0.0
    %1240 = vmatprep.subr.mxu0 0.0
    %1241 = vmatpush1.xpose.msra.mxu0 0.0
    %1242 = vmatprep.subr.mxu0 0.0
    %1243 = vmatpush1.xpose.msra.mxu0 0.0
    %1244 = vmatprep.subr.mxu0 0.0
    %1245 = vmatpush1.xpose.msra.mxu0 0.0
    %1246 = vmatprep.subr.mxu0 0.0
    %1247 = vmatpush1.xpose.msra.mxu0 0.0
    %1248 = vmatprep.subr.mxu0 0.0
    %1249 = vmatpush1.xpose.msra.mxu0 0.0
    %1250 = vmatprep.subr.mxu0 0.0
    %1251 = vmatpush1.xpose.msra.mxu0 0.0
    %1252 = vmatprep.subr.mxu0 0.0
    %1253 = vmatpush1.xpose.msra.mxu0 0.0
    %1254 = vmatprep.subr.mxu0 0.0
    %1255 = vmatpush1.xpose.msra.mxu0 0.0
    %1256 = vmatprep.subr.mxu0 0.0
    %1257 = vmatpush1.xpose.msra.mxu0 0.0
    %1258 = vmatprep.subr.mxu0 0.0
    %1259 = vmatpush1.xpose.msra.mxu0 0.0
    %1260 = vmatprep.subr.mxu0 0.0
    %1261 = vmatpush1.xpose.msra.mxu0 0.0
    %1262 = vmatprep.mubr.f32.mxu0 0.0
    %1263 = vmatmul.mubr.f32.gmra.mrb[0].mxu0 %v1194
    %v1264 = vpop.f32.mrb[0].mxu0
    %v1265 = vadd.f32 %v28, %v1264
    %v1266 = vpop.f32.mrb[0].mxu0
    %1267 = vdwg.mxu0
    %1268 = vrot.lane.b32.xlu0 %v158, 112
    %v1269 = vpop.permute.xlu0 %1268
    %1270 = vrot.lane.b32.xlu0 %v262, 112
    %v1271 = vpop.permute.xlu0 %1270
    %v1272 = vsel %vm369, %v1269, 0
    %v1274 = vsel %vm369, %v1271, 0
    %1276 = vmatprep.subr.mxu0 0.0
    %1277 = vmatpush1.xpose.msra.mxu0 %v1274
    %1278 = vmatprep.subr.mxu0 0.0
    %1279 = vmatpush1.xpose.msra.mxu0 0.0
    %1280 = vmatprep.subr.mxu0 0.0
    %1281 = vmatpush1.xpose.msra.mxu0 0.0
    %1282 = vmatprep.subr.mxu0 0.0
    %1283 = vmatpush1.xpose.msra.mxu0 0.0
    %1284 = vmatprep.subr.mxu0 0.0
    %1285 = vmatpush1.xpose.msra.mxu0 0.0
    %1286 = vmatprep.subr.mxu0 0.0
    %1287 = vmatpush1.xpose.msra.mxu0 0.0
    %1288 = vmatprep.subr.mxu0 0.0
    %1289 = vmatpush1.xpose.msra.mxu0 0.0
    %1290 = vmatprep.subr.mxu0 0.0
    %1291 = vmatpush1.xpose.msra.mxu0 0.0
    %1292 = vmatprep.subr.mxu0 0.0
    %1293 = vmatpush1.xpose.msra.mxu0 0.0
    %1294 = vmatprep.subr.mxu0 0.0
    %1295 = vmatpush1.xpose.msra.mxu0 0.0
    %1296 = vmatprep.subr.mxu0 0.0
    %1297 = vmatpush1.xpose.msra.mxu0 0.0
    %1298 = vmatprep.subr.mxu0 0.0
    %1299 = vmatpush1.xpose.msra.mxu0 0.0
    %1300 = vmatprep.subr.mxu0 0.0
    %1301 = vmatpush1.xpose.msra.mxu0 0.0
    %1302 = vmatprep.subr.mxu0 0.0
    %1303 = vmatpush1.xpose.msra.mxu0 0.0
    %1304 = vmatprep.subr.mxu0 0.0
    %1305 = vmatpush1.xpose.msra.mxu0 0.0
    %1306 = vmatprep.subr.mxu0 0.0
    %1307 = vmatpush1.xpose.msra.mxu0 0.0
    %1308 = vmatprep.subr.mxu0 0.0
    %1309 = vmatpush1.xpose.msra.mxu0 0.0
    %1310 = vmatprep.subr.mxu0 0.0
    %1311 = vmatpush1.xpose.msra.mxu0 0.0
    %1312 = vmatprep.subr.mxu0 0.0
    %1313 = vmatpush1.xpose.msra.mxu0 0.0
    %1314 = vmatprep.subr.mxu0 0.0
    %1315 = vmatpush1.xpose.msra.mxu0 0.0
    %1316 = vmatprep.subr.mxu0 0.0
    %1317 = vmatpush1.xpose.msra.mxu0 0.0
    %1318 = vmatprep.subr.mxu0 0.0
    %1319 = vmatpush1.xpose.msra.mxu0 0.0
    %1320 = vmatprep.subr.mxu0 0.0
    %1321 = vmatpush1.xpose.msra.mxu0 0.0
    %1322 = vmatprep.subr.mxu0 0.0
    %1323 = vmatpush1.xpose.msra.mxu0 0.0
    %1324 = vmatprep.subr.mxu0 0.0
    %1325 = vmatpush1.xpose.msra.mxu0 0.0
    %1326 = vmatprep.subr.mxu0 0.0
    %1327 = vmatpush1.xpose.msra.mxu0 0.0
    %1328 = vmatprep.subr.mxu0 0.0
    %1329 = vmatpush1.xpose.msra.mxu0 0.0
    %1330 = vmatprep.subr.mxu0 0.0
    %1331 = vmatpush1.xpose.msra.mxu0 0.0
    %1332 = vmatprep.subr.mxu0 0.0
    %1333 = vmatpush1.xpose.msra.mxu0 0.0
    %1334 = vmatprep.subr.mxu0 0.0
    %1335 = vmatpush1.xpose.msra.mxu0 0.0
    %1336 = vmatprep.subr.mxu0 0.0
    %1337 = vmatpush1.xpose.msra.mxu0 0.0
    %1338 = vmatprep.subr.mxu0 0.0
    %1339 = vmatpush1.xpose.msra.mxu0 0.0
    %1340 = vmatprep.mubr.f32.mxu0 0.0
    %1341 = vmatmul.mubr.f32.gmra.mrb[0].mxu0 %v1272
    %v1342 = vpop.f32.mrb[0].mxu0
    %v1343 = vadd.f32 %v28, %v1342
    %v1344 = vpop.f32.mrb[0].mxu0
    %1345 = vdwg.mxu0
    %v1346 = vmul.f32 %v1265, 0.35355338
    %v1347 = vmul.f32 %v1343, 0.35355338
    %v1348 = vsel %vm369, %v1346, -inf
    %1349 = vmax.xlane.f32.xlu0 %v1348
    %v1350 = vpop.xlane.xlu0 %1349
    %v1351 = vsel %vm369, %v1347, -inf
    %1352 = vmax.xlane.f32.xlu0 %v1351
    %v1353 = vpop.xlane.xlu0 %1352
    %v1354 = vsub.f32 %v1346, %v1350
    %v1355 = vsub.f32 %v1347, %v1353
    %v1356 = vmul.f32 %v1354, 1.442695
    %v1357 = vpow.pop %v1356
    %v1358 = vmul.f32 %v1355, 1.442695
    %v1359 = vpow.pop %v1358
    %v1360 = vsel %vm369, %v1357, 0.0
    %1361 = vadd.xlane.f32.xlu0 %v1360
    %v1362 = vpop.xlane.xlu0 %1361
    %v1363 = vsel %vm369, %v1359, 0.0
    %1364 = vadd.xlane.f32.xlu0 %v1363
    %v1365 = vpop.xlane.xlu0 %1364
    %v1366 = vrcp.pop %v1362
    %v1367 = vrcp.pop %v1365
    %v1368 = vmul.f32 %v1357, %v1366
    %v1369 = vmul.f32 %v1359, %v1367
    %1370 = vrot.lane.b32.xlu0 %v361, 112
    %v1371 = vpop.permute.xlu0 %1370
    %v1374 = vsel %vm369, %v1368, 0
    %1376 = vmatprep.subr.mxu0 0.0
    %1377 = vmatpush1.msra.mxu0 %v1371
    %1378 = vmatprep.subr.mxu0 0.0
    %1379 = vmatpush1.msra.mxu0 0.0
    %1380 = vmatprep.subr.mxu0 0.0
    %1381 = vmatpush1.msra.mxu0 0.0
    %1382 = vmatprep.subr.mxu0 0.0
    %1383 = vmatpush1.msra.mxu0 0.0
    %1384 = vmatprep.subr.mxu0 0.0
    %1385 = vmatpush1.msra.mxu0 0.0
    %1386 = vmatprep.subr.mxu0 0.0
    %1387 = vmatpush1.msra.mxu0 0.0
    %1388 = vmatprep.subr.mxu0 0.0
    %1389 = vmatpush1.msra.mxu0 0.0
    %1390 = vmatprep.subr.mxu0 0.0
    %1391 = vmatpush1.msra.mxu0 0.0
    %1392 = vmatprep.subr.mxu0 0.0
    %1393 = vmatpush1.msra.mxu0 0.0
    %1394 = vmatprep.subr.mxu0 0.0
    %1395 = vmatpush1.msra.mxu0 0.0
    %1396 = vmatprep.subr.mxu0 0.0
    %1397 = vmatpush1.msra.mxu0 0.0
    %1398 = vmatprep.subr.mxu0 0.0
    %1399 = vmatpush1.msra.mxu0 0.0
    %1400 = vmatprep.subr.mxu0 0.0
    %1401 = vmatpush1.msra.mxu0 0.0
    %1402 = vmatprep.subr.mxu0 0.0
    %1403 = vmatpush1.msra.mxu0 0.0
    %1404 = vmatprep.subr.mxu0 0.0
    %1405 = vmatpush1.msra.mxu0 0.0
    %1406 = vmatprep.subr.mxu0 0.0
    %1407 = vmatpush1.msra.mxu0 0.0
    %1408 = vmatprep.subr.mxu0 0.0
    %1409 = vmatpush1.msra.mxu0 0.0
    %1410 = vmatprep.subr.mxu0 0.0
    %1411 = vmatpush1.msra.mxu0 0.0
    %1412 = vmatprep.subr.mxu0 0.0
    %1413 = vmatpush1.msra.mxu0 0.0
    %1414 = vmatprep.subr.mxu0 0.0
    %1415 = vmatpush1.msra.mxu0 0.0
    %1416 = vmatprep.subr.mxu0 0.0
    %1417 = vmatpush1.msra.mxu0 0.0
    %1418 = vmatprep.subr.mxu0 0.0
    %1419 = vmatpush1.msra.mxu0 0.0
    %1420 = vmatprep.subr.mxu0 0.0
    %1421 = vmatpush1.msra.mxu0 0.0
    %1422 = vmatprep.subr.mxu0 0.0
    %1423 = vmatpush1.msra.mxu0 0.0
    %1424 = vmatprep.subr.mxu0 0.0
    %1425 = vmatpush1.msra.mxu0 0.0
    %1426 = vmatprep.subr.mxu0 0.0
    %1427 = vmatpush1.msra.mxu0 0.0
    %1428 = vmatprep.subr.mxu0 0.0
    %1429 = vmatpush1.msra.mxu0 0.0
    %1430 = vmatprep.subr.mxu0 0.0
    %1431 = vmatpush1.msra.mxu0 0.0
    %1432 = vmatprep.subr.mxu0 0.0
    %1433 = vmatpush1.msra.mxu0 0.0
    %1434 = vmatprep.subr.mxu0 0.0
    %1435 = vmatpush1.msra.mxu0 0.0
    %1436 = vmatprep.subr.mxu0 0.0
    %1437 = vmatpush1.msra.mxu0 0.0
    %1438 = vmatprep.subr.mxu0 0.0
    %1439 = vmatpush1.msra.mxu0 0.0
    %1440 = vmatprep.mubr.f32.mxu0 0.0
    %1441 = vmatmul.mubr.f32.gmra.mrb[0].mxu0 %v1374
    %v1442 = vpop.f32.mrb[0].mxu0
    %v1443 = vadd.f32 0.0, %v1442
    %v1444 = vpop.f32.mrb[0].mxu0
    %1445 = vdwg.mxu0
    %1446 = vrot.lane.b32.xlu0 %v366, 112
    %v1447 = vpop.permute.xlu0 %1446
    %v1450 = vsel %vm369, %v1369, 0
    %1452 = vmatprep.subr.mxu0 0.0
    %1453 = vmatpush1.msra.mxu0 %v1447
    %1454 = vmatprep.subr.mxu0 0.0
    %1455 = vmatpush1.msra.mxu0 0.0
    %1456 = vmatprep.subr.mxu0 0.0
    %1457 = vmatpush1.msra.mxu0 0.0
    %1458 = vmatprep.subr.mxu0 0.0
    %1459 = vmatpush1.msra.mxu0 0.0
    %1460 = vmatprep.subr.mxu0 0.0
    %1461 = vmatpush1.msra.mxu0 0.0
    %1462 = vmatprep.subr.mxu0 0.0
    %1463 = vmatpush1.msra.mxu0 0.0
    %1464 = vmatprep.subr.mxu0 0.0
    %1465 = vmatpush1.msra.mxu0 0.0
    %1466 = vmatprep.subr.mxu0 0.0
    %1467 = vmatpush1.msra.mxu0 0.0
    %1468 = vmatprep.subr.mxu0 0.0
    %1469 = vmatpush1.msra.mxu0 0.0
    %1470 = vmatprep.subr.mxu0 0.0
    %1471 = vmatpush1.msra.mxu0 0.0
    %1472 = vmatprep.subr.mxu0 0.0
    %1473 = vmatpush1.msra.mxu0 0.0
    %1474 = vmatprep.subr.mxu0 0.0
    %1475 = vmatpush1.msra.mxu0 0.0
    %1476 = vmatprep.subr.mxu0 0.0
    %1477 = vmatpush1.msra.mxu0 0.0
    %1478 = vmatprep.subr.mxu0 0.0
    %1479 = vmatpush1.msra.mxu0 0.0
    %1480 = vmatprep.subr.mxu0 0.0
    %1481 = vmatpush1.msra.mxu0 0.0
    %1482 = vmatprep.subr.mxu0 0.0
    %1483 = vmatpush1.msra.mxu0 0.0
    %1484 = vmatprep.subr.mxu0 0.0
    %1485 = vmatpush1.msra.mxu0 0.0
    %1486 = vmatprep.subr.mxu0 0.0
    %1487 = vmatpush1.msra.mxu0 0.0
    %1488 = vmatprep.subr.mxu0 0.0
    %1489 = vmatpush1.msra.mxu0 0.0
    %1490 = vmatprep.subr.mxu0 0.0
    %1491 = vmatpush1.msra.mxu0 0.0
    %1492 = vmatprep.subr.mxu0 0.0
    %1493 = vmatpush1.msra.mxu0 0.0
    %1494 = vmatprep.subr.mxu0 0.0
    %1495 = vmatpush1.msra.mxu0 0.0
    %1496 = vmatprep.subr.mxu0 0.0
    %1497 = vmatpush1.msra.mxu0 0.0
    %1498 = vmatprep.subr.mxu0 0.0
    %1499 = vmatpush1.msra.mxu0 0.0
    %1500 = vmatprep.subr.mxu0 0.0
    %1501 = vmatpush1.msra.mxu0 0.0
    %1502 = vmatprep.subr.mxu0 0.0
    %1503 = vmatpush1.msra.mxu0 0.0
    %1504 = vmatprep.subr.mxu0 0.0
    %1505 = vmatpush1.msra.mxu0 0.0
    %1506 = vmatprep.subr.mxu0 0.0
    %1507 = vmatpush1.msra.mxu0 0.0
    %1508 = vmatprep.subr.mxu0 0.0
    %1509 = vmatpush1.msra.mxu0 0.0
    %1510 = vmatprep.subr.mxu0 0.0
    %1511 = vmatpush1.msra.mxu0 0.0
    %1512 = vmatprep.subr.mxu0 0.0
    %1513 = vmatpush1.msra.mxu0 0.0
    %1514 = vmatprep.subr.mxu0 0.0
    %1515 = vmatpush1.msra.mxu0 0.0
    %1516 = vmatprep.mubr.f32.mxu0 0.0
    %1517 = vmatmul.mubr.f32.gmra.mrb[0].mxu0 %v1450
    %v1518 = vpop.f32.mrb[0].mxu0
    %v1519 = vadd.f32 0.0, %v1518
    %v1520 = vpop.f32.mrb[0].mxu0
    %1521 = vdwg.mxu0
    %v1522 = vld [vmem:[%s4 + $0x70] sm:$0xff]
    %v1524 = vsel %vm369, %v1443, 0
    %v1527 = vsel %vm369, %v1519, 0
    %1529 = vmatprep.subr.mxu0 0.0
    %1530 = vmatpush1.msra.mxu0 %v1522
    %1531 = vmatprep.subr.mxu0 0.0
    %1532 = vmatpush1.msra.mxu0 0.0
    %1533 = vmatprep.subr.mxu0 0.0
    %1534 = vmatpush1.msra.mxu0 0.0
    %1535 = vmatprep.subr.mxu0 0.0
    %1536 = vmatpush1.msra.mxu0 0.0
    %1537 = vmatprep.subr.mxu0 0.0
    %1538 = vmatpush1.msra.mxu0 0.0
    %1539 = vmatprep.subr.mxu0 0.0
    %1540 = vmatpush1.msra.mxu0 0.0
    %1541 = vmatprep.subr.mxu0 0.0
    %1542 = vmatpush1.msra.mxu0 0.0
    %1543 = vmatprep.subr.mxu0 0.0
    %1544 = vmatpush1.msra.mxu0 0.0
    %1545 = vmatprep.subr.mxu0 0.0
    %1546 = vmatpush1.msra.mxu0 0.0
    %1547 = vmatprep.subr.mxu0 0.0
    %1548 = vmatpush1.msra.mxu0 0.0
    %1549 = vmatprep.subr.mxu0 0.0
    %1550 = vmatpush1.msra.mxu0 0.0
    %1551 = vmatprep.subr.mxu0 0.0
    %1552 = vmatpush1.msra.mxu0 0.0
    %1553 = vmatprep.subr.mxu0 0.0
    %1554 = vmatpush1.msra.mxu0 0.0
    %1555 = vmatprep.subr.mxu0 0.0
    %1556 = vmatpush1.msra.mxu0 0.0
    %1557 = vmatprep.subr.mxu0 0.0
    %1558 = vmatpush1.msra.mxu0 0.0
    %1559 = vmatprep.subr.mxu0 0.0
    %1560 = vmatpush1.msra.mxu0 0.0
    %1561 = vmatprep.subr.mxu0 0.0
    %1562 = vmatpush1.msra.mxu0 0.0
    %1563 = vmatprep.subr.mxu0 0.0
    %1564 = vmatpush1.msra.mxu0 0.0
    %1565 = vmatprep.subr.mxu0 0.0
    %1566 = vmatpush1.msra.mxu0 0.0
    %1567 = vmatprep.subr.mxu0 0.0
    %1568 = vmatpush1.msra.mxu0 0.0
    %1569 = vmatprep.subr.mxu0 0.0
    %1570 = vmatpush1.msra.mxu0 0.0
    %1571 = vmatprep.subr.mxu0 0.0
    %1572 = vmatpush1.msra.mxu0 0.0
    %1573 = vmatprep.subr.mxu0 0.0
    %1574 = vmatpush1.msra.mxu0 0.0
    %1575 = vmatprep.subr.mxu0 0.0
    %1576 = vmatpush1.msra.mxu0 0.0
    %1577 = vmatprep.subr.mxu0 0.0
    %1578 = vmatpush1.msra.mxu0 0.0
    %1579 = vmatprep.subr.mxu0 0.0
    %1580 = vmatpush1.msra.mxu0 0.0
    %1581 = vmatprep.subr.mxu0 0.0
    %1582 = vmatpush1.msra.mxu0 0.0
    %1583 = vmatprep.subr.mxu0 0.0
    %1584 = vmatpush1.msra.mxu0 0.0
    %1585 = vmatprep.subr.mxu0 0.0
    %1586 = vmatpush1.msra.mxu0 0.0
    %1587 = vmatprep.subr.mxu0 0.0
    %1588 = vmatpush1.msra.mxu0 0.0
    %1589 = vmatprep.subr.mxu0 0.0
    %1590 = vmatpush1.msra.mxu0 0.0
    %1591 = vmatprep.subr.mxu0 0.0
    %1592 = vmatpush1.msra.mxu0 0.0
    %1593 = vmatprep.mubr.f32.mxu0 0.0
    %1594 = vmatmul.mubr.f32.gmra.mrb[0].mxu0 %v1524
    %v1595 = vpop.f32.mrb[0].mxu0
    %v1596 = vadd.f32 0.0, %v1595
    %v1597 = vpop.f32.mrb[0].mxu0
    %1598 = vmatprep.mubr.f32.mxu0 0.0
    %1599 = vmatmul.mubr.f32.gmra.mrb[0].mxu0 %v1527
    %v1600 = vpop.f32.mrb[0].mxu0
    %v1601 = vadd.f32 0.0, %v1600
    %v1602 = vpop.f32.mrb[0].mxu0
    %1603 = vdwg.mxu0
    %v1604 = vadd.f32 %v1182, %v1596
    %v1605 = vadd.f32 %v1187, %v1601
    %1606 = vrot.lane.b32.xlu0 %v153, 104
    %v1607 = vpop.permute.xlu0 %1606
    %1608 = vrot.lane.b32.xlu0 %v257, 104
    %v1609 = vpop.permute.xlu0 %1608
    %v1610 = vsel %vm369, %v1607, 0
    %v1612 = vsel %vm369, %v1609, 0
    %1614 = vmatprep.subr.mxu0 0.0
    %1615 = vmatpush1.xpose.msra.mxu0 %v1612
    %1616 = vmatprep.subr.mxu0 0.0
    %1617 = vmatpush1.xpose.msra.mxu0 0.0
    %1618 = vmatprep.subr.mxu0 0.0
    %1619 = vmatpush1.xpose.msra.mxu0 0.0
    %1620 = vmatprep.subr.mxu0 0.0
    %1621 = vmatpush1.xpose.msra.mxu0 0.0
    %1622 = vmatprep.subr.mxu0 0.0
    %1623 = vmatpush1.xpose.msra.mxu0 0.0
    %1624 = vmatprep.subr.mxu0 0.0
    %1625 = vmatpush1.xpose.msra.mxu0 0.0
    %1626 = vmatprep.subr.mxu0 0.0
    %1627 = vmatpush1.xpose.msra.mxu0 0.0
    %1628 = vmatprep.subr.mxu0 0.0
    %1629 = vmatpush1.xpose.msra.mxu0 0.0
    %1630 = vmatprep.subr.mxu0 0.0
    %1631 = vmatpush1.xpose.msra.mxu0 0.0
    %1632 = vmatprep.subr.mxu0 0.0
    %1633 = vmatpush1.xpose.msra.mxu0 0.0
    %1634 = vmatprep.subr.mxu0 0.0
    %1635 = vmatpush1.xpose.msra.mxu0 0.0
    %1636 = vmatprep.subr.mxu0 0.0
    %1637 = vmatpush1.xpose.msra.mxu0 0.0
    %1638 = vmatprep.subr.mxu0 0.0
    %1639 = vmatpush1.xpose.msra.mxu0 0.0
    %1640 = vmatprep.subr.mxu0 0.0
    %1641 = vmatpush1.xpose.msra.mxu0 0.0
    %1642 = vmatprep.subr.mxu0 0.0
    %1643 = vmatpush1.xpose.msra.mxu0 0.0
    %1644 = vmatprep.subr.mxu0 0.0
    %1645 = vmatpush1.xpose.msra.mxu0 0.0
    %1646 = vmatprep.subr.mxu0 0.0
    %1647 = vmatpush1.xpose.msra.mxu0 0.0
    %1648 = vmatprep.subr.mxu0 0.0
    %1649 = vmatpush1.xpose.msra.mxu0 0.0
    %1650 = vmatprep.subr.mxu0 0.0
    %1651 = vmatpush1.xpose.msra.mxu0 0.0
    %1652 = vmatprep.subr.mxu0 0.0
    %1653 = vmatpush1.xpose.msra.mxu0 0.0
    %1654 = vmatprep.subr.mxu0 0.0
    %1655 = vmatpush1.xpose.msra.mxu0 0.0
    %1656 = vmatprep.subr.mxu0 0.0
    %1657 = vmatpush1.xpose.msra.mxu0 0.0
    %1658 = vmatprep.subr.mxu0 0.0
    %1659 = vmatpush1.xpose.msra.mxu0 0.0
    %1660 = vmatprep.subr.mxu0 0.0
    %1661 = vmatpush1.xpose.msra.mxu0 0.0
    %1662 = vmatprep.subr.mxu0 0.0
    %1663 = vmatpush1.xpose.msra.mxu0 0.0
    %1664 = vmatprep.subr.mxu0 0.0
    %1665 = vmatpush1.xpose.msra.mxu0 0.0
    %1666 = vmatprep.subr.mxu0 0.0
    %1667 = vmatpush1.xpose.msra.mxu0 0.0
    %1668 = vmatprep.subr.mxu0 0.0
    %1669 = vmatpush1.xpose.msra.mxu0 0.0
    %1670 = vmatprep.subr.mxu0 0.0
    %1671 = vmatpush1.xpose.msra.mxu0 0.0
    %1672 = vmatprep.subr.mxu0 0.0
    %1673 = vmatpush1.xpose.msra.mxu0 0.0
    %1674 = vmatprep.subr.mxu0 0.0
    %1675 = vmatpush1.xpose.msra.mxu0 0.0
    %1676 = vmatprep.subr.mxu0 0.0
    %1677 = vmatpush1.xpose.msra.mxu0 0.0
    %1678 = vmatprep.mubr.f32.mxu0 0.0
    %1679 = vmatmul.mubr.f32.gmra.mrb[0].mxu0 %v1610
    %v1680 = vpop.f32.mrb[0].mxu0
    %v1681 = vadd.f32 %v28, %v1680
    %v1682 = vpop.f32.mrb[0].mxu0
    %1683 = vdwg.mxu0
    %1684 = vrot.lane.b32.xlu0 %v158, 104
    %v1685 = vpop.permute.xlu0 %1684
    %1686 = vrot.lane.b32.xlu0 %v262, 104
    %v1687 = vpop.permute.xlu0 %1686
    %v1688 = vsel %vm369, %v1685, 0
    %v1690 = vsel %vm369, %v1687, 0
    %1692 = vmatprep.subr.mxu0 0.0
    %1693 = vmatpush1.xpose.msra.mxu0 %v1690
    %1694 = vmatprep.subr.mxu0 0.0
    %1695 = vmatpush1.xpose.msra.mxu0 0.0
    %1696 = vmatprep.subr.mxu0 0.0
    %1697 = vmatpush1.xpose.msra.mxu0 0.0
    %1698 = vmatprep.subr.mxu0 0.0
    %1699 = vmatpush1.xpose.msra.mxu0 0.0
    %1700 = vmatprep.subr.mxu0 0.0
    %1701 = vmatpush1.xpose.msra.mxu0 0.0
    %1702 = vmatprep.subr.mxu0 0.0
    %1703 = vmatpush1.xpose.msra.mxu0 0.0
    %1704 = vmatprep.subr.mxu0 0.0
    %1705 = vmatpush1.xpose.msra.mxu0 0.0
    %1706 = vmatprep.subr.mxu0 0.0
    %1707 = vmatpush1.xpose.msra.mxu0 0.0
    %1708 = vmatprep.subr.mxu0 0.0
    %1709 = vmatpush1.xpose.msra.mxu0 0.0
    %1710 = vmatprep.subr.mxu0 0.0
    %1711 = vmatpush1.xpose.msra.mxu0 0.0
    %1712 = vmatprep.subr.mxu0 0.0
    %1713 = vmatpush1.xpose.msra.mxu0 0.0
    %1714 = vmatprep.subr.mxu0 0.0
    %1715 = vmatpush1.xpose.msra.mxu0 0.0
    %1716 = vmatprep.subr.mxu0 0.0
    %1717 = vmatpush1.xpose.msra.mxu0 0.0
    %1718 = vmatprep.subr.mxu0 0.0
    %1719 = vmatpush1.xpose.msra.mxu0 0.0
    %1720 = vmatprep.subr.mxu0 0.0
    %1721 = vmatpush1.xpose.msra.mxu0 0.0
    %1722 = vmatprep.subr.mxu0 0.0
    %1723 = vmatpush1.xpose.msra.mxu0 0.0
    %1724 = vmatprep.subr.mxu0 0.0
    %1725 = vmatpush1.xpose.msra.mxu0 0.0
    %1726 = vmatprep.subr.mxu0 0.0
    %1727 = vmatpush1.xpose.msra.mxu0 0.0
    %1728 = vmatprep.subr.mxu0 0.0
    %1729 = vmatpush1.xpose.msra.mxu0 0.0
    %1730 = vmatprep.subr.mxu0 0.0
    %1731 = vmatpush1.xpose.msra.mxu0 0.0
    %1732 = vmatprep.subr.mxu0 0.0
    %1733 = vmatpush1.xpose.msra.mxu0 0.0
    %1734 = vmatprep.subr.mxu0 0.0
    %1735 = vmatpush1.xpose.msra.mxu0 0.0
    %1736 = vmatprep.subr.mxu0 0.0
    %1737 = vmatpush1.xpose.msra.mxu0 0.0
    %1738 = vmatprep.subr.mxu0 0.0
    %1739 = vmatpush1.xpose.msra.mxu0 0.0
    %1740 = vmatprep.subr.mxu0 0.0
    %1741 = vmatpush1.xpose.msra.mxu0 0.0
    %1742 = vmatprep.subr.mxu0 0.0
    %1743 = vmatpush1.xpose.msra.mxu0 0.0
    %1744 = vmatprep.subr.mxu0 0.0
    %1745 = vmatpush1.xpose.msra.mxu0 0.0
    %1746 = vmatprep.subr.mxu0 0.0
    %1747 = vmatpush1.xpose.msra.mxu0 0.0
    %1748 = vmatprep.subr.mxu0 0.0
    %1749 = vmatpush1.xpose.msra.mxu0 0.0
    %1750 = vmatprep.subr.mxu0 0.0
    %1751 = vmatpush1.xpose.msra.mxu0 0.0
    %1752 = vmatprep.subr.mxu0 0.0
    %1753 = vmatpush1.xpose.msra.mxu0 0.0
    %1754 = vmatprep.subr.mxu0 0.0
    %1755 = vmatpush1.xpose.msra.mxu0 0.0
    %1756 = vmatprep.mubr.f32.mxu0 0.0
    %1757 = vmatmul.mubr.f32.gmra.mrb[0].mxu0 %v1688
    %v1758 = vpop.f32.mrb[0].mxu0
    %v1759 = vadd.f32 %v28, %v1758
    %v1760 = vpop.f32.mrb[0].mxu0
    %1761 = vdwg.mxu0
    %v1762 = vmul.f32 %v1681, 0.35355338
    %v1763 = vmul.f32 %v1759, 0.35355338
    %v1764 = vsel %vm369, %v1762, -inf
    %1765 = vmax.xlane.f32.xlu0 %v1764
    %v1766 = vpop.xlane.xlu0 %1765
    %v1767 = vsel %vm369, %v1763, -inf
    %1768 = vmax.xlane.f32.xlu0 %v1767
    %v1769 = vpop.xlane.xlu0 %1768
    %v1770 = vsub.f32 %v1762, %v1766
    %v1771 = vsub.f32 %v1763, %v1769
    %v1772 = vmul.f32 %v1770, 1.442695
    %v1773 = vpow.pop %v1772
    %v1774 = vmul.f32 %v1771, 1.442695
    %v1775 = vpow.pop %v1774
    %v1776 = vsel %vm369, %v1773, 0.0
    %1777 = vadd.xlane.f32.xlu0 %v1776
    %v1778 = vpop.xlane.xlu0 %1777
    %v1779 = vsel %vm369, %v1775, 0.0
    %1780 = vadd.xlane.f32.xlu0 %v1779
    %v1781 = vpop.xlane.xlu0 %1780
    %v1782 = vrcp.pop %v1778
    %v1783 = vrcp.pop %v1781
    %v1784 = vmul.f32 %v1773, %v1782
    %v1785 = vmul.f32 %v1775, %v1783
    %1786 = vrot.lane.b32.xlu0 %v361, 104
    %v1787 = vpop.permute.xlu0 %1786
    %v1790 = vsel %vm369, %v1784, 0
    %1792 = vmatprep.subr.mxu0 0.0
    %1793 = vmatpush1.msra.mxu0 %v1787
    %1794 = vmatprep.subr.mxu0 0.0
    %1795 = vmatpush1.msra.mxu0 0.0
    %1796 = vmatprep.subr.mxu0 0.0
    %1797 = vmatpush1.msra.mxu0 0.0
    %1798 = vmatprep.subr.mxu0 0.0
    %1799 = vmatpush1.msra.mxu0 0.0
    %1800 = vmatprep.subr.mxu0 0.0
    %1801 = vmatpush1.msra.mxu0 0.0
    %1802 = vmatprep.subr.mxu0 0.0
    %1803 = vmatpush1.msra.mxu0 0.0
    %1804 = vmatprep.subr.mxu0 0.0
    %1805 = vmatpush1.msra.mxu0 0.0
    %1806 = vmatprep.subr.mxu0 0.0
    %1807 = vmatpush1.msra.mxu0 0.0
    %1808 = vmatprep.subr.mxu0 0.0
    %1809 = vmatpush1.msra.mxu0 0.0
    %1810 = vmatprep.subr.mxu0 0.0
    %1811 = vmatpush1.msra.mxu0 0.0
    %1812 = vmatprep.subr.mxu0 0.0
    %1813 = vmatpush1.msra.mxu0 0.0
    %1814 = vmatprep.subr.mxu0 0.0
    %1815 = vmatpush1.msra.mxu0 0.0
    %1816 = vmatprep.subr.mxu0 0.0
    %1817 = vmatpush1.msra.mxu0 0.0
    %1818 = vmatprep.subr.mxu0 0.0
    %1819 = vmatpush1.msra.mxu0 0.0
    %1820 = vmatprep.subr.mxu0 0.0
    %1821 = vmatpush1.msra.mxu0 0.0
    %1822 = vmatprep.subr.mxu0 0.0
    %1823 = vmatpush1.msra.mxu0 0.0
    %1824 = vmatprep.subr.mxu0 0.0
    %1825 = vmatpush1.msra.mxu0 0.0
    %1826 = vmatprep.subr.mxu0 0.0
    %1827 = vmatpush1.msra.mxu0 0.0
    %1828 = vmatprep.subr.mxu0 0.0
    %1829 = vmatpush1.msra.mxu0 0.0
    %1830 = vmatprep.subr.mxu0 0.0
    %1831 = vmatpush1.msra.mxu0 0.0
    %1832 = vmatprep.subr.mxu0 0.0
    %1833 = vmatpush1.msra.mxu0 0.0
    %1834 = vmatprep.subr.mxu0 0.0
    %1835 = vmatpush1.msra.mxu0 0.0
    %1836 = vmatprep.subr.mxu0 0.0
    %1837 = vmatpush1.msra.mxu0 0.0
    %1838 = vmatprep.subr.mxu0 0.0
    %1839 = vmatpush1.msra.mxu0 0.0
    %1840 = vmatprep.subr.mxu0 0.0
    %1841 = vmatpush1.msra.mxu0 0.0
    %1842 = vmatprep.subr.mxu0 0.0
    %1843 = vmatpush1.msra.mxu0 0.0
    %1844 = vmatprep.subr.mxu0 0.0
    %1845 = vmatpush1.msra.mxu0 0.0
    %1846 = vmatprep.subr.mxu0 0.0
    %1847 = vmatpush1.msra.mxu0 0.0
    %1848 = vmatprep.subr.mxu0 0.0
    %1849 = vmatpush1.msra.mxu0 0.0
    %1850 = vmatprep.subr.mxu0 0.0
    %1851 = vmatpush1.msra.mxu0 0.0
    %1852 = vmatprep.subr.mxu0 0.0
    %1853 = vmatpush1.msra.mxu0 0.0
    %1854 = vmatprep.subr.mxu0 0.0
    %1855 = vmatpush1.msra.mxu0 0.0
    %1856 = vmatprep.mubr.f32.mxu0 0.0
    %1857 = vmatmul.mubr.f32.gmra.mrb[0].mxu0 %v1790
    %v1858 = vpop.f32.mrb[0].mxu0
    %v1859 = vadd.f32 0.0, %v1858
    %v1860 = vpop.f32.mrb[0].mxu0
    %1861 = vdwg.mxu0
    %1862 = vrot.lane.b32.xlu0 %v366, 104
    %v1863 = vpop.permute.xlu0 %1862
    %v1866 = vsel %vm369, %v1785, 0
    %1868 = vmatprep.subr.mxu0 0.0
    %1869 = vmatpush1.msra.mxu0 %v1863
    %1870 = vmatprep.subr.mxu0 0.0
    %1871 = vmatpush1.msra.mxu0 0.0
    %1872 = vmatprep.subr.mxu0 0.0
    %1873 = vmatpush1.msra.mxu0 0.0
    %1874 = vmatprep.subr.mxu0 0.0
    %1875 = vmatpush1.msra.mxu0 0.0
    %1876 = vmatprep.subr.mxu0 0.0
    %1877 = vmatpush1.msra.mxu0 0.0
    %1878 = vmatprep.subr.mxu0 0.0
    %1879 = vmatpush1.msra.mxu0 0.0
    %1880 = vmatprep.subr.mxu0 0.0
    %1881 = vmatpush1.msra.mxu0 0.0
    %1882 = vmatprep.subr.mxu0 0.0
    %1883 = vmatpush1.msra.mxu0 0.0
    %1884 = vmatprep.subr.mxu0 0.0
    %1885 = vmatpush1.msra.mxu0 0.0
    %1886 = vmatprep.subr.mxu0 0.0
    %1887 = vmatpush1.msra.mxu0 0.0
    %1888 = vmatprep.subr.mxu0 0.0
    %1889 = vmatpush1.msra.mxu0 0.0
    %1890 = vmatprep.subr.mxu0 0.0
    %1891 = vmatpush1.msra.mxu0 0.0
    %1892 = vmatprep.subr.mxu0 0.0
    %1893 = vmatpush1.msra.mxu0 0.0
    %1894 = vmatprep.subr.mxu0 0.0
    %1895 = vmatpush1.msra.mxu0 0.0
    %1896 = vmatprep.subr.mxu0 0.0
    %1897 = vmatpush1.msra.mxu0 0.0
    %1898 = vmatprep.subr.mxu0 0.0
    %1899 = vmatpush1.msra.mxu0 0.0
    %1900 = vmatprep.subr.mxu0 0.0
    %1901 = vmatpush1.msra.mxu0 0.0
    %1902 = vmatprep.subr.mxu0 0.0
    %1903 = vmatpush1.msra.mxu0 0.0
    %1904 = vmatprep.subr.mxu0 0.0
    %1905 = vmatpush1.msra.mxu0 0.0
    %1906 = vmatprep.subr.mxu0 0.0
    %1907 = vmatpush1.msra.mxu0 0.0
    %1908 = vmatprep.subr.mxu0 0.0
    %1909 = vmatpush1.msra.mxu0 0.0
    %1910 = vmatprep.subr.mxu0 0.0
    %1911 = vmatpush1.msra.mxu0 0.0
    %1912 = vmatprep.subr.mxu0 0.0
    %1913 = vmatpush1.msra.mxu0 0.0
    %1914 = vmatprep.subr.mxu0 0.0
    %1915 = vmatpush1.msra.mxu0 0.0
    %1916 = vmatprep.subr.mxu0 0.0
    %1917 = vmatpush1.msra.mxu0 0.0
    %1918 = vmatprep.subr.mxu0 0.0
    %1919 = vmatpush1.msra.mxu0 0.0
    %1920 = vmatprep.subr.mxu0 0.0
    %1921 = vmatpush1.msra.mxu0 0.0
    %1922 = vmatprep.subr.mxu0 0.0
    %1923 = vmatpush1.msra.mxu0 0.0
    %1924 = vmatprep.subr.mxu0 0.0
    %1925 = vmatpush1.msra.mxu0 0.0
    %1926 = vmatprep.subr.mxu0 0.0
    %1927 = vmatpush1.msra.mxu0 0.0
    %1928 = vmatprep.subr.mxu0 0.0
    %1929 = vmatpush1.msra.mxu0 0.0
    %1930 = vmatprep.subr.mxu0 0.0
    %1931 = vmatpush1.msra.mxu0 0.0
    %1932 = vmatprep.mubr.f32.mxu0 0.0
    %1933 = vmatmul.mubr.f32.gmra.mrb[0].mxu0 %v1866
    %v1934 = vpop.f32.mrb[0].mxu0
    %v1935 = vadd.f32 0.0, %v1934
    %v1936 = vpop.f32.mrb[0].mxu0
    %1937 = vdwg.mxu0
    %v1938 = vld [vmem:[%s4 + $0x78] sm:$0xff]
    %v1940 = vsel %vm369, %v1859, 0
    %v1943 = vsel %vm369, %v1935, 0
    %1945 = vmatprep.subr.mxu0 0.0
    %1946 = vmatpush1.msra.mxu0 %v1938
    %1947 = vmatprep.subr.mxu0 0.0
    %1948 = vmatpush1.msra.mxu0 0.0
    %1949 = vmatprep.subr.mxu0 0.0
    %1950 = vmatpush1.msra.mxu0 0.0
    %1951 = vmatprep.subr.mxu0 0.0
    %1952 = vmatpush1.msra.mxu0 0.0
    %1953 = vmatprep.subr.mxu0 0.0
    %1954 = vmatpush1.msra.mxu0 0.0
    %1955 = vmatprep.subr.mxu0 0.0
    %1956 = vmatpush1.msra.mxu0 0.0
    %1957 = vmatprep.subr.mxu0 0.0
    %1958 = vmatpush1.msra.mxu0 0.0
    %1959 = vmatprep.subr.mxu0 0.0
    %1960 = vmatpush1.msra.mxu0 0.0
    %1961 = vmatprep.subr.mxu0 0.0
    %1962 = vmatpush1.msra.mxu0 0.0
    %1963 = vmatprep.subr.mxu0 0.0
    %1964 = vmatpush1.msra.mxu0 0.0
    %1965 = vmatprep.subr.mxu0 0.0
    %1966 = vmatpush1.msra.mxu0 0.0
    %1967 = vmatprep.subr.mxu0 0.0
    %1968 = vmatpush1.msra.mxu0 0.0
    %1969 = vmatprep.subr.mxu0 0.0
    %1970 = vmatpush1.msra.mxu0 0.0
    %1971 = vmatprep.subr.mxu0 0.0
    %1972 = vmatpush1.msra.mxu0 0.0
    %1973 = vmatprep.subr.mxu0 0.0
    %1974 = vmatpush1.msra.mxu0 0.0
    %1975 = vmatprep.subr.mxu0 0.0
    %1976 = vmatpush1.msra.mxu0 0.0
    %1977 = vmatprep.subr.mxu0 0.0
    %1978 = vmatpush1.msra.mxu0 0.0
    %1979 = vmatprep.subr.mxu0 0.0
    %1980 = vmatpush1.msra.mxu0 0.0
    %1981 = vmatprep.subr.mxu0 0.0
    %1982 = vmatpush1.msra.mxu0 0.0
    %1983 = vmatprep.subr.mxu0 0.0
    %1984 = vmatpush1.msra.mxu0 0.0
    %1985 = vmatprep.subr.mxu0 0.0
    %1986 = vmatpush1.msra.mxu0 0.0
    %1987 = vmatprep.subr.mxu0 0.0
    %1988 = vmatpush1.msra.mxu0 0.0
    %1989 = vmatprep.subr.mxu0 0.0
    %1990 = vmatpush1.msra.mxu0 0.0
    %1991 = vmatprep.subr.mxu0 0.0
    %1992 = vmatpush1.msra.mxu0 0.0
    %1993 = vmatprep.subr.mxu0 0.0
    %1994 = vmatpush1.msra.mxu0 0.0
    %1995 = vmatprep.subr.mxu0 0.0
    %1996 = vmatpush1.msra.mxu0 0.0
    %1997 = vmatprep.subr.mxu0 0.0
    %1998 = vmatpush1.msra.mxu0 0.0
    %1999 = vmatprep.subr.mxu0 0.0
    %2000 = vmatpush1.msra.mxu0 0.0
    %2001 = vmatprep.subr.mxu0 0.0
    %2002 = vmatpush1.msra.mxu0 0.0
    %2003 = vmatprep.subr.mxu0 0.0
    %2004 = vmatpush1.msra.mxu0 0.0
    %2005 = vmatprep.subr.mxu0 0.0
    %2006 = vmatpush1.msra.mxu0 0.0
    %2007 = vmatprep.subr.mxu0 0.0
    %2008 = vmatpush1.msra.mxu0 0.0
    %2009 = vmatprep.mubr.f32.mxu0 0.0
    %2010 = vmatmul.mubr.f32.gmra.mrb[0].mxu0 %v1940
    %v2011 = vpop.f32.mrb[0].mxu0
    %v2012 = vadd.f32 0.0, %v2011
    %v2013 = vpop.f32.mrb[0].mxu0
    %2014 = vmatprep.mubr.f32.mxu0 0.0
    %2015 = vmatmul.mubr.f32.gmra.mrb[0].mxu0 %v1943
    %v2016 = vpop.f32.mrb[0].mxu0
    %v2017 = vadd.f32 0.0, %v2016
    %v2018 = vpop.f32.mrb[0].mxu0
    %2019 = vdwg.mxu0
    %v2020 = vadd.f32 %v1604, %v2012
    %v2021 = vadd.f32 %v1605, %v2017
    %v2022 = vld [vmem:[%s5 + $0x9] sm:$0x1]
    %v2023 = vlaneseq
    %v2024 = vshrl.u32 %v2023, 7
    %v2025 = vsub.s32 0, %v2024
    %v2026 = vrot.slane %v2022, %v2025
    %v2027 = vadd.f32 %v2020, %v2026
    %v2028 = vadd.f32 %v2021, %v2026
    %v2029 = vadd.f32 %v2027, %v26
    %v2030 = vadd.f32 %v2028, %v27
    %v2031 = vld [vmem:[%s3] sm:$0xff]
    %v2032 = vld [vmem:[%s5 + $0xa] sm:$0x1]
    %v2033 = vld [vmem:[%s5 + $0xb] sm:$0x1]
    %v2034 = vsel %vm31, %v2029, 0.0
    %2035 = vadd.xlane.f32.xlu0 %v2034
    %v2036 = vpop.xlane.xlu0 %2035
    %v2037 = vsel %vm31, %v2030, 0.0
    %2038 = vadd.xlane.f32.xlu0 %v2037
    %v2039 = vpop.xlane.xlu0 %2038
    %v2040 = vmul.f32 %v2036, %v38
    %v2041 = vmul.f32 %v2039, %v38
    %v2042 = vsub.f32 %v2029, %v2040
    %v2043 = vsub.f32 %v2030, %v2041
    %v2044 = vmul.f32 %v2042, %v2042
    %v2045 = vmul.f32 %v2043, %v2043
    %v2046 = vsel %vm31, %v2044, 0.0
    %2047 = vadd.xlane.f32.xlu0 %v2046
    %v2048 = vpop.xlane.xlu0 %2047
    %v2049 = vsel %vm31, %v2045, 0.0
    %2050 = vadd.xlane.f32.xlu0 %v2049
    %v2051 = vpop.xlane.xlu0 %2050
    %v2052 = vmul.f32 %v2048, %v38
    %v2053 = vmul.f32 %v2051, %v38
    %v2054 = vadd.f32 %v2052, 1e-05
    %v2055 = vadd.f32 %v2053, 1e-05
    %v2056 = vrsqrt.pop %v2054
    %v2057 = vrsqrt.pop %v2055
    %v2058 = vmul.f32 %v2042, %v2056
    %v2059 = vmul.f32 %v2043, %v2057
    %v2060 = vlaneseq
    %v2061 = vshrl.u32 %v2060, 7
    %v2062 = vsub.s32 0, %v2061
    %v2063 = vrot.slane %v2032, %v2062
    %v2064 = vmul.f32 %v2058, %v2063
    %v2065 = vmul.f32 %v2059, %v2063
    %v2066 = vlaneseq
    %v2067 = vshrl.u32 %v2066, 7
    %v2068 = vsub.s32 0, %v2067
    %v2069 = vrot.slane %v2033, %v2068
    %v2070 = vadd.f32 %v2064, %v2069
    %v2071 = vadd.f32 %v2065, %v2069
    %v2072 = vld [vmem:[%s4 + $0x80] sm:$0xff]
    %v2073 = vld [vmem:[%s4 + $0x88] sm:$0xff]
    %v2074 = vld [vmem:[%s4 + $0x90] sm:$0xff]
    %v2075 = vld [vmem:[%s4 + $0x98] sm:$0xff]
    %v2076 = vld [vmem:[%s5 + $0x10] sm:$0x1]
    %v2077 = vlaneseq
    %v2078 = vshrl.u32 %v2077, 7
    %v2079 = vsub.s32 0, %v2078
    %v2080 = vrot.slane %v2076, %v2079
    %v2082 = vsel %vm31, %v2070, 0
    %v2085 = vsel %vm31, %v2071, 0
    %2087 = vmatprep.subr.mxu0 0.0
    %2088 = vmatpush1.msra.mxu0 %v2072
    %2089 = vmatprep.subr.mxu0 0.0
    %2090 = vmatpush1.msra.mxu0 %v2073
    %2091 = vmatprep.subr.mxu0 0.0
    %2092 = vmatpush1.msra.mxu0 %v2074
    %2093 = vmatprep.subr.mxu0 0.0
    %2094 = vmatpush1.msra.mxu0 %v2075
    %2095 = vmatprep.subr.mxu0 0.0
    %2096 = vmatpush1.msra.mxu0 0.0
    %2097 = vmatprep.subr.mxu0 0.0
    %2098 = vmatpush1.msra.mxu0 0.0
    %2099 = vmatprep.subr.mxu0 0.0
    %2100 = vmatpush1.msra.mxu0 0.0
    %2101 = vmatprep.subr.mxu0 0.0
    %2102 = vmatpush1.msra.mxu0 0.0
    %2103 = vmatprep.subr.mxu0 0.0
    %2104 = vmatpush1.msra.mxu0 0.0
    %2105 = vmatprep.subr.mxu0 0.0
    %2106 = vmatpush1.msra.mxu0 0.0
    %2107 = vmatprep.subr.mxu0 0.0
    %2108 = vmatpush1.msra.mxu0 0.0
    %2109 = vmatprep.subr.mxu0 0.0
    %2110 = vmatpush1.msra.mxu0 0.0
    %2111 = vmatprep.subr.mxu0 0.0
    %2112 = vmatpush1.msra.mxu0 0.0
    %2113 = vmatprep.subr.mxu0 0.0
    %2114 = vmatpush1.msra.mxu0 0.0
    %2115 = vmatprep.subr.mxu0 0.0
    %2116 = vmatpush1.msra.mxu0 0.0
    %2117 = vmatprep.subr.mxu0 0.0
    %2118 = vmatpush1.msra.mxu0 0.0
    %2119 = vmatprep.subr.mxu0 0.0
    %2120 = vmatpush1.msra.mxu0 0.0
    %2121 = vmatprep.subr.mxu0 0.0
    %2122 = vmatpush1.msra.mxu0 0.0
    %2123 = vmatprep.subr.mxu0 0.0
    %2124 = vmatpush1.msra.mxu0 0.0
    %2125 = vmatprep.subr.mxu0 0.0
    %2126 = vmatpush1.msra.mxu0 0.0
    %2127 = vmatprep.subr.mxu0 0.0
    %2128 = vmatpush1.msra.mxu0 0.0
    %2129 = vmatprep.subr.mxu0 0.0
    %2130 = vmatpush1.msra.mxu0 0.0
    %2131 = vmatprep.subr.mxu0 0.0
    %2132 = vmatpush1.msra.mxu0 0.0
    %2133 = vmatprep.subr.mxu0 0.0
    %2134 = vmatpush1.msra.mxu0 0.0
    %2135 = vmatprep.subr.mxu0 0.0
    %2136 = vmatpush1.msra.mxu0 0.0
    %2137 = vmatprep.subr.mxu0 0.0
    %2138 = vmatpush1.msra.mxu0 0.0
    %2139 = vmatprep.subr.mxu0 0.0
    %2140 = vmatpush1.msra.mxu0 0.0
    %2141 = vmatprep.subr.mxu0 0.0
    %2142 = vmatpush1.msra.mxu0 0.0
    %2143 = vmatprep.subr.mxu0 0.0
    %2144 = vmatpush1.msra.mxu0 0.0
    %2145 = vmatprep.subr.mxu0 0.0
    %2146 = vmatpush1.msra.mxu0 0.0
    %2147 = vmatprep.subr.mxu0 0.0
    %2148 = vmatpush1.msra.mxu0 0.0
    %2149 = vmatprep.subr.mxu0 0.0
    %2150 = vmatpush1.msra.mxu0 0.0
    %2151 = vmatprep.mubr.f32.mxu0 0.0
    %2152 = vmatmul.mubr.f32.gmra.mrb[0].mxu0 %v2082
    %v2153 = vpop.f32.mrb[0].mxu0
    %v2154 = vadd.f32 %v2080, %v2153
    %v2155 = vpop.f32.mrb[0].mxu0
    %2156 = vmatprep.mubr.f32.mxu0 0.0
    %2157 = vmatmul.mubr.f32.gmra.mrb[0].mxu0 %v2085
    %v2158 = vpop.f32.mrb[0].mxu0
    %v2159 = vadd.f32 %v2080, %v2158
    %v2160 = vpop.f32.mrb[0].mxu0
    %2161 = vdwg.mxu0
    %v2162 = vld [vmem:[%s5 + $0xc] sm:$0x1]
    %v2163 = vld [vmem:[%s5 + $0xd] sm:$0x1]
    %v2164 = vsel %vm31, %v24, 0.0
    %2165 = vadd.xlane.f32.xlu0 %v2164
    %v2166 = vpop.xlane.xlu0 %2165
    %v2167 = vsel %vm31, %v25, 0.0
    %2168 = vadd.xlane.f32.xlu0 %v2167
    %v2169 = vpop.xlane.xlu0 %2168
    %v2170 = vmul.f32 %v2166, %v38
    %v2171 = vmul.f32 %v2169, %v38
    %v2172 = vsub.f32 %v24, %v2170
    %v2173 = vsub.f32 %v25, %v2171
    %v2174 = vmul.f32 %v2172, %v2172
    %v2175 = vmul.f32 %v2173, %v2173
    %v2176 = vsel %vm31, %v2174, 0.0
    %2177 = vadd.xlane.f32.xlu0 %v2176
    %v2178 = vpop.xlane.xlu0 %2177
    %v2179 = vsel %vm31, %v2175, 0.0
    %2180 = vadd.xlane.f32.xlu0 %v2179
    %v2181 = vpop.xlane.xlu0 %2180
    %v2182 = vmul.f32 %v2178, %v38
    %v2183 = vmul.f32 %v2181, %v38
    %v2184 = vadd.f32 %v2182, 1e-05
    %v2185 = vadd.f32 %v2183, 1e-05
    %v2186 = vrsqrt.pop %v2184
    %v2187 = vrsqrt.pop %v2185
    %v2188 = vmul.f32 %v2172, %v2186
    %v2189 = vmul.f32 %v2173, %v2187
    %v2190 = vlaneseq
    %v2191 = vshrl.u32 %v2190, 7
    %v2192 = vsub.s32 0, %v2191
    %v2193 = vrot.slane %v2162, %v2192
    %v2194 = vmul.f32 %v2188, %v2193
    %v2195 = vmul.f32 %v2189, %v2193
    %v2196 = vlaneseq
    %v2197 = vshrl.u32 %v2196, 7
    %v2198 = vsub.s32 0, %v2197
    %v2199 = vrot.slane %v2163, %v2198
    %v2200 = vadd.f32 %v2194, %v2199
    %v2201 = vadd.f32 %v2195, %v2199
    %v2202 = vld [vmem:[%s4 + $0xa0] sm:$0xff]
    %v2203 = vld [vmem:[%s4 + $0xa8] sm:$0xff]
    %v2204 = vld [vmem:[%s4 + $0xb0] sm:$0xff]
    %v2205 = vld [vmem:[%s4 + $0xb8] sm:$0xff]
    %v2206 = vld [vmem:[%s5 + $0x11] sm:$0x1]
    %v2207 = vlaneseq
    %v2208 = vshrl.u32 %v2207, 7
    %v2209 = vsub.s32 0, %v2208
    %v2210 = vrot.slane %v2206, %v2209
    %v2212 = vsel %vm31, %v2200, 0
    %v2215 = vsel %vm31, %v2201, 0
    %2217 = vmatprep.subr.mxu0 0.0
    %2218 = vmatpush1.msra.mxu0 %v2202
    %2219 = vmatprep.subr.mxu0 0.0
    %2220 = vmatpush1.msra.mxu0 %v2203
    %2221 = vmatprep.subr.mxu0 0.0
    %2222 = vmatpush1.msra.mxu0 %v2204
    %2223 = vmatprep.subr.mxu0 0.0
    %2224 = vmatpush1.msra.mxu0 %v2205
    %2225 = vmatprep.subr.mxu0 0.0
    %2226 = vmatpush1.msra.mxu0 0.0
    %2227 = vmatprep.subr.mxu0 0.0
    %2228 = vmatpush1.msra.mxu0 0.0
    %2229 = vmatprep.subr.mxu0 0.0
    %2230 = vmatpush1.msra.mxu0 0.0
    %2231 = vmatprep.subr.mxu0 0.0
    %2232 = vmatpush1.msra.mxu0 0.0
    %2233 = vmatprep.subr.mxu0 0.0
    %2234 = vmatpush1.msra.mxu0 0.0
    %2235 = vmatprep.subr.mxu0 0.0
    %2236 = vmatpush1.msra.mxu0 0.0
    %2237 = vmatprep.subr.mxu0 0.0
    %2238 = vmatpush1.msra.mxu0 0.0
    %2239 = vmatprep.subr.mxu0 0.0
    %2240 = vmatpush1.msra.mxu0 0.0
    %2241 = vmatprep.subr.mxu0 0.0
    %2242 = vmatpush1.msra.mxu0 0.0
    %2243 = vmatprep.subr.mxu0 0.0
    %2244 = vmatpush1.msra.mxu0 0.0
    %2245 = vmatprep.subr.mxu0 0.0
    %2246 = vmatpush1.msra.mxu0 0.0
    %2247 = vmatprep.subr.mxu0 0.0
    %2248 = vmatpush1.msra.mxu0 0.0
    %2249 = vmatprep.subr.mxu0 0.0
    %2250 = vmatpush1.msra.mxu0 0.0
    %2251 = vmatprep.subr.mxu0 0.0
    %2252 = vmatpush1.msra.mxu0 0.0
    %2253 = vmatprep.subr.mxu0 0.0
    %2254 = vmatpush1.msra.mxu0 0.0
    %2255 = vmatprep.subr.mxu0 0.0
    %2256 = vmatpush1.msra.mxu0 0.0
    %2257 = vmatprep.subr.mxu0 0.0
    %2258 = vmatpush1.msra.mxu0 0.0
    %2259 = vmatprep.subr.mxu0 0.0
    %2260 = vmatpush1.msra.mxu0 0.0
    %2261 = vmatprep.subr.mxu0 0.0
    %2262 = vmatpush1.msra.mxu0 0.0
    %2263 = vmatprep.subr.mxu0 0.0
    %2264 = vmatpush1.msra.mxu0 0.0
    %2265 = vmatprep.subr.mxu0 0.0
    %2266 = vmatpush1.msra.mxu0 0.0
    %2267 = vmatprep.subr.mxu0 0.0
    %2268 = vmatpush1.msra.mxu0 0.0
    %2269 = vmatprep.subr.mxu0 0.0
    %2270 = vmatpush1.msra.mxu0 0.0
    %2271 = vmatprep.subr.mxu0 0.0
    %2272 = vmatpush1.msra.mxu0 0.0
    %2273 = vmatprep.subr.mxu0 0.0
    %2274 = vmatpush1.msra.mxu0 0.0
    %2275 = vmatprep.subr.mxu0 0.0
    %2276 = vmatpush1.msra.mxu0 0.0
    %2277 = vmatprep.subr.mxu0 0.0
    %2278 = vmatpush1.msra.mxu0 0.0
    %2279 = vmatprep.subr.mxu0 0.0
    %2280 = vmatpush1.msra.mxu0 0.0
    %2281 = vmatprep.mubr.f32.mxu0 0.0
    %2282 = vmatmul.mubr.f32.gmra.mrb[0].mxu0 %v2212
    %v2283 = vpop.f32.mrb[0].mxu0
    %v2284 = vadd.f32 %v2210, %v2283
    %v2285 = vpop.f32.mrb[0].mxu0
    %2286 = vmatprep.mubr.f32.mxu0 0.0
    %2287 = vmatmul.mubr.f32.gmra.mrb[0].mxu0 %v2215
    %v2288 = vpop.f32.mrb[0].mxu0
    %v2289 = vadd.f32 %v2210, %v2288
    %v2290 = vpop.f32.mrb[0].mxu0
    %2291 = vdwg.mxu0
    %v2292 = vld [vmem:[%s5 + $0xe] sm:$0x1]
    %v2293 = vld [vmem:[%s5 + $0xf] sm:$0x1]
    %v2294 = vlaneseq
    %v2295 = vshrl.u32 %v2294, 7
    %v2296 = vsub.s32 0, %v2295
    %v2297 = vrot.slane %v2292, %v2296
    %v2298 = vmul.f32 %v2188, %v2297
    %v2299 = vmul.f32 %v2189, %v2297
    %v2300 = vlaneseq
    %v2301 = vshrl.u32 %v2300, 7
    %v2302 = vsub.s32 0, %v2301
    %v2303 = vrot.slane %v2293, %v2302
    %v2304 = vadd.f32 %v2298, %v2303
    %v2305 = vadd.f32 %v2299, %v2303
    %v2306 = vld [vmem:[%s4 + $0xc0] sm:$0xff]
    %v2307 = vld [vmem:[%s4 + $0xc8] sm:$0xff]
    %v2308 = vld [vmem:[%s4 + $0xd0] sm:$0xff]
    %v2309 = vld [vmem:[%s4 + $0xd8] sm:$0xff]
    %v2310 = vld [vmem:[%s5 + $0x12] sm:$0x1]
    %v2311 = vlaneseq
    %v2312 = vshrl.u32 %v2311, 7
    %v2313 = vsub.s32 0, %v2312
    %v2314 = vrot.slane %v2310, %v2313
    %v2316 = vsel %vm31, %v2304, 0
    %v2319 = vsel %vm31, %v2305, 0
    %2321 = vmatprep.subr.mxu0 0.0
    %2322 = vmatpush1.msra.mxu0 %v2306
    %2323 = vmatprep.subr.mxu0 0.0
    %2324 = vmatpush1.msra.mxu0 %v2307
    %2325 = vmatprep.subr.mxu0 0.0
    %2326 = vmatpush1.msra.mxu0 %v2308
    %2327 = vmatprep.subr.mxu0 0.0
    %2328 = vmatpush1.msra.mxu0 %v2309
    %2329 = vmatprep.subr.mxu0 0.0
    %2330 = vmatpush1.msra.mxu0 0.0
    %2331 = vmatprep.subr.mxu0 0.0
    %2332 = vmatpush1.msra.mxu0 0.0
    %2333 = vmatprep.subr.mxu0 0.0
    %2334 = vmatpush1.msra.mxu0 0.0
    %2335 = vmatprep.subr.mxu0 0.0
    %2336 = vmatpush1.msra.mxu0 0.0
    %2337 = vmatprep.subr.mxu0 0.0
    %2338 = vmatpush1.msra.mxu0 0.0
    %2339 = vmatprep.subr.mxu0 0.0
    %2340 = vmatpush1.msra.mxu0 0.0
    %2341 = vmatprep.subr.mxu0 0.0
    %2342 = vmatpush1.msra.mxu0 0.0
    %2343 = vmatprep.subr.mxu0 0.0
    %2344 = vmatpush1.msra.mxu0 0.0
    %2345 = vmatprep.subr.mxu0 0.0
    %2346 = vmatpush1.msra.mxu0 0.0
    %2347 = vmatprep.subr.mxu0 0.0
    %2348 = vmatpush1.msra.mxu0 0.0
    %2349 = vmatprep.subr.mxu0 0.0
    %2350 = vmatpush1.msra.mxu0 0.0
    %2351 = vmatprep.subr.mxu0 0.0
    %2352 = vmatpush1.msra.mxu0 0.0
    %2353 = vmatprep.subr.mxu0 0.0
    %2354 = vmatpush1.msra.mxu0 0.0
    %2355 = vmatprep.subr.mxu0 0.0
    %2356 = vmatpush1.msra.mxu0 0.0
    %2357 = vmatprep.subr.mxu0 0.0
    %2358 = vmatpush1.msra.mxu0 0.0
    %2359 = vmatprep.subr.mxu0 0.0
    %2360 = vmatpush1.msra.mxu0 0.0
    %2361 = vmatprep.subr.mxu0 0.0
    %2362 = vmatpush1.msra.mxu0 0.0
    %2363 = vmatprep.subr.mxu0 0.0
    %2364 = vmatpush1.msra.mxu0 0.0
    %2365 = vmatprep.subr.mxu0 0.0
    %2366 = vmatpush1.msra.mxu0 0.0
    %2367 = vmatprep.subr.mxu0 0.0
    %2368 = vmatpush1.msra.mxu0 0.0
    %2369 = vmatprep.subr.mxu0 0.0
    %2370 = vmatpush1.msra.mxu0 0.0
    %2371 = vmatprep.subr.mxu0 0.0
    %2372 = vmatpush1.msra.mxu0 0.0
    %2373 = vmatprep.subr.mxu0 0.0
    %2374 = vmatpush1.msra.mxu0 0.0
    %2375 = vmatprep.subr.mxu0 0.0
    %2376 = vmatpush1.msra.mxu0 0.0
    %2377 = vmatprep.subr.mxu0 0.0
    %2378 = vmatpush1.msra.mxu0 0.0
    %2379 = vmatprep.subr.mxu0 0.0
    %2380 = vmatpush1.msra.mxu0 0.0
    %2381 = vmatprep.subr.mxu0 0.0
    %2382 = vmatpush1.msra.mxu0 0.0
    %2383 = vmatprep.subr.mxu0 0.0
    %2384 = vmatpush1.msra.mxu0 0.0
    %2385 = vmatprep.mubr.f32.mxu0 0.0
    %2386 = vmatmul.mubr.f32.gmra.mrb[0].mxu0 %v2316
    %v2387 = vpop.f32.mrb[0].mxu0
    %v2388 = vadd.f32 %v2314, %v2387
    %v2389 = vpop.f32.mrb[0].mxu0
    %2390 = vmatprep.mubr.f32.mxu0 0.0
    %2391 = vmatmul.mubr.f32.gmra.mrb[0].mxu0 %v2319
    %v2392 = vpop.f32.mrb[0].mxu0
    %v2393 = vadd.f32 %v2314, %v2392
    %v2394 = vpop.f32.mrb[0].mxu0
    %2395 = vdwg.mxu0
    %v2397 = vsel %vm369, %v2154, 0
    %v2400 = vsel %vm369, %v2284, 0
    %2402 = vmatprep.subr.mxu0 0.0
    %2403 = vmatpush1.xpose.msra.mxu0 %v2400
    %2404 = vmatprep.subr.mxu0 0.0
    %2405 = vmatpush1.xpose.msra.mxu0 0.0
    %2406 = vmatprep.subr.mxu0 0.0
    %2407 = vmatpush1.xpose.msra.mxu0 0.0
    %2408 = vmatprep.subr.mxu0 0.0
    %2409 = vmatpush1.xpose.msra.mxu0 0.0
    %2410 = vmatprep.subr.mxu0 0.0
    %2411 = vmatpush1.xpose.msra.mxu0 0.0
    %2412 = vmatprep.subr.mxu0 0.0
    %2413 = vmatpush1.xpose.msra.mxu0 0.0
    %2414 = vmatprep.subr.mxu0 0.0
    %2415 = vmatpush1.xpose.msra.mxu0 0.0
    %2416 = vmatprep.subr.mxu0 0.0
    %2417 = vmatpush1.xpose.msra.mxu0 0.0
    %2418 = vmatprep.subr.mxu0 0.0
    %2419 = vmatpush1.xpose.msra.mxu0 0.0
    %2420 = vmatprep.subr.mxu0 0.0
    %2421 = vmatpush1.xpose.msra.mxu0 0.0
    %2422 = vmatprep.subr.mxu0 0.0
    %2423 = vmatpush1.xpose.msra.mxu0 0.0
    %2424 = vmatprep.subr.mxu0 0.0
    %2425 = vmatpush1.xpose.msra.mxu0 0.0
    %2426 = vmatprep.subr.mxu0 0.0
    %2427 = vmatpush1.xpose.msra.mxu0 0.0
    %2428 = vmatprep.subr.mxu0 0.0
    %2429 = vmatpush1.xpose.msra.mxu0 0.0
    %2430 = vmatprep.subr.mxu0 0.0
    %2431 = vmatpush1.xpose.msra.mxu0 0.0
    %2432 = vmatprep.subr.mxu0 0.0
    %2433 = vmatpush1.xpose.msra.mxu0 0.0
    %2434 = vmatprep.subr.mxu0 0.0
    %2435 = vmatpush1.xpose.msra.mxu0 0.0
    %2436 = vmatprep.subr.mxu0 0.0
    %2437 = vmatpush1.xpose.msra.mxu0 0.0
    %2438 = vmatprep.subr.mxu0 0.0
    %2439 = vmatpush1.xpose.msra.mxu0 0.0
    %2440 = vmatprep.subr.mxu0 0.0
    %2441 = vmatpush1.xpose.msra.mxu0 0.0
    %2442 = vmatprep.subr.mxu0 0.0
    %2443 = vmatpush1.xpose.msra.mxu0 0.0
    %2444 = vmatprep.subr.mxu0 0.0
    %2445 = vmatpush1.xpose.msra.mxu0 0.0
    %2446 = vmatprep.subr.mxu0 0.0
    %2447 = vmatpush1.xpose.msra.mxu0 0.0
    %2448 = vmatprep.subr.mxu0 0.0
    %2449 = vmatpush1.xpose.msra.mxu0 0.0
    %2450 = vmatprep.subr.mxu0 0.0
    %2451 = vmatpush1.xpose.msra.mxu0 0.0
    %2452 = vmatprep.subr.mxu0 0.0
    %2453 = vmatpush1.xpose.msra.mxu0 0.0
    %2454 = vmatprep.subr.mxu0 0.0
    %2455 = vmatpush1.xpose.msra.mxu0 0.0
    %2456 = vmatprep.subr.mxu0 0.0
    %2457 = vmatpush1.xpose.msra.mxu0 0.0
    %2458 = vmatprep.subr.mxu0 0.0
    %2459 = vmatpush1.xpose.msra.mxu0 0.0
    %2460 = vmatprep.subr.mxu0 0.0
    %2461 = vmatpush1.xpose.msra.mxu0 0.0
    %2462 = vmatprep.subr.mxu0 0.0
    %2463 = vmatpush1.xpose.msra.mxu0 0.0
    %2464 = vmatprep.subr.mxu0 0.0
    %2465 = vmatpush1.xpose.msra.mxu0 0.0
    %2466 = vmatprep.mubr.f32.mxu0 0.0
    %2467 = vmatmul.mubr.f32.gmra.mrb[0].mxu0 %v2397
    %v2468 = vpop.f32.mrb[0].mxu0
    %v2469 = vadd.f32 %v2031, %v2468
    %v2470 = vpop.f32.mrb[0].mxu0
    %2471 = vdwg.mxu0
    %v2473 = vsel %vm369, %v2159, 0
    %v2476 = vsel %vm369, %v2289, 0
    %2478 = vmatprep.subr.mxu0 0.0
    %2479 = vmatpush1.xpose.msra.mxu0 %v2476
    %2480 = vmatprep.subr.mxu0 0.0
    %2481 = vmatpush1.xpose.msra.mxu0 0.0
    %2482 = vmatprep.subr.mxu0 0.0
    %2483 = vmatpush1.xpose.msra.mxu0 0.0
    %2484 = vmatprep.subr.mxu0 0.0
    %2485 = vmatpush1.xpose.msra.mxu0 0.0
    %2486 = vmatprep.subr.mxu0 0.0
    %2487 = vmatpush1.xpose.msra.mxu0 0.0
    %2488 = vmatprep.subr.mxu0 0.0
    %2489 = vmatpush1.xpose.msra.mxu0 0.0
    %2490 = vmatprep.subr.mxu0 0.0
    %2491 = vmatpush1.xpose.msra.mxu0 0.0
    %2492 = vmatprep.subr.mxu0 0.0
    %2493 = vmatpush1.xpose.msra.mxu0 0.0
    %2494 = vmatprep.subr.mxu0 0.0
    %2495 = vmatpush1.xpose.msra.mxu0 0.0
    %2496 = vmatprep.subr.mxu0 0.0
    %2497 = vmatpush1.xpose.msra.mxu0 0.0
    %2498 = vmatprep.subr.mxu0 0.0
    %2499 = vmatpush1.xpose.msra.mxu0 0.0
    %2500 = vmatprep.subr.mxu0 0.0
    %2501 = vmatpush1.xpose.msra.mxu0 0.0
    %2502 = vmatprep.subr.mxu0 0.0
    %2503 = vmatpush1.xpose.msra.mxu0 0.0
    %2504 = vmatprep.subr.mxu0 0.0
    %2505 = vmatpush1.xpose.msra.mxu0 0.0
    %2506 = vmatprep.subr.mxu0 0.0
    %2507 = vmatpush1.xpose.msra.mxu0 0.0
    %2508 = vmatprep.subr.mxu0 0.0
    %2509 = vmatpush1.xpose.msra.mxu0 0.0
    %2510 = vmatprep.subr.mxu0 0.0
    %2511 = vmatpush1.xpose.msra.mxu0 0.0
    %2512 = vmatprep.subr.mxu0 0.0
    %2513 = vmatpush1.xpose.msra.mxu0 0.0
    %2514 = vmatprep.subr.mxu0 0.0
    %2515 = vmatpush1.xpose.msra.mxu0 0.0
    %2516 = vmatprep.subr.mxu0 0.0
    %2517 = vmatpush1.xpose.msra.mxu0 0.0
    %2518 = vmatprep.subr.mxu0 0.0
    %2519 = vmatpush1.xpose.msra.mxu0 0.0
    %2520 = vmatprep.subr.mxu0 0.0
    %2521 = vmatpush1.xpose.msra.mxu0 0.0
    %2522 = vmatprep.subr.mxu0 0.0
    %2523 = vmatpush1.xpose.msra.mxu0 0.0
    %2524 = vmatprep.subr.mxu0 0.0
    %2525 = vmatpush1.xpose.msra.mxu0 0.0
    %2526 = vmatprep.subr.mxu0 0.0
    %2527 = vmatpush1.xpose.msra.mxu0 0.0
    %2528 = vmatprep.subr.mxu0 0.0
    %2529 = vmatpush1.xpose.msra.mxu0 0.0
    %2530 = vmatprep.subr.mxu0 0.0
    %2531 = vmatpush1.xpose.msra.mxu0 0.0
    %2532 = vmatprep.subr.mxu0 0.0
    %2533 = vmatpush1.xpose.msra.mxu0 0.0
    %2534 = vmatprep.subr.mxu0 0.0
    %2535 = vmatpush1.xpose.msra.mxu0 0.0
    %2536 = vmatprep.subr.mxu0 0.0
    %2537 = vmatpush1.xpose.msra.mxu0 0.0
    %2538 = vmatprep.subr.mxu0 0.0
    %2539 = vmatpush1.xpose.msra.mxu0 0.0
    %2540 = vmatprep.subr.mxu0 0.0
    %2541 = vmatpush1.xpose.msra.mxu0 0.0
    %2542 = vmatprep.mubr.f32.mxu0 0.0
    %2543 = vmatmul.mubr.f32.gmra.mrb[0].mxu0 %v2473
    %v2544 = vpop.f32.mrb[0].mxu0
    %v2545 = vadd.f32 %v2031, %v2544
    %v2546 = vpop.f32.mrb[0].mxu0
    %2547 = vdwg.mxu0
    %v2548 = vmul.f32 %v2469, 0.35355338
    %v2549 = vmul.f32 %v2545, 0.35355338
    %v2550 = vsel %vm369, %v2548, -inf
    %2551 = vmax.xlane.f32.xlu0 %v2550
    %v2552 = vpop.xlane.xlu0 %2551
    %v2553 = vsel %vm369, %v2549, -inf
    %2554 = vmax.xlane.f32.xlu0 %v2553
    %v2555 = vpop.xlane.xlu0 %2554
    %v2556 = vsub.f32 %v2548, %v2552
    %v2557 = vsub.f32 %v2549, %v2555
    %v2558 = vmul.f32 %v2556, 1.442695
    %v2559 = vpow.pop %v2558
    %v2560 = vmul.f32 %v2557, 1.442695
    %v2561 = vpow.pop %v2560
    %v2562 = vsel %vm369, %v2559, 0.0
    %2563 = vadd.xlane.f32.xlu0 %v2562
    %v2564 = vpop.xlane.xlu0 %2563
    %v2565 = vsel %vm369, %v2561, 0.0
    %2566 = vadd.xlane.f32.xlu0 %v2565
    %v2567 = vpop.xlane.xlu0 %2566
    %v2568 = vrcp.pop %v2564
    %v2569 = vrcp.pop %v2567
    %v2570 = vmul.f32 %v2559, %v2568
    %v2571 = vmul.f32 %v2561, %v2569
    %v2573 = vsel %vm369, %v2570, 0
    %2575 = vmatprep.subr.mxu0 0.0
    %2576 = vmatpush1.msra.mxu0 %v2388
    %2577 = vmatprep.subr.mxu0 0.0
    %2578 = vmatpush1.msra.mxu0 0.0
    %2579 = vmatprep.subr.mxu0 0.0
    %2580 = vmatpush1.msra.mxu0 0.0
    %2581 = vmatprep.subr.mxu0 0.0
    %2582 = vmatpush1.msra.mxu0 0.0
    %2583 = vmatprep.subr.mxu0 0.0
    %2584 = vmatpush1.msra.mxu0 0.0
    %2585 = vmatprep.subr.mxu0 0.0
    %2586 = vmatpush1.msra.mxu0 0.0
    %2587 = vmatprep.subr.mxu0 0.0
    %2588 = vmatpush1.msra.mxu0 0.0
    %2589 = vmatprep.subr.mxu0 0.0
    %2590 = vmatpush1.msra.mxu0 0.0
    %2591 = vmatprep.subr.mxu0 0.0
    %2592 = vmatpush1.msra.mxu0 0.0
    %2593 = vmatprep.subr.mxu0 0.0
    %2594 = vmatpush1.msra.mxu0 0.0
    %2595 = vmatprep.subr.mxu0 0.0
    %2596 = vmatpush1.msra.mxu0 0.0
    %2597 = vmatprep.subr.mxu0 0.0
    %2598 = vmatpush1.msra.mxu0 0.0
    %2599 = vmatprep.subr.mxu0 0.0
    %2600 = vmatpush1.msra.mxu0 0.0
    %2601 = vmatprep.subr.mxu0 0.0
    %2602 = vmatpush1.msra.mxu0 0.0
    %2603 = vmatprep.subr.mxu0 0.0
    %2604 = vmatpush1.msra.mxu0 0.0
    %2605 = vmatprep.subr.mxu0 0.0
    %2606 = vmatpush1.msra.mxu0 0.0
    %2607 = vmatprep.subr.mxu0 0.0
    %2608 = vmatpush1.msra.mxu0 0.0
    %2609 = vmatprep.subr.mxu0 0.0
    %2610 = vmatpush1.msra.mxu0 0.0
    %2611 = vmatprep.subr.mxu0 0.0
    %2612 = vmatpush1.msra.mxu0 0.0
    %2613 = vmatprep.subr.mxu0 0.0
    %2614 = vmatpush1.msra.mxu0 0.0
    %2615 = vmatprep.subr.mxu0 0.0
    %2616 = vmatpush1.msra.mxu0 0.0
    %2617 = vmatprep.subr.mxu0 0.0
    %2618 = vmatpush1.msra.mxu0 0.0
    %2619 = vmatprep.subr.mxu0 0.0
    %2620 = vmatpush1.msra.mxu0 0.0
    %2621 = vmatprep.subr.mxu0 0.0
    %2622 = vmatpush1.msra.mxu0 0.0
    %2623 = vmatprep.subr.mxu0 0.0
    %2624 = vmatpush1.msra.mxu0 0.0
    %2625 = vmatprep.subr.mxu0 0.0
    %2626 = vmatpush1.msra.mxu0 0.0
    %2627 = vmatprep.subr.mxu0 0.0
    %2628 = vmatpush1.msra.mxu0 0.0
    %2629 = vmatprep.subr.mxu0 0.0
    %2630 = vmatpush1.msra.mxu0 0.0
    %2631 = vmatprep.subr.mxu0 0.0
    %2632 = vmatpush1.msra.mxu0 0.0
    %2633 = vmatprep.subr.mxu0 0.0
    %2634 = vmatpush1.msra.mxu0 0.0
    %2635 = vmatprep.subr.mxu0 0.0
    %2636 = vmatpush1.msra.mxu0 0.0
    %2637 = vmatprep.subr.mxu0 0.0
    %2638 = vmatpush1.msra.mxu0 0.0
    %2639 = vmatprep.mubr.f32.mxu0 0.0
    %2640 = vmatmul.mubr.f32.gmra.mrb[0].mxu0 %v2573
    %v2641 = vpop.f32.mrb[0].mxu0
    %v2642 = vadd.f32 0.0, %v2641
    %v2643 = vpop.f32.mrb[0].mxu0
    %2644 = vdwg.mxu0
    %v2646 = vsel %vm369, %v2571, 0
    %2648 = vmatprep.subr.mxu0 0.0
    %2649 = vmatpush1.msra.mxu0 %v2393
    %2650 = vmatprep.subr.mxu0 0.0
    %2651 = vmatpush1.msra.mxu0 0.0
    %2652 = vmatprep.subr.mxu0 0.0
    %2653 = vmatpush1.msra.mxu0 0.0
    %2654 = vmatprep.subr.mxu0 0.0
    %2655 = vmatpush1.msra.mxu0 0.0
    %2656 = vmatprep.subr.mxu0 0.0
    %2657 = vmatpush1.msra.mxu0 0.0
    %2658 = vmatprep.subr.mxu0 0.0
    %2659 = vmatpush1.msra.mxu0 0.0
    %2660 = vmatprep.subr.mxu0 0.0
    %2661 = vmatpush1.msra.mxu0 0.0
    %2662 = vmatprep.subr.mxu0 0.0
    %2663 = vmatpush1.msra.mxu0 0.0
    %2664 = vmatprep.subr.mxu0 0.0
    %2665 = vmatpush1.msra.mxu0 0.0
    %2666 = vmatprep.subr.mxu0 0.0
    %2667 = vmatpush1.msra.mxu0 0.0
    %2668 = vmatprep.subr.mxu0 0.0
    %2669 = vmatpush1.msra.mxu0 0.0
    %2670 = vmatprep.subr.mxu0 0.0
    %2671 = vmatpush1.msra.mxu0 0.0
    %2672 = vmatprep.subr.mxu0 0.0
    %2673 = vmatpush1.msra.mxu0 0.0
    %2674 = vmatprep.subr.mxu0 0.0
    %2675 = vmatpush1.msra.mxu0 0.0
    %2676 = vmatprep.subr.mxu0 0.0
    %2677 = vmatpush1.msra.mxu0 0.0
    %2678 = vmatprep.subr.mxu0 0.0
    %2679 = vmatpush1.msra.mxu0 0.0
    %2680 = vmatprep.subr.mxu0 0.0
    %2681 = vmatpush1.msra.mxu0 0.0
    %2682 = vmatprep.subr.mxu0 0.0
    %2683 = vmatpush1.msra.mxu0 0.0
    %2684 = vmatprep.subr.mxu0 0.0
    %2685 = vmatpush1.msra.mxu0 0.0
    %2686 = vmatprep.subr.mxu0 0.0
    %2687 = vmatpush1.msra.mxu0 0.0
    %2688 = vmatprep.subr.mxu0 0.0
    %2689 = vmatpush1.msra.mxu0 0.0
    %2690 = vmatprep.subr.mxu0 0.0
    %2691 = vmatpush1.msra.mxu0 0.0
    %2692 = vmatprep.subr.mxu0 0.0
    %2693 = vmatpush1.msra.mxu0 0.0
    %2694 = vmatprep.subr.mxu0 0.0
    %2695 = vmatpush1.msra.mxu0 0.0
    %2696 = vmatprep.subr.mxu0 0.0
    %2697 = vmatpush1.msra.mxu0 0.0
    %2698 = vmatprep.subr.mxu0 0.0
    %2699 = vmatpush1.msra.mxu0 0.0
    %2700 = vmatprep.subr.mxu0 0.0
    %2701 = vmatpush1.msra.mxu0 0.0
    %2702 = vmatprep.subr.mxu0 0.0
    %2703 = vmatpush1.msra.mxu0 0.0
    %2704 = vmatprep.subr.mxu0 0.0
    %2705 = vmatpush1.msra.mxu0 0.0
    %2706 = vmatprep.subr.mxu0 0.0
    %2707 = vmatpush1.msra.mxu0 0.0
    %2708 = vmatprep.subr.mxu0 0.0
    %2709 = vmatpush1.msra.mxu0 0.0
    %2710 = vmatprep.subr.mxu0 0.0
    %2711 = vmatpush1.msra.mxu0 0.0
    %2712 = vmatprep.mubr.f32.mxu0 0.0
    %2713 = vmatmul.mubr.f32.gmra.mrb[0].mxu0 %v2646
    %v2714 = vpop.f32.mrb[0].mxu0
    %v2715 = vadd.f32 0.0, %v2714
    %v2716 = vpop.f32.mrb[0].mxu0
    %2717 = vdwg.mxu0
    %v2718 = vld [vmem:[%s4 + $0xe0] sm:$0xff]
    %2719 = vrot.lane.b32.xlu0 %v2154, 120
    %v2720 = vpop.permute.xlu0 %2719
    %2721 = vrot.lane.b32.xlu0 %v2284, 120
    %v2722 = vpop.permute.xlu0 %2721
    %v2723 = vsel %vm369, %v2720, 0
    %v2725 = vsel %vm369, %v2722, 0
    %2727 = vmatprep.subr.mxu0 0.0
    %2728 = vmatpush1.xpose.msra.mxu0 %v2725
    %2729 = vmatprep.subr.mxu0 0.0
    %2730 = vmatpush1.xpose.msra.mxu0 0.0
    %2731 = vmatprep.subr.mxu0 0.0
    %2732 = vmatpush1.xpose.msra.mxu0 0.0
    %2733 = vmatprep.subr.mxu0 0.0
    %2734 = vmatpush1.xpose.msra.mxu0 0.0
    %2735 = vmatprep.subr.mxu0 0.0
    %2736 = vmatpush1.xpose.msra.mxu0 0.0
    %2737 = vmatprep.subr.mxu0 0.0
    %2738 = vmatpush1.xpose.msra.mxu0 0.0
    %2739 = vmatprep.subr.mxu0 0.0
    %2740 = vmatpush1.xpose.msra.mxu0 0.0
    %2741 = vmatprep.subr.mxu0 0.0
    %2742 = vmatpush1.xpose.msra.mxu0 0.0
    %2743 = vmatprep.subr.mxu0 0.0
    %2744 = vmatpush1.xpose.msra.mxu0 0.0
    %2745 = vmatprep.subr.mxu0 0.0
    %2746 = vmatpush1.xpose.msra.mxu0 0.0
    %2747 = vmatprep.subr.mxu0 0.0
    %2748 = vmatpush1.xpose.msra.mxu0 0.0
    %2749 = vmatprep.subr.mxu0 0.0
    %2750 = vmatpush1.xpose.msra.mxu0 0.0
    %2751 = vmatprep.subr.mxu0 0.0
    %2752 = vmatpush1.xpose.msra.mxu0 0.0
    %2753 = vmatprep.subr.mxu0 0.0
    %2754 = vmatpush1.xpose.msra.mxu0 0.0
    %2755 = vmatprep.subr.mxu0 0.0
    %2756 = vmatpush1.xpose.msra.mxu0 0.0
    %2757 = vmatprep.subr.mxu0 0.0
    %2758 = vmatpush1.xpose.msra.mxu0 0.0
    %2759 = vmatprep.subr.mxu0 0.0
    %2760 = vmatpush1.xpose.msra.mxu0 0.0
    %2761 = vmatprep.subr.mxu0 0.0
    %2762 = vmatpush1.xpose.msra.mxu0 0.0
    %2763 = vmatprep.subr.mxu0 0.0
    %2764 = vmatpush1.xpose.msra.mxu0 0.0
    %2765 = vmatprep.subr.mxu0 0.0
    %2766 = vmatpush1.xpose.msra.mxu0 0.0
    %2767 = vmatprep.subr.mxu0 0.0
    %2768 = vmatpush1.xpose.msra.mxu0 0.0
    %2769 = vmatprep.subr.mxu0 0.0
    %2770 = vmatpush1.xpose.msra.mxu0 0.0
    %2771 = vmatprep.subr.mxu0 0.0
    %2772 = vmatpush1.xpose.msra.mxu0 0.0
    %2773 = vmatprep.subr.mxu0 0.0
    %2774 = vmatpush1.xpose.msra.mxu0 0.0
    %2775 = vmatprep.subr.mxu0 0.0
    %2776 = vmatpush1.xpose.msra.mxu0 0.0
    %2777 = vmatprep.subr.mxu0 0.0
    %2778 = vmatpush1.xpose.msra.mxu0 0.0
    %2779 = vmatprep.subr.mxu0 0.0
    %2780 = vmatpush1.xpose.msra.mxu0 0.0
    %2781 = vmatprep.subr.mxu0 0.0
    %2782 = vmatpush1.xpose.msra.mxu0 0.0
    %2783 = vmatprep.subr.mxu0 0.0
    %2784 = vmatpush1.xpose.msra.mxu0 0.0
    %2785 = vmatprep.subr.mxu0 0.0
    %2786 = vmatpush1.xpose.msra.mxu0 0.0
    %2787 = vmatprep.subr.mxu0 0.0
    %2788 = vmatpush1.xpose.msra.mxu0 0.0
    %2789 = vmatprep.subr.mxu0 0.0
    %2790 = vmatpush1.xpose.msra.mxu0 0.0
    %2791 = vmatprep.mubr.f32.mxu0 0.0
    %2792 = vmatmul.mubr.f32.gmra.mrb[0].mxu0 %v2723
    %v2793 = vpop.f32.mrb[0].mxu0
    %v2794 = vadd.f32 %v2031, %v2793
    %v2795 = vpop.f32.mrb[0].mxu0
    %2796 = vdwg.mxu0
    %2797 = vrot.lane.b32.xlu0 %v2159, 120
    %v2798 = vpop.permute.xlu0 %2797
    %2799 = vrot.lane.b32.xlu0 %v2289, 120
    %v2800 = vpop.permute.xlu0 %2799
    %v2801 = vsel %vm369, %v2798, 0
    %v2803 = vsel %vm369, %v2800, 0
    %2805 = vmatprep.subr.mxu0 0.0
    %2806 = vmatpush1.xpose.msra.mxu0 %v2803
    %2807 = vmatprep.subr.mxu0 0.0
    %2808 = vmatpush1.xpose.msra.mxu0 0.0
    %2809 = vmatprep.subr.mxu0 0.0
    %2810 = vmatpush1.xpose.msra.mxu0 0.0
    %2811 = vmatprep.subr.mxu0 0.0
    %2812 = vmatpush1.xpose.msra.mxu0 0.0
    %2813 = vmatprep.subr.mxu0 0.0
    %2814 = vmatpush1.xpose.msra.mxu0 0.0
    %2815 = vmatprep.subr.mxu0 0.0
    %2816 = vmatpush1.xpose.msra.mxu0 0.0
    %2817 = vmatprep.subr.mxu0 0.0
    %2818 = vmatpush1.xpose.msra.mxu0 0.0
    %2819 = vmatprep.subr.mxu0 0.0
    %2820 = vmatpush1.xpose.msra.mxu0 0.0
    %2821 = vmatprep.subr.mxu0 0.0
    %2822 = vmatpush1.xpose.msra.mxu0 0.0
    %2823 = vmatprep.subr.mxu0 0.0
    %2824 = vmatpush1.xpose.msra.mxu0 0.0
    %2825 = vmatprep.subr.mxu0 0.0
    %2826 = vmatpush1.xpose.msra.mxu0 0.0
    %2827 = vmatprep.subr.mxu0 0.0
    %2828 = vmatpush1.xpose.msra.mxu0 0.0
    %2829 = vmatprep.subr.mxu0 0.0
    %2830 = vmatpush1.xpose.msra.mxu0 0.0
    %2831 = vmatprep.subr.mxu0 0.0
    %2832 = vmatpush1.xpose.msra.mxu0 0.0
    %2833 = vmatprep.subr.mxu0 0.0
    %2834 = vmatpush1.xpose.msra.mxu0 0.0
    %2835 = vmatprep.subr.mxu0 0.0
    %2836 = vmatpush1.xpose.msra.mxu0 0.0
    %2837 = vmatprep.subr.mxu0 0.0
    %2838 = vmatpush1.xpose.msra.mxu0 0.0
    %2839 = vmatprep.subr.mxu0 0.0
    %2840 = vmatpush1.xpose.msra.mxu0 0.0
    %2841 = vmatprep.subr.mxu0 0.0
    %2842 = vmatpush1.xpose.msra.mxu0 0.0
    %2843 = vmatprep.subr.mxu0 0.0
    %2844 = vmatpush1.xpose.msra.mxu0 0.0
    %2845 = vmatprep.subr.mxu0 0.0
    %2846 = vmatpush1.xpose.msra.mxu0 0.0
    %2847 = vmatprep.subr.mxu0 0.0
    %2848 = vmatpush1.xpose.msra.mxu0 0.0
    %2849 = vmatprep.subr.mxu0 0.0
    %2850 = vmatpush1.xpose.msra.mxu0 0.0
    %2851 = vmatprep.subr.mxu0 0.0
    %2852 = vmatpush1.xpose.msra.mxu0 0.0
    %2853 = vmatprep.subr.mxu0 0.0
    %2854 = vmatpush1.xpose.msra.mxu0 0.0
    %2855 = vmatprep.subr.mxu0 0.0
    %2856 = vmatpush1.xpose.msra.mxu0 0.0
    %2857 = vmatprep.subr.mxu0 0.0
    %2858 = vmatpush1.xpose.msra.mxu0 0.0
    %2859 = vmatprep.subr.mxu0 0.0
    %2860 = vmatpush1.xpose.msra.mxu0 0.0
    %2861 = vmatprep.subr.mxu0 0.0
    %2862 = vmatpush1.xpose.msra.mxu0 0.0
    %2863 = vmatprep.subr.mxu0 0.0
    %2864 = vmatpush1.xpose.msra.mxu0 0.0
    %2865 = vmatprep.subr.mxu0 0.0
    %2866 = vmatpush1.xpose.msra.mxu0 0.0
    %2867 = vmatprep.subr.mxu0 0.0
    %2868 = vmatpush1.xpose.msra.mxu0 0.0
    %2869 = vmatprep.mubr.f32.mxu0 0.0
    %2870 = vmatmul.mubr.f32.gmra.mrb[0].mxu0 %v2801
    %v2871 = vpop.f32.mrb[0].mxu0
    %v2872 = vadd.f32 %v2031, %v2871
    %v2873 = vpop.f32.mrb[0].mxu0
    %2874 = vdwg.mxu0
    %v2875 = vmul.f32 %v2794, 0.35355338
    %v2876 = vmul.f32 %v2872, 0.35355338
    %v2877 = vsel %vm369, %v2875, -inf
    %2878 = vmax.xlane.f32.xlu0 %v2877
    %v2879 = vpop.xlane.xlu0 %2878
    %v2880 = vsel %vm369, %v2876, -inf
    %2881 = vmax.xlane.f32.xlu0 %v2880
    %v2882 = vpop.xlane.xlu0 %2881
    %v2883 = vsub.f32 %v2875, %v2879
    %v2884 = vsub.f32 %v2876, %v2882
    %v2885 = vmul.f32 %v2883, 1.442695
    %v2886 = vpow.pop %v2885
    %v2887 = vmul.f32 %v2884, 1.442695
    %v2888 = vpow.pop %v2887
    %v2889 = vsel %vm369, %v2886, 0.0
    %2890 = vadd.xlane.f32.xlu0 %v2889
    %v2891 = vpop.xlane.xlu0 %2890
    %v2892 = vsel %vm369, %v2888, 0.0
    %2893 = vadd.xlane.f32.xlu0 %v2892
    %v2894 = vpop.xlane.xlu0 %2893
    %v2895 = vrcp.pop %v2891
    %v2896 = vrcp.pop %v2894
    %v2897 = vmul.f32 %v2886, %v2895
    %v2898 = vmul.f32 %v2888, %v2896
    %2900 = vrot.lane.b32.xlu0 %v2388, 120
    %v2901 = vpop.permute.xlu0 %2900
    %v2904 = vsel %vm369, %v2897, 0
    %2906 = vmatprep.subr.mxu0 0.0
    %2907 = vmatpush1.msra.mxu0 %v2901
    %2908 = vmatprep.subr.mxu0 0.0
    %2909 = vmatpush1.msra.mxu0 0.0
    %2910 = vmatprep.subr.mxu0 0.0
    %2911 = vmatpush1.msra.mxu0 0.0
    %2912 = vmatprep.subr.mxu0 0.0
    %2913 = vmatpush1.msra.mxu0 0.0
    %2914 = vmatprep.subr.mxu0 0.0
    %2915 = vmatpush1.msra.mxu0 0.0
    %2916 = vmatprep.subr.mxu0 0.0
    %2917 = vmatpush1.msra.mxu0 0.0
    %2918 = vmatprep.subr.mxu0 0.0
    %2919 = vmatpush1.msra.mxu0 0.0
    %2920 = vmatprep.subr.mxu0 0.0
    %2921 = vmatpush1.msra.mxu0 0.0
    %2922 = vmatprep.subr.mxu0 0.0
    %2923 = vmatpush1.msra.mxu0 0.0
    %2924 = vmatprep.subr.mxu0 0.0
    %2925 = vmatpush1.msra.mxu0 0.0
    %2926 = vmatprep.subr.mxu0 0.0
    %2927 = vmatpush1.msra.mxu0 0.0
    %2928 = vmatprep.subr.mxu0 0.0
    %2929 = vmatpush1.msra.mxu0 0.0
    %2930 = vmatprep.subr.mxu0 0.0
    %2931 = vmatpush1.msra.mxu0 0.0
    %2932 = vmatprep.subr.mxu0 0.0
    %2933 = vmatpush1.msra.mxu0 0.0
    %2934 = vmatprep.subr.mxu0 0.0
    %2935 = vmatpush1.msra.mxu0 0.0
    %2936 = vmatprep.subr.mxu0 0.0
    %2937 = vmatpush1.msra.mxu0 0.0
    %2938 = vmatprep.subr.mxu0 0.0
    %2939 = vmatpush1.msra.mxu0 0.0
    %2940 = vmatprep.subr.mxu0 0.0
    %2941 = vmatpush1.msra.mxu0 0.0
    %2942 = vmatprep.subr.mxu0 0.0
    %2943 = vmatpush1.msra.mxu0 0.0
    %2944 = vmatprep.subr.mxu0 0.0
    %2945 = vmatpush1.msra.mxu0 0.0
    %2946 = vmatprep.subr.mxu0 0.0
    %2947 = vmatpush1.msra.mxu0 0.0
    %2948 = vmatprep.subr.mxu0 0.0
    %2949 = vmatpush1.msra.mxu0 0.0
    %2950 = vmatprep.subr.mxu0 0.0
    %2951 = vmatpush1.msra.mxu0 0.0
    %2952 = vmatprep.subr.mxu0 0.0
    %2953 = vmatpush1.msra.mxu0 0.0
    %2954 = vmatprep.subr.mxu0 0.0
    %2955 = vmatpush1.msra.mxu0 0.0
    %2956 = vmatprep.subr.mxu0 0.0
    %2957 = vmatpush1.msra.mxu0 0.0
    %2958 = vmatprep.subr.mxu0 0.0
    %2959 = vmatpush1.msra.mxu0 0.0
    %2960 = vmatprep.subr.mxu0 0.0
    %2961 = vmatpush1.msra.mxu0 0.0
    %2962 = vmatprep.subr.mxu0 0.0
    %2963 = vmatpush1.msra.mxu0 0.0
    %2964 = vmatprep.subr.mxu0 0.0
    %2965 = vmatpush1.msra.mxu0 0.0
    %2966 = vmatprep.subr.mxu0 0.0
    %2967 = vmatpush1.msra.mxu0 0.0
    %2968 = vmatprep.subr.mxu0 0.0
    %2969 = vmatpush1.msra.mxu0 0.0
    %2970 = vmatprep.mubr.f32.mxu0 0.0
    %2971 = vmatmul.mubr.f32.gmra.mrb[0].mxu0 %v2904
    %v2972 = vpop.f32.mrb[0].mxu0
    %v2973 = vadd.f32 0.0, %v2972
    %v2974 = vpop.f32.mrb[0].mxu0
    %2975 = vdwg.mxu0
    %2977 = vrot.lane.b32.xlu0 %v2393, 120
    %v2978 = vpop.permute.xlu0 %2977
    %v2981 = vsel %vm369, %v2898, 0
    %2983 = vmatprep.subr.mxu0 0.0
    %2984 = vmatpush1.msra.mxu0 %v2978
    %2985 = vmatprep.subr.mxu0 0.0
    %2986 = vmatpush1.msra.mxu0 0.0
    %2987 = vmatprep.subr.mxu0 0.0
    %2988 = vmatpush1.msra.mxu0 0.0
    %2989 = vmatprep.subr.mxu0 0.0
    %2990 = vmatpush1.msra.mxu0 0.0
    %2991 = vmatprep.subr.mxu0 0.0
    %2992 = vmatpush1.msra.mxu0 0.0
    %2993 = vmatprep.subr.mxu0 0.0
    %2994 = vmatpush1.msra.mxu0 0.0
    %2995 = vmatprep.subr.mxu0 0.0
    %2996 = vmatpush1.msra.mxu0 0.0
    %2997 = vmatprep.subr.mxu0 0.0
    %2998 = vmatpush1.msra.mxu0 0.0
    %2999 = vmatprep.subr.mxu0 0.0
    %3000 = vmatpush1.msra.mxu0 0.0
    %3001 = vmatprep.subr.mxu0 0.0
    %3002 = vmatpush1.msra.mxu0 0.0
    %3003 = vmatprep.subr.mxu0 0.0
    %3004 = vmatpush1.msra.mxu0 0.0
    %3005 = vmatprep.subr.mxu0 0.0
    %3006 = vmatpush1.msra.mxu0 0.0
    %3007 = vmatprep.subr.mxu0 0.0
    %3008 = vmatpush1.msra.mxu0 0.0
    %3009 = vmatprep.subr.mxu0 0.0
    %3010 = vmatpush1.msra.mxu0 0.0
    %3011 = vmatprep.subr.mxu0 0.0
    %3012 = vmatpush1.msra.mxu0 0.0
    %3013 = vmatprep.subr.mxu0 0.0
    %3014 = vmatpush1.msra.mxu0 0.0
    %3015 = vmatprep.subr.mxu0 0.0
    %3016 = vmatpush1.msra.mxu0 0.0
    %3017 = vmatprep.subr.mxu0 0.0
    %3018 = vmatpush1.msra.mxu0 0.0
    %3019 = vmatprep.subr.mxu0 0.0
    %3020 = vmatpush1.msra.mxu0 0.0
    %3021 = vmatprep.subr.mxu0 0.0
    %3022 = vmatpush1.msra.mxu0 0.0
    %3023 = vmatprep.subr.mxu0 0.0
    %3024 = vmatpush1.msra.mxu0 0.0
    %3025 = vmatprep.subr.mxu0 0.0
    %3026 = vmatpush1.msra.mxu0 0.0
    %3027 = vmatprep.subr.mxu0 0.0
    %3028 = vmatpush1.msra.mxu0 0.0
    %3029 = vmatprep.subr.mxu0 0.0
    %3030 = vmatpush1.msra.mxu0 0.0
    %3031 = vmatprep.subr.mxu0 0.0
    %3032 = vmatpush1.msra.mxu0 0.0
    %3033 = vmatprep.subr.mxu0 0.0
    %3034 = vmatpush1.msra.mxu0 0.0
    %3035 = vmatprep.subr.mxu0 0.0
    %3036 = vmatpush1.msra.mxu0 0.0
    %3037 = vmatprep.subr.mxu0 0.0
    %3038 = vmatpush1.msra.mxu0 0.0
    %3039 = vmatprep.subr.mxu0 0.0
    %3040 = vmatpush1.msra.mxu0 0.0
    %3041 = vmatprep.subr.mxu0 0.0
    %3042 = vmatpush1.msra.mxu0 0.0
    %3043 = vmatprep.subr.mxu0 0.0
    %3044 = vmatpush1.msra.mxu0 0.0
    %3045 = vmatprep.subr.mxu0 0.0
    %3046 = vmatpush1.msra.mxu0 0.0
    %3047 = vmatprep.mubr.f32.mxu0 0.0
    %3048 = vmatmul.mubr.f32.gmra.mrb[0].mxu0 %v2981
    %v3049 = vpop.f32.mrb[0].mxu0
    %v3050 = vadd.f32 0.0, %v3049
    %v3051 = vpop.f32.mrb[0].mxu0
    %3052 = vdwg.mxu0
    %v3053 = vld [vmem:[%s4 + $0xe8] sm:$0xff]
    %v3055 = vsel %vm369, %v2973, 0
    %v3058 = vsel %vm369, %v3050, 0
    %3060 = vmatprep.subr.mxu0 0.0
    %3061 = vmatpush1.msra.mxu0 %v3053
    %3062 = vmatprep.subr.mxu0 0.0
    %3063 = vmatpush1.msra.mxu0 0.0
    %3064 = vmatprep.subr.mxu0 0.0
    %3065 = vmatpush1.msra.mxu0 0.0
    %3066 = vmatprep.subr.mxu0 0.0
    %3067 = vmatpush1.msra.mxu0 0.0
    %3068 = vmatprep.subr.mxu0 0.0
    %3069 = vmatpush1.msra.mxu0 0.0
    %3070 = vmatprep.subr.mxu0 0.0
    %3071 = vmatpush1.msra.mxu0 0.0
    %3072 = vmatprep.subr.mxu0 0.0
    %3073 = vmatpush1.msra.mxu0 0.0
    %3074 = vmatprep.subr.mxu0 0.0
    %3075 = vmatpush1.msra.mxu0 0.0
    %3076 = vmatprep.subr.mxu0 0.0
    %3077 = vmatpush1.msra.mxu0 0.0
    %3078 = vmatprep.subr.mxu0 0.0
    %3079 = vmatpush1.msra.mxu0 0.0
    %3080 = vmatprep.subr.mxu0 0.0
    %3081 = vmatpush1.msra.mxu0 0.0
    %3082 = vmatprep.subr.mxu0 0.0
    %3083 = vmatpush1.msra.mxu0 0.0
    %3084 = vmatprep.subr.mxu0 0.0
    %3085 = vmatpush1.msra.mxu0 0.0
    %3086 = vmatprep.subr.mxu0 0.0
    %3087 = vmatpush1.msra.mxu0 0.0
    %3088 = vmatprep.subr.mxu0 0.0
    %3089 = vmatpush1.msra.mxu0 0.0
    %3090 = vmatprep.subr.mxu0 0.0
    %3091 = vmatpush1.msra.mxu0 0.0
    %3092 = vmatprep.subr.mxu0 0.0
    %3093 = vmatpush1.msra.mxu0 0.0
    %3094 = vmatprep.subr.mxu0 0.0
    %3095 = vmatpush1.msra.mxu0 0.0
    %3096 = vmatprep.subr.mxu0 0.0
    %3097 = vmatpush1.msra.mxu0 0.0
    %3098 = vmatprep.subr.mxu0 0.0
    %3099 = vmatpush1.msra.mxu0 0.0
    %3100 = vmatprep.subr.mxu0 0.0
    %3101 = vmatpush1.msra.mxu0 0.0
    %3102 = vmatprep.subr.mxu0 0.0
    %3103 = vmatpush1.msra.mxu0 0.0
    %3104 = vmatprep.subr.mxu0 0.0
    %3105 = vmatpush1.msra.mxu0 0.0
    %3106 = vmatprep.subr.mxu0 0.0
    %3107 = vmatpush1.msra.mxu0 0.0
    %3108 = vmatprep.subr.mxu0 0.0
    %3109 = vmatpush1.msra.mxu0 0.0
    %3110 = vmatprep.subr.mxu0 0.0
    %3111 = vmatpush1.msra.mxu0 0.0
    %3112 = vmatprep.subr.mxu0 0.0
    %3113 = vmatpush1.msra.mxu0 0.0
    %3114 = vmatprep.subr.mxu0 0.0
    %3115 = vmatpush1.msra.mxu0 0.0
    %3116 = vmatprep.subr.mxu0 0.0
    %3117 = vmatpush1.msra.mxu0 0.0
    %3118 = vmatprep.subr.mxu0 0.0
    %3119 = vmatpush1.msra.mxu0 0.0
    %3120 = vmatprep.subr.mxu0 0.0
    %3121 = vmatpush1.msra.mxu0 0.0
    %3122 = vmatprep.subr.mxu0 0.0
    %3123 = vmatpush1.msra.mxu0 0.0
    %3124 = vmatprep.mubr.f32.mxu0 0.0
    %3125 = vmatmul.mubr.f32.gmra.mrb[0].mxu0 %v3055
    %v3126 = vpop.f32.mrb[0].mxu0
    %v3127 = vadd.f32 0.0, %v3126
    %v3128 = vpop.f32.mrb[0].mxu0
    %3129 = vmatprep.mubr.f32.mxu0 0.0
    %3130 = vmatmul.mubr.f32.gmra.mrb[0].mxu0 %v3058
    %v3131 = vpop.f32.mrb[0].mxu0
    %v3132 = vadd.f32 0.0, %v3131
    %v3133 = vpop.f32.mrb[0].mxu0
    %3134 = vdwg.mxu0
    %v3136 = vsel %vm369, %v2642, 0
    %v3139 = vsel %vm369, %v2715, 0
    %3141 = vmatprep.subr.mxu0 0.0
    %3142 = vmatpush1.msra.mxu0 %v2718
    %3143 = vmatprep.subr.mxu0 0.0
    %3144 = vmatpush1.msra.mxu0 0.0
    %3145 = vmatprep.subr.mxu0 0.0
    %3146 = vmatpush1.msra.mxu0 0.0
    %3147 = vmatprep.subr.mxu0 0.0
    %3148 = vmatpush1.msra.mxu0 0.0
    %3149 = vmatprep.subr.mxu0 0.0
    %3150 = vmatpush1.msra.mxu0 0.0
    %3151 = vmatprep.subr.mxu0 0.0
    %3152 = vmatpush1.msra.mxu0 0.0
    %3153 = vmatprep.subr.mxu0 0.0
    %3154 = vmatpush1.msra.mxu0 0.0
    %3155 = vmatprep.subr.mxu0 0.0
    %3156 = vmatpush1.msra.mxu0 0.0
    %3157 = vmatprep.subr.mxu0 0.0
    %3158 = vmatpush1.msra.mxu0 0.0
    %3159 = vmatprep.subr.mxu0 0.0
    %3160 = vmatpush1.msra.mxu0 0.0
    %3161 = vmatprep.subr.mxu0 0.0
    %3162 = vmatpush1.msra.mxu0 0.0
    %3163 = vmatprep.subr.mxu0 0.0
    %3164 = vmatpush1.msra.mxu0 0.0
    %3165 = vmatprep.subr.mxu0 0.0
    %3166 = vmatpush1.msra.mxu0 0.0
    %3167 = vmatprep.subr.mxu0 0.0
    %3168 = vmatpush1.msra.mxu0 0.0
    %3169 = vmatprep.subr.mxu0 0.0
    %3170 = vmatpush1.msra.mxu0 0.0
    %3171 = vmatprep.subr.mxu0 0.0
    %3172 = vmatpush1.msra.mxu0 0.0
    %3173 = vmatprep.subr.mxu0 0.0
    %3174 = vmatpush1.msra.mxu0 0.0
    %3175 = vmatprep.subr.mxu0 0.0
    %3176 = vmatpush1.msra.mxu0 0.0
    %3177 = vmatprep.subr.mxu0 0.0
    %3178 = vmatpush1.msra.mxu0 0.0
    %3179 = vmatprep.subr.mxu0 0.0
    %3180 = vmatpush1.msra.mxu0 0.0
    %3181 = vmatprep.subr.mxu0 0.0
    %3182 = vmatpush1.msra.mxu0 0.0
    %3183 = vmatprep.subr.mxu0 0.0
    %3184 = vmatpush1.msra.mxu0 0.0
    %3185 = vmatprep.subr.mxu0 0.0
    %3186 = vmatpush1.msra.mxu0 0.0
    %3187 = vmatprep.subr.mxu0 0.0
    %3188 = vmatpush1.msra.mxu0 0.0
    %3189 = vmatprep.subr.mxu0 0.0
    %3190 = vmatpush1.msra.mxu0 0.0
    %3191 = vmatprep.subr.mxu0 0.0
    %3192 = vmatpush1.msra.mxu0 0.0
    %3193 = vmatprep.subr.mxu0 0.0
    %3194 = vmatpush1.msra.mxu0 0.0
    %3195 = vmatprep.subr.mxu0 0.0
    %3196 = vmatpush1.msra.mxu0 0.0
    %3197 = vmatprep.subr.mxu0 0.0
    %3198 = vmatpush1.msra.mxu0 0.0
    %3199 = vmatprep.subr.mxu0 0.0
    %3200 = vmatpush1.msra.mxu0 0.0
    %3201 = vmatprep.subr.mxu0 0.0
    %3202 = vmatpush1.msra.mxu0 0.0
    %3203 = vmatprep.subr.mxu0 0.0
    %3204 = vmatpush1.msra.mxu0 0.0
    %3205 = vmatprep.mubr.f32.mxu0 0.0
    %3206 = vmatmul.mubr.f32.gmra.mrb[0].mxu0 %v3136
    %v3207 = vpop.f32.mrb[0].mxu0
    %v3208 = vadd.f32 %v3127, %v3207
    %v3209 = vpop.f32.mrb[0].mxu0
    %3210 = vmatprep.mubr.f32.mxu0 0.0
    %3211 = vmatmul.mubr.f32.gmra.mrb[0].mxu0 %v3139
    %v3212 = vpop.f32.mrb[0].mxu0
    %v3213 = vadd.f32 %v3132, %v3212
    %v3214 = vpop.f32.mrb[0].mxu0
    %3215 = vdwg.mxu0
    %3216 = vrot.lane.b32.xlu0 %v2154, 112
    %v3217 = vpop.permute.xlu0 %3216
    %3218 = vrot.lane.b32.xlu0 %v2284, 112
    %v3219 = vpop.permute.xlu0 %3218
    %v3220 = vsel %vm369, %v3217, 0
    %v3222 = vsel %vm369, %v3219, 0
    %3224 = vmatprep.subr.mxu0 0.0
    %3225 = vmatpush1.xpose.msra.mxu0 %v3222
    %3226 = vmatprep.subr.mxu0 0.0
    %3227 = vmatpush1.xpose.msra.mxu0 0.0
    %3228 = vmatprep.subr.mxu0 0.0
    %3229 = vmatpush1.xpose.msra.mxu0 0.0
    %3230 = vmatprep.subr.mxu0 0.0
    %3231 = vmatpush1.xpose.msra.mxu0 0.0
    %3232 = vmatprep.subr.mxu0 0.0
    %3233 = vmatpush1.xpose.msra.mxu0 0.0
    %3234 = vmatprep.subr.mxu0 0.0
    %3235 = vmatpush1.xpose.msra.mxu0 0.0
    %3236 = vmatprep.subr.mxu0 0.0
    %3237 = vmatpush1.xpose.msra.mxu0 0.0
    %3238 = vmatprep.subr.mxu0 0.0
    %3239 = vmatpush1.xpose.msra.mxu0 0.0
    %3240 = vmatprep.subr.mxu0 0.0
    %3241 = vmatpush1.xpose.msra.mxu0 0.0
    %3242 = vmatprep.subr.mxu0 0.0
    %3243 = vmatpush1.xpose.msra.mxu0 0.0
    %3244 = vmatprep.subr.mxu0 0.0
    %3245 = vmatpush1.xpose.msra.mxu0 0.0
    %3246 = vmatprep.subr.mxu0 0.0
    %3247 = vmatpush1.xpose.msra.mxu0 0.0
    %3248 = vmatprep.subr.mxu0 0.0
    %3249 = vmatpush1.xpose.msra.mxu0 0.0
    %3250 = vmatprep.subr.mxu0 0.0
    %3251 = vmatpush1.xpose.msra.mxu0 0.0
    %3252 = vmatprep.subr.mxu0 0.0
    %3253 = vmatpush1.xpose.msra.mxu0 0.0
    %3254 = vmatprep.subr.mxu0 0.0
    %3255 = vmatpush1.xpose.msra.mxu0 0.0
    %3256 = vmatprep.subr.mxu0 0.0
    %3257 = vmatpush1.xpose.msra.mxu0 0.0
    %3258 = vmatprep.subr.mxu0 0.0
    %3259 = vmatpush1.xpose.msra.mxu0 0.0
    %3260 = vmatprep.subr.mxu0 0.0
    %3261 = vmatpush1.xpose.msra.mxu0 0.0
    %3262 = vmatprep.subr.mxu0 0.0
    %3263 = vmatpush1.xpose.msra.mxu0 0.0
    %3264 = vmatprep.subr.mxu0 0.0
    %3265 = vmatpush1.xpose.msra.mxu0 0.0
    %3266 = vmatprep.subr.mxu0 0.0
    %3267 = vmatpush1.xpose.msra.mxu0 0.0
    %3268 = vmatprep.subr.mxu0 0.0
    %3269 = vmatpush1.xpose.msra.mxu0 0.0
    %3270 = vmatprep.subr.mxu0 0.0
    %3271 = vmatpush1.xpose.msra.mxu0 0.0
    %3272 = vmatprep.subr.mxu0 0.0
    %3273 = vmatpush1.xpose.msra.mxu0 0.0
    %3274 = vmatprep.subr.mxu0 0.0
    %3275 = vmatpush1.xpose.msra.mxu0 0.0
    %3276 = vmatprep.subr.mxu0 0.0
    %3277 = vmatpush1.xpose.msra.mxu0 0.0
    %3278 = vmatprep.subr.mxu0 0.0
    %3279 = vmatpush1.xpose.msra.mxu0 0.0
    %3280 = vmatprep.subr.mxu0 0.0
    %3281 = vmatpush1.xpose.msra.mxu0 0.0
    %3282 = vmatprep.subr.mxu0 0.0
    %3283 = vmatpush1.xpose.msra.mxu0 0.0
    %3284 = vmatprep.subr.mxu0 0.0
    %3285 = vmatpush1.xpose.msra.mxu0 0.0
    %3286 = vmatprep.subr.mxu0 0.0
    %3287 = vmatpush1.xpose.msra.mxu0 0.0
    %3288 = vmatprep.mubr.f32.mxu0 0.0
    %3289 = vmatmul.mubr.f32.gmra.mrb[0].mxu0 %v3220
    %v3290 = vpop.f32.mrb[0].mxu0
    %v3291 = vadd.f32 %v2031, %v3290
    %v3292 = vpop.f32.mrb[0].mxu0
    %3293 = vdwg.mxu0
    %3294 = vrot.lane.b32.xlu0 %v2159, 112
    %v3295 = vpop.permute.xlu0 %3294
    %3296 = vrot.lane.b32.xlu0 %v2289, 112
    %v3297 = vpop.permute.xlu0 %3296
    %v3298 = vsel %vm369, %v3295, 0
    %v3300 = vsel %vm369, %v3297, 0
    %3302 = vmatprep.subr.mxu0 0.0
    %3303 = vmatpush1.xpose.msra.mxu0 %v3300
    %3304 = vmatprep.subr.mxu0 0.0
    %3305 = vmatpush1.xpose.msra.mxu0 0.0
    %3306 = vmatprep.subr.mxu0 0.0
    %3307 = vmatpush1.xpose.msra.mxu0 0.0
    %3308 = vmatprep.subr.mxu0 0.0
    %3309 = vmatpush1.xpose.msra.mxu0 0.0
    %3310 = vmatprep.subr.mxu0 0.0
    %3311 = vmatpush1.xpose.msra.mxu0 0.0
    %3312 = vmatprep.subr.mxu0 0.0
    %3313 = vmatpush1.xpose.msra.mxu0 0.0
    %3314 = vmatprep.subr.mxu0 0.0
    %3315 = vmatpush1.xpose.msra.mxu0 0.0
    %3316 = vmatprep.subr.mxu0 0.0
    %3317 = vmatpush1.xpose.msra.mxu0 0.0
    %3318 = vmatprep.subr.mxu0 0.0
    %3319 = vmatpush1.xpose.msra.mxu0 0.0
    %3320 = vmatprep.subr.mxu0 0.0
    %3321 = vmatpush1.xpose.msra.mxu0 0.0
    %3322 = vmatprep.subr.mxu0 0.0
    %3323 = vmatpush1.xpose.msra.mxu0 0.0
    %3324 = vmatprep.subr.mxu0 0.0
    %3325 = vmatpush1.xpose.msra.mxu0 0.0
    %3326 = vmatprep.subr.mxu0 0.0
    %3327 = vmatpush1.xpose.msra.mxu0 0.0
    %3328 = vmatprep.subr.mxu0 0.0
    %3329 = vmatpush1.xpose.msra.mxu0 0.0
    %3330 = vmatprep.subr.mxu0 0.0
    %3331 = vmatpush1.xpose.msra.mxu0 0.0
    %3332 = vmatprep.subr.mxu0 0.0
    %3333 = vmatpush1.xpose.msra.mxu0 0.0
    %3334 = vmatprep.subr.mxu0 0.0
    %3335 = vmatpush1.xpose.msra.mxu0 0.0
    %3336 = vmatprep.subr.mxu0 0.0
    %3337 = vmatpush1.xpose.msra.mxu0 0.0
    %3338 = vmatprep.subr.mxu0 0.0
    %3339 = vmatpush1.xpose.msra.mxu0 0.0
    %3340 = vmatprep.subr.mxu0 0.0
    %3341 = vmatpush1.xpose.msra.mxu0 0.0
    %3342 = vmatprep.subr.mxu0 0.0
    %3343 = vmatpush1.xpose.msra.mxu0 0.0
    %3344 = vmatprep.subr.mxu0 0.0
    %3345 = vmatpush1.xpose.msra.mxu0 0.0
    %3346 = vmatprep.subr.mxu0 0.0
    %3347 = vmatpush1.xpose.msra.mxu0 0.0
    %3348 = vmatprep.subr.mxu0 0.0
    %3349 = vmatpush1.xpose.msra.mxu0 0.0
    %3350 = vmatprep.subr.mxu0 0.0
    %3351 = vmatpush1.xpose.msra.mxu0 0.0
    %3352 = vmatprep.subr.mxu0 0.0
    %3353 = vmatpush1.xpose.msra.mxu0 0.0
    %3354 = vmatprep.subr.mxu0 0.0
    %3355 = vmatpush1.xpose.msra.mxu0 0.0
    %3356 = vmatprep.subr.mxu0 0.0
    %3357 = vmatpush1.xpose.msra.mxu0 0.0
    %3358 = vmatprep.subr.mxu0 0.0
    %3359 = vmatpush1.xpose.msra.mxu0 0.0
    %3360 = vmatprep.subr.mxu0 0.0
    %3361 = vmatpush1.xpose.msra.mxu0 0.0
    %3362 = vmatprep.subr.mxu0 0.0
    %3363 = vmatpush1.xpose.msra.mxu0 0.0
    %3364 = vmatprep.subr.mxu0 0.0
    %3365 = vmatpush1.xpose.msra.mxu0 0.0
    %3366 = vmatprep.mubr.f32.mxu0 0.0
    %3367 = vmatmul.mubr.f32.gmra.mrb[0].mxu0 %v3298
    %v3368 = vpop.f32.mrb[0].mxu0
    %v3369 = vadd.f32 %v2031, %v3368
    %v3370 = vpop.f32.mrb[0].mxu0
    %3371 = vdwg.mxu0
    %v3372 = vmul.f32 %v3291, 0.35355338
    %v3373 = vmul.f32 %v3369, 0.35355338
    %v3374 = vsel %vm369, %v3372, -inf
    %3375 = vmax.xlane.f32.xlu0 %v3374
    %v3376 = vpop.xlane.xlu0 %3375
    %v3377 = vsel %vm369, %v3373, -inf
    %3378 = vmax.xlane.f32.xlu0 %v3377
    %v3379 = vpop.xlane.xlu0 %3378
    %v3380 = vsub.f32 %v3372, %v3376
    %v3381 = vsub.f32 %v3373, %v3379
    %v3382 = vmul.f32 %v3380, 1.442695
    %v3383 = vpow.pop %v3382
    %v3384 = vmul.f32 %v3381, 1.442695
    %v3385 = vpow.pop %v3384
    %v3386 = vsel %vm369, %v3383, 0.0
    %3387 = vadd.xlane.f32.xlu0 %v3386
    %v3388 = vpop.xlane.xlu0 %3387
    %v3389 = vsel %vm369, %v3385, 0.0
    %3390 = vadd.xlane.f32.xlu0 %v3389
    %v3391 = vpop.xlane.xlu0 %3390
    %v3392 = vrcp.pop %v3388
    %v3393 = vrcp.pop %v3391
    %v3394 = vmul.f32 %v3383, %v3392
    %v3395 = vmul.f32 %v3385, %v3393
    %3396 = vrot.lane.b32.xlu0 %v2388, 112
    %v3397 = vpop.permute.xlu0 %3396
    %v3400 = vsel %vm369, %v3394, 0
    %3402 = vmatprep.subr.mxu0 0.0
    %3403 = vmatpush1.msra.mxu0 %v3397
    %3404 = vmatprep.subr.mxu0 0.0
    %3405 = vmatpush1.msra.mxu0 0.0
    %3406 = vmatprep.subr.mxu0 0.0
    %3407 = vmatpush1.msra.mxu0 0.0
    %3408 = vmatprep.subr.mxu0 0.0
    %3409 = vmatpush1.msra.mxu0 0.0
    %3410 = vmatprep.subr.mxu0 0.0
    %3411 = vmatpush1.msra.mxu0 0.0
    %3412 = vmatprep.subr.mxu0 0.0
    %3413 = vmatpush1.msra.mxu0 0.0
    %3414 = vmatprep.subr.mxu0 0.0
    %3415 = vmatpush1.msra.mxu0 0.0
    %3416 = vmatprep.subr.mxu0 0.0
    %3417 = vmatpush1.msra.mxu0 0.0
    %3418 = vmatprep.subr.mxu0 0.0
    %3419 = vmatpush1.msra.mxu0 0.0
    %3420 = vmatprep.subr.mxu0 0.0
    %3421 = vmatpush1.msra.mxu0 0.0
    %3422 = vmatprep.subr.mxu0 0.0
    %3423 = vmatpush1.msra.mxu0 0.0
    %3424 = vmatprep.subr.mxu0 0.0
    %3425 = vmatpush1.msra.mxu0 0.0
    %3426 = vmatprep.subr.mxu0 0.0
    %3427 = vmatpush1.msra.mxu0 0.0
    %3428 = vmatprep.subr.mxu0 0.0
    %3429 = vmatpush1.msra.mxu0 0.0
    %3430 = vmatprep.subr.mxu0 0.0
    %3431 = vmatpush1.msra.mxu0 0.0
    %3432 = vmatprep.subr.mxu0 0.0
    %3433 = vmatpush1.msra.mxu0 0.0
    %3434 = vmatprep.subr.mxu0 0.0
    %3435 = vmatpush1.msra.mxu0 0.0
    %3436 = vmatprep.subr.mxu0 0.0
    %3437 = vmatpush1.msra.mxu0 0.0
    %3438 = vmatprep.subr.mxu0 0.0
    %3439 = vmatpush1.msra.mxu0 0.0
    %3440 = vmatprep.subr.mxu0 0.0
    %3441 = vmatpush1.msra.mxu0 0.0
    %3442 = vmatprep.subr.mxu0 0.0
    %3443 = vmatpush1.msra.mxu0 0.0
    %3444 = vmatprep.subr.mxu0 0.0
    %3445 = vmatpush1.msra.mxu0 0.0
    %3446 = vmatprep.subr.mxu0 0.0
    %3447 = vmatpush1.msra.mxu0 0.0
    %3448 = vmatprep.subr.mxu0 0.0
    %3449 = vmatpush1.msra.mxu0 0.0
    %3450 = vmatprep.subr.mxu0 0.0
    %3451 = vmatpush1.msra.mxu0 0.0
    %3452 = vmatprep.subr.mxu0 0.0
    %3453 = vmatpush1.msra.mxu0 0.0
    %3454 = vmatprep.subr.mxu0 0.0
    %3455 = vmatpush1.msra.mxu0 0.0
    %3456 = vmatprep.subr.mxu0 0.0
    %3457 = vmatpush1.msra.mxu0 0.0
    %3458 = vmatprep.subr.mxu0 0.0
    %3459 = vmatpush1.msra.mxu0 0.0
    %3460 = vmatprep.subr.mxu0 0.0
    %3461 = vmatpush1.msra.mxu0 0.0
    %3462 = vmatprep.subr.mxu0 0.0
    %3463 = vmatpush1.msra.mxu0 0.0
    %3464 = vmatprep.subr.mxu0 0.0
    %3465 = vmatpush1.msra.mxu0 0.0
    %3466 = vmatprep.mubr.f32.mxu0 0.0
    %3467 = vmatmul.mubr.f32.gmra.mrb[0].mxu0 %v3400
    %v3468 = vpop.f32.mrb[0].mxu0
    %v3469 = vadd.f32 0.0, %v3468
    %v3470 = vpop.f32.mrb[0].mxu0
    %3471 = vdwg.mxu0
    %3472 = vrot.lane.b32.xlu0 %v2393, 112
    %v3473 = vpop.permute.xlu0 %3472
    %v3476 = vsel %vm369, %v3395, 0
    %3478 = vmatprep.subr.mxu0 0.0
    %3479 = vmatpush1.msra.mxu0 %v3473
    %3480 = vmatprep.subr.mxu0 0.0
    %3481 = vmatpush1.msra.mxu0 0.0
    %3482 = vmatprep.subr.mxu0 0.0
    %3483 = vmatpush1.msra.mxu0 0.0
    %3484 = vmatprep.subr.mxu0 0.0
    %3485 = vmatpush1.msra.mxu0 0.0
    %3486 = vmatprep.subr.mxu0 0.0
    %3487 = vmatpush1.msra.mxu0 0.0
    %3488 = vmatprep.subr.mxu0 0.0
    %3489 = vmatpush1.msra.mxu0 0.0
    %3490 = vmatprep.subr.mxu0 0.0
    %3491 = vmatpush1.msra.mxu0 0.0
    %3492 = vmatprep.subr.mxu0 0.0
    %3493 = vmatpush1.msra.mxu0 0.0
    %3494 = vmatprep.subr.mxu0 0.0
    %3495 = vmatpush1.msra.mxu0 0.0
    %3496 = vmatprep.subr.mxu0 0.0
    %3497 = vmatpush1.msra.mxu0 0.0
    %3498 = vmatprep.subr.mxu0 0.0
    %3499 = vmatpush1.msra.mxu0 0.0
    %3500 = vmatprep.subr.mxu0 0.0
    %3501 = vmatpush1.msra.mxu0 0.0
    %3502 = vmatprep.subr.mxu0 0.0
    %3503 = vmatpush1.msra.mxu0 0.0
    %3504 = vmatprep.subr.mxu0 0.0
    %3505 = vmatpush1.msra.mxu0 0.0
    %3506 = vmatprep.subr.mxu0 0.0
    %3507 = vmatpush1.msra.mxu0 0.0
    %3508 = vmatprep.subr.mxu0 0.0
    %3509 = vmatpush1.msra.mxu0 0.0
    %3510 = vmatprep.subr.mxu0 0.0
    %3511 = vmatpush1.msra.mxu0 0.0
    %3512 = vmatprep.subr.mxu0 0.0
    %3513 = vmatpush1.msra.mxu0 0.0
    %3514 = vmatprep.subr.mxu0 0.0
    %3515 = vmatpush1.msra.mxu0 0.0
    %3516 = vmatprep.subr.mxu0 0.0
    %3517 = vmatpush1.msra.mxu0 0.0
    %3518 = vmatprep.subr.mxu0 0.0
    %3519 = vmatpush1.msra.mxu0 0.0
    %3520 = vmatprep.subr.mxu0 0.0
    %3521 = vmatpush1.msra.mxu0 0.0
    %3522 = vmatprep.subr.mxu0 0.0
    %3523 = vmatpush1.msra.mxu0 0.0
    %3524 = vmatprep.subr.mxu0 0.0
    %3525 = vmatpush1.msra.mxu0 0.0
    %3526 = vmatprep.subr.mxu0 0.0
    %3527 = vmatpush1.msra.mxu0 0.0
    %3528 = vmatprep.subr.mxu0 0.0
    %3529 = vmatpush1.msra.mxu0 0.0
    %3530 = vmatprep.subr.mxu0 0.0
    %3531 = vmatpush1.msra.mxu0 0.0
    %3532 = vmatprep.subr.mxu0 0.0
    %3533 = vmatpush1.msra.mxu0 0.0
    %3534 = vmatprep.subr.mxu0 0.0
    %3535 = vmatpush1.msra.mxu0 0.0
    %3536 = vmatprep.subr.mxu0 0.0
    %3537 = vmatpush1.msra.mxu0 0.0
    %3538 = vmatprep.subr.mxu0 0.0
    %3539 = vmatpush1.msra.mxu0 0.0
    %3540 = vmatprep.subr.mxu0 0.0
    %3541 = vmatpush1.msra.mxu0 0.0
    %3542 = vmatprep.mubr.f32.mxu0 0.0
    %3543 = vmatmul.mubr.f32.gmra.mrb[0].mxu0 %v3476
    %v3544 = vpop.f32.mrb[0].mxu0
    %v3545 = vadd.f32 0.0, %v3544
    %v3546 = vpop.f32.mrb[0].mxu0
    %3547 = vdwg.mxu0
    %v3548 = vld [vmem:[%s4 + $0xf0] sm:$0xff]
    %v3550 = vsel %vm369, %v3469, 0
    %v3553 = vsel %vm369, %v3545, 0
    %3555 = vmatprep.subr.mxu0 0.0
    %3556 = vmatpush1.msra.mxu0 %v3548
    %3557 = vmatprep.subr.mxu0 0.0
    %3558 = vmatpush1.msra.mxu0 0.0
    %3559 = vmatprep.subr.mxu0 0.0
    %3560 = vmatpush1.msra.mxu0 0.0
    %3561 = vmatprep.subr.mxu0 0.0
    %3562 = vmatpush1.msra.mxu0 0.0
    %3563 = vmatprep.subr.mxu0 0.0
    %3564 = vmatpush1.msra.mxu0 0.0
    %3565 = vmatprep.subr.mxu0 0.0
    %3566 = vmatpush1.msra.mxu0 0.0
    %3567 = vmatprep.subr.mxu0 0.0
    %3568 = vmatpush1.msra.mxu0 0.0
    %3569 = vmatprep.subr.mxu0 0.0
    %3570 = vmatpush1.msra.mxu0 0.0
    %3571 = vmatprep.subr.mxu0 0.0
    %3572 = vmatpush1.msra.mxu0 0.0
    %3573 = vmatprep.subr.mxu0 0.0
    %3574 = vmatpush1.msra.mxu0 0.0
    %3575 = vmatprep.subr.mxu0 0.0
    %3576 = vmatpush1.msra.mxu0 0.0
    %3577 = vmatprep.subr.mxu0 0.0
    %3578 = vmatpush1.msra.mxu0 0.0
    %3579 = vmatprep.subr.mxu0 0.0
    %3580 = vmatpush1.msra.mxu0 0.0
    %3581 = vmatprep.subr.mxu0 0.0
    %3582 = vmatpush1.msra.mxu0 0.0
    %3583 = vmatprep.subr.mxu0 0.0
    %3584 = vmatpush1.msra.mxu0 0.0
    %3585 = vmatprep.subr.mxu0 0.0
    %3586 = vmatpush1.msra.mxu0 0.0
    %3587 = vmatprep.subr.mxu0 0.0
    %3588 = vmatpush1.msra.mxu0 0.0
    %3589 = vmatprep.subr.mxu0 0.0
    %3590 = vmatpush1.msra.mxu0 0.0
    %3591 = vmatprep.subr.mxu0 0.0
    %3592 = vmatpush1.msra.mxu0 0.0
    %3593 = vmatprep.subr.mxu0 0.0
    %3594 = vmatpush1.msra.mxu0 0.0
    %3595 = vmatprep.subr.mxu0 0.0
    %3596 = vmatpush1.msra.mxu0 0.0
    %3597 = vmatprep.subr.mxu0 0.0
    %3598 = vmatpush1.msra.mxu0 0.0
    %3599 = vmatprep.subr.mxu0 0.0
    %3600 = vmatpush1.msra.mxu0 0.0
    %3601 = vmatprep.subr.mxu0 0.0
    %3602 = vmatpush1.msra.mxu0 0.0
    %3603 = vmatprep.subr.mxu0 0.0
    %3604 = vmatpush1.msra.mxu0 0.0
    %3605 = vmatprep.subr.mxu0 0.0
    %3606 = vmatpush1.msra.mxu0 0.0
    %3607 = vmatprep.subr.mxu0 0.0
    %3608 = vmatpush1.msra.mxu0 0.0
    %3609 = vmatprep.subr.mxu0 0.0
    %3610 = vmatpush1.msra.mxu0 0.0
    %3611 = vmatprep.subr.mxu0 0.0
    %3612 = vmatpush1.msra.mxu0 0.0
    %3613 = vmatprep.subr.mxu0 0.0
    %3614 = vmatpush1.msra.mxu0 0.0
    %3615 = vmatprep.subr.mxu0 0.0
    %3616 = vmatpush1.msra.mxu0 0.0
    %3617 = vmatprep.subr.mxu0 0.0
    %3618 = vmatpush1.msra.mxu0 0.0
    %3619 = vmatprep.mubr.f32.mxu0 0.0
    %3620 = vmatmul.mubr.f32.gmra.mrb[0].mxu0 %v3550
    %v3621 = vpop.f32.mrb[0].mxu0
    %v3622 = vadd.f32 0.0, %v3621
    %v3623 = vpop.f32.mrb[0].mxu0
    %3624 = vmatprep.mubr.f32.mxu0 0.0
    %3625 = vmatmul.mubr.f32.gmra.mrb[0].mxu0 %v3553
    %v3626 = vpop.f32.mrb[0].mxu0
    %v3627 = vadd.f32 0.0, %v3626
    %v3628 = vpop.f32.mrb[0].mxu0
    %3629 = vdwg.mxu0
    %v3630 = vadd.f32 %v3208, %v3622
    %v3631 = vadd.f32 %v3213, %v3627
    %3632 = vrot.lane.b32.xlu0 %v2154, 104
    %v3633 = vpop.permute.xlu0 %3632
    %3634 = vrot.lane.b32.xlu0 %v2284, 104
    %v3635 = vpop.permute.xlu0 %3634
    %v3636 = vsel %vm369, %v3633, 0
    %v3638 = vsel %vm369, %v3635, 0
    %3640 = vmatprep.subr.mxu0 0.0
    %3641 = vmatpush1.xpose.msra.mxu0 %v3638
    %3642 = vmatprep.subr.mxu0 0.0
    %3643 = vmatpush1.xpose.msra.mxu0 0.0
    %3644 = vmatprep.subr.mxu0 0.0
    %3645 = vmatpush1.xpose.msra.mxu0 0.0
    %3646 = vmatprep.subr.mxu0 0.0
    %3647 = vmatpush1.xpose.msra.mxu0 0.0
    %3648 = vmatprep.subr.mxu0 0.0
    %3649 = vmatpush1.xpose.msra.mxu0 0.0
    %3650 = vmatprep.subr.mxu0 0.0
    %3651 = vmatpush1.xpose.msra.mxu0 0.0
    %3652 = vmatprep.subr.mxu0 0.0
    %3653 = vmatpush1.xpose.msra.mxu0 0.0
    %3654 = vmatprep.subr.mxu0 0.0
    %3655 = vmatpush1.xpose.msra.mxu0 0.0
    %3656 = vmatprep.subr.mxu0 0.0
    %3657 = vmatpush1.xpose.msra.mxu0 0.0
    %3658 = vmatprep.subr.mxu0 0.0
    %3659 = vmatpush1.xpose.msra.mxu0 0.0
    %3660 = vmatprep.subr.mxu0 0.0
    %3661 = vmatpush1.xpose.msra.mxu0 0.0
    %3662 = vmatprep.subr.mxu0 0.0
    %3663 = vmatpush1.xpose.msra.mxu0 0.0
    %3664 = vmatprep.subr.mxu0 0.0
    %3665 = vmatpush1.xpose.msra.mxu0 0.0
    %3666 = vmatprep.subr.mxu0 0.0
    %3667 = vmatpush1.xpose.msra.mxu0 0.0
    %3668 = vmatprep.subr.mxu0 0.0
    %3669 = vmatpush1.xpose.msra.mxu0 0.0
    %3670 = vmatprep.subr.mxu0 0.0
    %3671 = vmatpush1.xpose.msra.mxu0 0.0
    %3672 = vmatprep.subr.mxu0 0.0
    %3673 = vmatpush1.xpose.msra.mxu0 0.0
    %3674 = vmatprep.subr.mxu0 0.0
    %3675 = vmatpush1.xpose.msra.mxu0 0.0
    %3676 = vmatprep.subr.mxu0 0.0
    %3677 = vmatpush1.xpose.msra.mxu0 0.0
    %3678 = vmatprep.subr.mxu0 0.0
    %3679 = vmatpush1.xpose.msra.mxu0 0.0
    %3680 = vmatprep.subr.mxu0 0.0
    %3681 = vmatpush1.xpose.msra.mxu0 0.0
    %3682 = vmatprep.subr.mxu0 0.0
    %3683 = vmatpush1.xpose.msra.mxu0 0.0
    %3684 = vmatprep.subr.mxu0 0.0
    %3685 = vmatpush1.xpose.msra.mxu0 0.0
    %3686 = vmatprep.subr.mxu0 0.0
    %3687 = vmatpush1.xpose.msra.mxu0 0.0
    %3688 = vmatprep.subr.mxu0 0.0
    %3689 = vmatpush1.xpose.msra.mxu0 0.0
    %3690 = vmatprep.subr.mxu0 0.0
    %3691 = vmatpush1.xpose.msra.mxu0 0.0
    %3692 = vmatprep.subr.mxu0 0.0
    %3693 = vmatpush1.xpose.msra.mxu0 0.0
    %3694 = vmatprep.subr.mxu0 0.0
    %3695 = vmatpush1.xpose.msra.mxu0 0.0
    %3696 = vmatprep.subr.mxu0 0.0
    %3697 = vmatpush1.xpose.msra.mxu0 0.0
    %3698 = vmatprep.subr.mxu0 0.0
    %3699 = vmatpush1.xpose.msra.mxu0 0.0
    %3700 = vmatprep.subr.mxu0 0.0
    %3701 = vmatpush1.xpose.msra.mxu0 0.0
    %3702 = vmatprep.subr.mxu0 0.0
    %3703 = vmatpush1.xpose.msra.mxu0 0.0
    %3704 = vmatprep.mubr.f32.mxu0 0.0
    %3705 = vmatmul.mubr.f32.gmra.mrb[0].mxu0 %v3636
    %v3706 = vpop.f32.mrb[0].mxu0
    %v3707 = vadd.f32 %v2031, %v3706
    %v3708 = vpop.f32.mrb[0].mxu0
    %3709 = vdwg.mxu0
    %3710 = vrot.lane.b32.xlu0 %v2159, 104
    %v3711 = vpop.permute.xlu0 %3710
    %3712 = vrot.lane.b32.xlu0 %v2289, 104
    %v3713 = vpop.permute.xlu0 %3712
    %v3714 = vsel %vm369, %v3711, 0
    %v3716 = vsel %vm369, %v3713, 0
    %3718 = vmatprep.subr.mxu0 0.0
    %3719 = vmatpush1.xpose.msra.mxu0 %v3716
    %3720 = vmatprep.subr.mxu0 0.0
    %3721 = vmatpush1.xpose.msra.mxu0 0.0
    %3722 = vmatprep.subr.mxu0 0.0
    %3723 = vmatpush1.xpose.msra.mxu0 0.0
    %3724 = vmatprep.subr.mxu0 0.0
    %3725 = vmatpush1.xpose.msra.mxu0 0.0
    %3726 = vmatprep.subr.mxu0 0.0
    %3727 = vmatpush1.xpose.msra.mxu0 0.0
    %3728 = vmatprep.subr.mxu0 0.0
    %3729 = vmatpush1.xpose.msra.mxu0 0.0
    %3730 = vmatprep.subr.mxu0 0.0
    %3731 = vmatpush1.xpose.msra.mxu0 0.0
    %3732 = vmatprep.subr.mxu0 0.0
    %3733 = vmatpush1.xpose.msra.mxu0 0.0
    %3734 = vmatprep.subr.mxu0 0.0
    %3735 = vmatpush1.xpose.msra.mxu0 0.0
    %3736 = vmatprep.subr.mxu0 0.0
    %3737 = vmatpush1.xpose.msra.mxu0 0.0
    %3738 = vmatprep.subr.mxu0 0.0
    %3739 = vmatpush1.xpose.msra.mxu0 0.0
    %3740 = vmatprep.subr.mxu0 0.0
    %3741 = vmatpush1.xpose.msra.mxu0 0.0
    %3742 = vmatprep.subr.mxu0 0.0
    %3743 = vmatpush1.xpose.msra.mxu0 0.0
    %3744 = vmatprep.subr.mxu0 0.0
    %3745 = vmatpush1.xpose.msra.mxu0 0.0
    %3746 = vmatprep.subr.mxu0 0.0
    %3747 = vmatpush1.xpose.msra.mxu0 0.0
    %3748 = vmatprep.subr.mxu0 0.0
    %3749 = vmatpush1.xpose.msra.mxu0 0.0
    %3750 = vmatprep.subr.mxu0 0.0
    %3751 = vmatpush1.xpose.msra.mxu0 0.0
    %3752 = vmatprep.subr.mxu0 0.0
    %3753 = vmatpush1.xpose.msra.mxu0 0.0
    %3754 = vmatprep.subr.mxu0 0.0
    %3755 = vmatpush1.xpose.msra.mxu0 0.0
    %3756 = vmatprep.subr.mxu0 0.0
    %3757 = vmatpush1.xpose.msra.mxu0 0.0
    %3758 = vmatprep.subr.mxu0 0.0
    %3759 = vmatpush1.xpose.msra.mxu0 0.0
    %3760 = vmatprep.subr.mxu0 0.0
    %3761 = vmatpush1.xpose.msra.mxu0 0.0
    %3762 = vmatprep.subr.mxu0 0.0
    %3763 = vmatpush1.xpose.msra.mxu0 0.0
    %3764 = vmatprep.subr.mxu0 0.0
    %3765 = vmatpush1.xpose.msra.mxu0 0.0
    %3766 = vmatprep.subr.mxu0 0.0
    %3767 = vmatpush1.xpose.msra.mxu0 0.0
    %3768 = vmatprep.subr.mxu0 0.0
    %3769 = vmatpush1.xpose.msra.mxu0 0.0
    %3770 = vmatprep.subr.mxu0 0.0
    %3771 = vmatpush1.xpose.msra.mxu0 0.0
    %3772 = vmatprep.subr.mxu0 0.0
    %3773 = vmatpush1.xpose.msra.mxu0 0.0
    %3774 = vmatprep.subr.mxu0 0.0
    %3775 = vmatpush1.xpose.msra.mxu0 0.0
    %3776 = vmatprep.subr.mxu0 0.0
    %3777 = vmatpush1.xpose.msra.mxu0 0.0
    %3778 = vmatprep.subr.mxu0 0.0
    %3779 = vmatpush1.xpose.msra.mxu0 0.0
    %3780 = vmatprep.subr.mxu0 0.0
    %3781 = vmatpush1.xpose.msra.mxu0 0.0
    %3782 = vmatprep.mubr.f32.mxu0 0.0
    %3783 = vmatmul.mubr.f32.gmra.mrb[0].mxu0 %v3714
    %v3784 = vpop.f32.mrb[0].mxu0
    %v3785 = vadd.f32 %v2031, %v3784
    %v3786 = vpop.f32.mrb[0].mxu0
    %3787 = vdwg.mxu0
    %v3788 = vmul.f32 %v3707, 0.35355338
    %v3789 = vmul.f32 %v3785, 0.35355338
    %v3790 = vsel %vm369, %v3788, -inf
    %3791 = vmax.xlane.f32.xlu0 %v3790
    %v3792 = vpop.xlane.xlu0 %3791
    %v3793 = vsel %vm369, %v3789, -inf
    %3794 = vmax.xlane.f32.xlu0 %v3793
    %v3795 = vpop.xlane.xlu0 %3794
    %v3796 = vsub.f32 %v3788, %v3792
    %v3797 = vsub.f32 %v3789, %v3795
    %v3798 = vmul.f32 %v3796, 1.442695
    %v3799 = vpow.pop %v3798
    %v3800 = vmul.f32 %v3797, 1.442695
    %v3801 = vpow.pop %v3800
    %v3802 = vsel %vm369, %v3799, 0.0
    %3803 = vadd.xlane.f32.xlu0 %v3802
    %v3804 = vpop.xlane.xlu0 %3803
    %v3805 = vsel %vm369, %v3801, 0.0
    %3806 = vadd.xlane.f32.xlu0 %v3805
    %v3807 = vpop.xlane.xlu0 %3806
    %v3808 = vrcp.pop %v3804
    %v3809 = vrcp.pop %v3807
    %v3810 = vmul.f32 %v3799, %v3808
    %v3811 = vmul.f32 %v3801, %v3809
    %3812 = vrot.lane.b32.xlu0 %v2388, 104
    %v3813 = vpop.permute.xlu0 %3812
    %v3816 = vsel %vm369, %v3810, 0
    %3818 = vmatprep.subr.mxu0 0.0
    %3819 = vmatpush1.msra.mxu0 %v3813
    %3820 = vmatprep.subr.mxu0 0.0
    %3821 = vmatpush1.msra.mxu0 0.0
    %3822 = vmatprep.subr.mxu0 0.0
    %3823 = vmatpush1.msra.mxu0 0.0
    %3824 = vmatprep.subr.mxu0 0.0
    %3825 = vmatpush1.msra.mxu0 0.0
    %3826 = vmatprep.subr.mxu0 0.0
    %3827 = vmatpush1.msra.mxu0 0.0
    %3828 = vmatprep.subr.mxu0 0.0
    %3829 = vmatpush1.msra.mxu0 0.0
    %3830 = vmatprep.subr.mxu0 0.0
    %3831 = vmatpush1.msra.mxu0 0.0
    %3832 = vmatprep.subr.mxu0 0.0
    %3833 = vmatpush1.msra.mxu0 0.0
    %3834 = vmatprep.subr.mxu0 0.0
    %3835 = vmatpush1.msra.mxu0 0.0
    %3836 = vmatprep.subr.mxu0 0.0
    %3837 = vmatpush1.msra.mxu0 0.0
    %3838 = vmatprep.subr.mxu0 0.0
    %3839 = vmatpush1.msra.mxu0 0.0
    %3840 = vmatprep.subr.mxu0 0.0
    %3841 = vmatpush1.msra.mxu0 0.0
    %3842 = vmatprep.subr.mxu0 0.0
    %3843 = vmatpush1.msra.mxu0 0.0
    %3844 = vmatprep.subr.mxu0 0.0
    %3845 = vmatpush1.msra.mxu0 0.0
    %3846 = vmatprep.subr.mxu0 0.0
    %3847 = vmatpush1.msra.mxu0 0.0
    %3848 = vmatprep.subr.mxu0 0.0
    %3849 = vmatpush1.msra.mxu0 0.0
    %3850 = vmatprep.subr.mxu0 0.0
    %3851 = vmatpush1.msra.mxu0 0.0
    %3852 = vmatprep.subr.mxu0 0.0
    %3853 = vmatpush1.msra.mxu0 0.0
    %3854 = vmatprep.subr.mxu0 0.0
    %3855 = vmatpush1.msra.mxu0 0.0
    %3856 = vmatprep.subr.mxu0 0.0
    %3857 = vmatpush1.msra.mxu0 0.0
    %3858 = vmatprep.subr.mxu0 0.0
    %3859 = vmatpush1.msra.mxu0 0.0
    %3860 = vmatprep.subr.mxu0 0.0
    %3861 = vmatpush1.msra.mxu0 0.0
    %3862 = vmatprep.subr.mxu0 0.0
    %3863 = vmatpush1.msra.mxu0 0.0
    %3864 = vmatprep.subr.mxu0 0.0
    %3865 = vmatpush1.msra.mxu0 0.0
    %3866 = vmatprep.subr.mxu0 0.0
    %3867 = vmatpush1.msra.mxu0 0.0
    %3868 = vmatprep.subr.mxu0 0.0
    %3869 = vmatpush1.msra.mxu0 0.0
    %3870 = vmatprep.subr.mxu0 0.0
    %3871 = vmatpush1.msra.mxu0 0.0
    %3872 = vmatprep.subr.mxu0 0.0
    %3873 = vmatpush1.msra.mxu0 0.0
    %3874 = vmatprep.subr.mxu0 0.0
    %3875 = vmatpush1.msra.mxu0 0.0
    %3876 = vmatprep.subr.mxu0 0.0
    %3877 = vmatpush1.msra.mxu0 0.0
    %3878 = vmatprep.subr.mxu0 0.0
    %3879 = vmatpush1.msra.mxu0 0.0
    %3880 = vmatprep.subr.mxu0 0.0
    %3881 = vmatpush1.msra.mxu0 0.0
    %3882 = vmatprep.mubr.f32.mxu0 0.0
    %3883 = vmatmul.mubr.f32.gmra.mrb[0].mxu0 %v3816
    %v3884 = vpop.f32.mrb[0].mxu0
    %v3885 = vadd.f32 0.0, %v3884
    %v3886 = vpop.f32.mrb[0].mxu0
    %3887 = vdwg.mxu0
    %3888 = vrot.lane.b32.xlu0 %v2393, 104
    %v3889 = vpop.permute.xlu0 %3888
    %v3892 = vsel %vm369, %v3811, 0
    %3894 = vmatprep.subr.mxu0 0.0
    %3895 = vmatpush1.msra.mxu0 %v3889
    %3896 = vmatprep.subr.mxu0 0.0
    %3897 = vmatpush1.msra.mxu0 0.0
    %3898 = vmatprep.subr.mxu0 0.0
    %3899 = vmatpush1.msra.mxu0 0.0
    %3900 = vmatprep.subr.mxu0 0.0
    %3901 = vmatpush1.msra.mxu0 0.0
    %3902 = vmatprep.subr.mxu0 0.0
    %3903 = vmatpush1.msra.mxu0 0.0
    %3904 = vmatprep.subr.mxu0 0.0
    %3905 = vmatpush1.msra.mxu0 0.0
    %3906 = vmatprep.subr.mxu0 0.0
    %3907 = vmatpush1.msra.mxu0 0.0
    %3908 = vmatprep.subr.mxu0 0.0
    %3909 = vmatpush1.msra.mxu0 0.0
    %3910 = vmatprep.subr.mxu0 0.0
    %3911 = vmatpush1.msra.mxu0 0.0
    %3912 = vmatprep.subr.mxu0 0.0
    %3913 = vmatpush1.msra.mxu0 0.0
    %3914 = vmatprep.subr.mxu0 0.0
    %3915 = vmatpush1.msra.mxu0 0.0
    %3916 = vmatprep.subr.mxu0 0.0
    %3917 = vmatpush1.msra.mxu0 0.0
    %3918 = vmatprep.subr.mxu0 0.0
    %3919 = vmatpush1.msra.mxu0 0.0
    %3920 = vmatprep.subr.mxu0 0.0
    %3921 = vmatpush1.msra.mxu0 0.0
    %3922 = vmatprep.subr.mxu0 0.0
    %3923 = vmatpush1.msra.mxu0 0.0
    %3924 = vmatprep.subr.mxu0 0.0
    %3925 = vmatpush1.msra.mxu0 0.0
    %3926 = vmatprep.subr.mxu0 0.0
    %3927 = vmatpush1.msra.mxu0 0.0
    %3928 = vmatprep.subr.mxu0 0.0
    %3929 = vmatpush1.msra.mxu0 0.0
    %3930 = vmatprep.subr.mxu0 0.0
    %3931 = vmatpush1.msra.mxu0 0.0
    %3932 = vmatprep.subr.mxu0 0.0
    %3933 = vmatpush1.msra.mxu0 0.0
    %3934 = vmatprep.subr.mxu0 0.0
    %3935 = vmatpush1.msra.mxu0 0.0
    %3936 = vmatprep.subr.mxu0 0.0
    %3937 = vmatpush1.msra.mxu0 0.0
    %3938 = vmatprep.subr.mxu0 0.0
    %3939 = vmatpush1.msra.mxu0 0.0
    %3940 = vmatprep.subr.mxu0 0.0
    %3941 = vmatpush1.msra.mxu0 0.0
    %3942 = vmatprep.subr.mxu0 0.0
    %3943 = vmatpush1.msra.mxu0 0.0
    %3944 = vmatprep.subr.mxu0 0.0
    %3945 = vmatpush1.msra.mxu0 0.0
    %3946 = vmatprep.subr.mxu0 0.0
    %3947 = vmatpush1.msra.mxu0 0.0
    %3948 = vmatprep.subr.mxu0 0.0
    %3949 = vmatpush1.msra.mxu0 0.0
    %3950 = vmatprep.subr.mxu0 0.0
    %3951 = vmatpush1.msra.mxu0 0.0
    %3952 = vmatprep.subr.mxu0 0.0
    %3953 = vmatpush1.msra.mxu0 0.0
    %3954 = vmatprep.subr.mxu0 0.0
    %3955 = vmatpush1.msra.mxu0 0.0
    %3956 = vmatprep.subr.mxu0 0.0
    %3957 = vmatpush1.msra.mxu0 0.0
    %3958 = vmatprep.mubr.f32.mxu0 0.0
    %3959 = vmatmul.mubr.f32.gmra.mrb[0].mxu0 %v3892
    %v3960 = vpop.f32.mrb[0].mxu0
    %v3961 = vadd.f32 0.0, %v3960
    %v3962 = vpop.f32.mrb[0].mxu0
    %3963 = vdwg.mxu0
    %v3964 = vld [vmem:[%s4 + $0xf8] sm:$0xff]
    %v3966 = vsel %vm369, %v3885, 0
    %v3969 = vsel %vm369, %v3961, 0
    %3971 = vmatprep.subr.mxu0 0.0
    %3972 = vmatpush1.msra.mxu0 %v3964
    %3973 = vmatprep.subr.mxu0 0.0
    %3974 = vmatpush1.msra.mxu0 0.0
    %3975 = vmatprep.subr.mxu0 0.0
    %3976 = vmatpush1.msra.mxu0 0.0
    %3977 = vmatprep.subr.mxu0 0.0
    %3978 = vmatpush1.msra.mxu0 0.0
    %3979 = vmatprep.subr.mxu0 0.0
    %3980 = vmatpush1.msra.mxu0 0.0
    %3981 = vmatprep.subr.mxu0 0.0
    %3982 = vmatpush1.msra.mxu0 0.0
    %3983 = vmatprep.subr.mxu0 0.0
    %3984 = vmatpush1.msra.mxu0 0.0
    %3985 = vmatprep.subr.mxu0 0.0
    %3986 = vmatpush1.msra.mxu0 0.0
    %3987 = vmatprep.subr.mxu0 0.0
    %3988 = vmatpush1.msra.mxu0 0.0
    %3989 = vmatprep.subr.mxu0 0.0
    %3990 = vmatpush1.msra.mxu0 0.0
    %3991 = vmatprep.subr.mxu0 0.0
    %3992 = vmatpush1.msra.mxu0 0.0
    %3993 = vmatprep.subr.mxu0 0.0
    %3994 = vmatpush1.msra.mxu0 0.0
    %3995 = vmatprep.subr.mxu0 0.0
    %3996 = vmatpush1.msra.mxu0 0.0
    %3997 = vmatprep.subr.mxu0 0.0
    %3998 = vmatpush1.msra.mxu0 0.0
    %3999 = vmatprep.subr.mxu0 0.0
    %4000 = vmatpush1.msra.mxu0 0.0
    %4001 = vmatprep.subr.mxu0 0.0
    %4002 = vmatpush1.msra.mxu0 0.0
    %4003 = vmatprep.subr.mxu0 0.0
    %4004 = vmatpush1.msra.mxu0 0.0
    %4005 = vmatprep.subr.mxu0 0.0
    %4006 = vmatpush1.msra.mxu0 0.0
    %4007 = vmatprep.subr.mxu0 0.0
    %4008 = vmatpush1.msra.mxu0 0.0
    %4009 = vmatprep.subr.mxu0 0.0
    %4010 = vmatpush1.msra.mxu0 0.0
    %4011 = vmatprep.subr.mxu0 0.0
    %4012 = vmatpush1.msra.mxu0 0.0
    %4013 = vmatprep.subr.mxu0 0.0
    %4014 = vmatpush1.msra.mxu0 0.0
    %4015 = vmatprep.subr.mxu0 0.0
    %4016 = vmatpush1.msra.mxu0 0.0
    %4017 = vmatprep.subr.mxu0 0.0
    %4018 = vmatpush1.msra.mxu0 0.0
    %4019 = vmatprep.subr.mxu0 0.0
    %4020 = vmatpush1.msra.mxu0 0.0
    %4021 = vmatprep.subr.mxu0 0.0
    %4022 = vmatpush1.msra.mxu0 0.0
    %4023 = vmatprep.subr.mxu0 0.0
    %4024 = vmatpush1.msra.mxu0 0.0
    %4025 = vmatprep.subr.mxu0 0.0
    %4026 = vmatpush1.msra.mxu0 0.0
    %4027 = vmatprep.subr.mxu0 0.0
    %4028 = vmatpush1.msra.mxu0 0.0
    %4029 = vmatprep.subr.mxu0 0.0
    %4030 = vmatpush1.msra.mxu0 0.0
    %4031 = vmatprep.subr.mxu0 0.0
    %4032 = vmatpush1.msra.mxu0 0.0
    %4033 = vmatprep.subr.mxu0 0.0
    %4034 = vmatpush1.msra.mxu0 0.0
    %4035 = vmatprep.mubr.f32.mxu0 0.0
    %4036 = vmatmul.mubr.f32.gmra.mrb[0].mxu0 %v3966
    %v4037 = vpop.f32.mrb[0].mxu0
    %v4038 = vadd.f32 0.0, %v4037
    %v4039 = vpop.f32.mrb[0].mxu0
    %4040 = vmatprep.mubr.f32.mxu0 0.0
    %4041 = vmatmul.mubr.f32.gmra.mrb[0].mxu0 %v3969
    %v4042 = vpop.f32.mrb[0].mxu0
    %v4043 = vadd.f32 0.0, %v4042
    %v4044 = vpop.f32.mrb[0].mxu0
    %4045 = vdwg.mxu0
    %v4046 = vadd.f32 %v3630, %v4038
    %v4047 = vadd.f32 %v3631, %v4043
    %v4048 = vld [vmem:[%s5 + $0x13] sm:$0x1]
    %v4049 = vlaneseq
    %v4050 = vshrl.u32 %v4049, 7
    %v4051 = vsub.s32 0, %v4050
    %v4052 = vrot.slane %v4048, %v4051
    %v4053 = vadd.f32 %v4046, %v4052
    %v4054 = vadd.f32 %v4047, %v4052
    %v4055 = vadd.f32 %v4053, %v2029
    %v4056 = vadd.f32 %v4054, %v2030
    %v4057 = vld [vmem:[%s5 + $0x14] sm:$0x1]
    %v4058 = vld [vmem:[%s5 + $0x15] sm:$0x1]
    %v4059 = vsel %vm31, %v4055, 0.0
    %4060 = vadd.xlane.f32.xlu0 %v4059
    %v4061 = vpop.xlane.xlu0 %4060
    %v4062 = vsel %vm31, %v4056, 0.0
    %4063 = vadd.xlane.f32.xlu0 %v4062
    %v4064 = vpop.xlane.xlu0 %4063
    %v4065 = vmul.f32 %v4061, %v38
    %v4066 = vmul.f32 %v4064, %v38
    %v4067 = vsub.f32 %v4055, %v4065
    %v4068 = vsub.f32 %v4056, %v4066
    %v4069 = vmul.f32 %v4067, %v4067
    %v4070 = vmul.f32 %v4068, %v4068
    %v4071 = vsel %vm31, %v4069, 0.0
    %4072 = vadd.xlane.f32.xlu0 %v4071
    %v4073 = vpop.xlane.xlu0 %4072
    %v4074 = vsel %vm31, %v4070, 0.0
    %4075 = vadd.xlane.f32.xlu0 %v4074
    %v4076 = vpop.xlane.xlu0 %4075
    %v4077 = vmul.f32 %v4073, %v38
    %v4078 = vmul.f32 %v4076, %v38
    %v4079 = vadd.f32 %v4077, 1e-05
    %v4080 = vadd.f32 %v4078, 1e-05
    %v4081 = vrsqrt.pop %v4079
    %v4082 = vrsqrt.pop %v4080
    %v4083 = vmul.f32 %v4067, %v4081
    %v4084 = vmul.f32 %v4068, %v4082
    %v4085 = vlaneseq
    %v4086 = vshrl.u32 %v4085, 7
    %v4087 = vsub.s32 0, %v4086
    %v4088 = vrot.slane %v4057, %v4087
    %v4089 = vmul.f32 %v4083, %v4088
    %v4090 = vmul.f32 %v4084, %v4088
    %v4091 = vlaneseq
    %v4092 = vshrl.u32 %v4091, 7
    %v4093 = vsub.s32 0, %v4092
    %v4094 = vrot.slane %v4058, %v4093
    %v4095 = vadd.f32 %v4089, %v4094
    %v4096 = vadd.f32 %v4090, %v4094
    %v4097 = vld [vmem:[%s4 + $0x100] sm:$0xff]
    %v4098 = vld [vmem:[%s4 + $0x108] sm:$0xff]
    %v4099 = vld [vmem:[%s4 + $0x110] sm:$0xff]
    %v4100 = vld [vmem:[%s4 + $0x118] sm:$0xff]
    %v4101 = vld [vmem:[%s5 + $0x16] sm:$0x1]
    %v4102 = vlaneseq
    %v4103 = vshrl.u32 %v4102, 7
    %v4104 = vsub.s32 0, %v4103
    %v4105 = vrot.slane %v4101, %v4104
    %v4107 = vsel %vm31, %v4095, 0
    %v4110 = vsel %vm31, %v4096, 0
    %4112 = vmatprep.subr.mxu0 0.0
    %4113 = vmatpush1.msra.mxu0 %v4097
    %4114 = vmatprep.subr.mxu0 0.0
    %4115 = vmatpush1.msra.mxu0 %v4098
    %4116 = vmatprep.subr.mxu0 0.0
    %4117 = vmatpush1.msra.mxu0 %v4099
    %4118 = vmatprep.subr.mxu0 0.0
    %4119 = vmatpush1.msra.mxu0 %v4100
    %4120 = vmatprep.subr.mxu0 0.0
    %4121 = vmatpush1.msra.mxu0 0.0
    %4122 = vmatprep.subr.mxu0 0.0
    %4123 = vmatpush1.msra.mxu0 0.0
    %4124 = vmatprep.subr.mxu0 0.0
    %4125 = vmatpush1.msra.mxu0 0.0
    %4126 = vmatprep.subr.mxu0 0.0
    %4127 = vmatpush1.msra.mxu0 0.0
    %4128 = vmatprep.subr.mxu0 0.0
    %4129 = vmatpush1.msra.mxu0 0.0
    %4130 = vmatprep.subr.mxu0 0.0
    %4131 = vmatpush1.msra.mxu0 0.0
    %4132 = vmatprep.subr.mxu0 0.0
    %4133 = vmatpush1.msra.mxu0 0.0
    %4134 = vmatprep.subr.mxu0 0.0
    %4135 = vmatpush1.msra.mxu0 0.0
    %4136 = vmatprep.subr.mxu0 0.0
    %4137 = vmatpush1.msra.mxu0 0.0
    %4138 = vmatprep.subr.mxu0 0.0
    %4139 = vmatpush1.msra.mxu0 0.0
    %4140 = vmatprep.subr.mxu0 0.0
    %4141 = vmatpush1.msra.mxu0 0.0
    %4142 = vmatprep.subr.mxu0 0.0
    %4143 = vmatpush1.msra.mxu0 0.0
    %4144 = vmatprep.subr.mxu0 0.0
    %4145 = vmatpush1.msra.mxu0 0.0
    %4146 = vmatprep.subr.mxu0 0.0
    %4147 = vmatpush1.msra.mxu0 0.0
    %4148 = vmatprep.subr.mxu0 0.0
    %4149 = vmatpush1.msra.mxu0 0.0
    %4150 = vmatprep.subr.mxu0 0.0
    %4151 = vmatpush1.msra.mxu0 0.0
    %4152 = vmatprep.subr.mxu0 0.0
    %4153 = vmatpush1.msra.mxu0 0.0
    %4154 = vmatprep.subr.mxu0 0.0
    %4155 = vmatpush1.msra.mxu0 0.0
    %4156 = vmatprep.subr.mxu0 0.0
    %4157 = vmatpush1.msra.mxu0 0.0
    %4158 = vmatprep.subr.mxu0 0.0
    %4159 = vmatpush1.msra.mxu0 0.0
    %4160 = vmatprep.subr.mxu0 0.0
    %4161 = vmatpush1.msra.mxu0 0.0
    %4162 = vmatprep.subr.mxu0 0.0
    %4163 = vmatpush1.msra.mxu0 0.0
    %4164 = vmatprep.subr.mxu0 0.0
    %4165 = vmatpush1.msra.mxu0 0.0
    %4166 = vmatprep.subr.mxu0 0.0
    %4167 = vmatpush1.msra.mxu0 0.0
    %4168 = vmatprep.subr.mxu0 0.0
    %4169 = vmatpush1.msra.mxu0 0.0
    %4170 = vmatprep.subr.mxu0 0.0
    %4171 = vmatpush1.msra.mxu0 0.0
    %4172 = vmatprep.subr.mxu0 0.0
    %4173 = vmatpush1.msra.mxu0 0.0
    %4174 = vmatprep.subr.mxu0 0.0
    %4175 = vmatpush1.msra.mxu0 0.0
    %4176 = vmatprep.mubr.f32.mxu0 0.0
    %4177 = vmatmul.mubr.f32.gmra.mrb[0].mxu0 %v4107
    %v4178 = vpop.f32.mrb[0].mxu0
    %v4179 = vadd.f32 %v4105, %v4178
    %v4180 = vpop.f32.mrb[0].mxu0
    %4181 = vmatprep.mubr.f32.mxu0 0.0
    %4182 = vmatmul.mubr.f32.gmra.mrb[0].mxu0 %v4110
    %v4183 = vpop.f32.mrb[0].mxu0
    %v4184 = vadd.f32 %v4105, %v4183
    %v4185 = vpop.f32.mrb[0].mxu0
    %4186 = vdwg.mxu0
    %v4187 = vmax.f32 %v4179, 0.0
    %v4188 = vmax.f32 %v4184, 0.0
    %v4189 = vld [vmem:[%s4 + $0x120] sm:$0xff]
    %v4190 = vld [vmem:[%s4 + $0x128] sm:$0xff]
    %v4191 = vld [vmem:[%s4 + $0x130] sm:$0xff]
    %v4192 = vld [vmem:[%s4 + $0x138] sm:$0xff]
    %v4193 = vld [vmem:[%s4 + $0x140] sm:$0xff]
    %v4194 = vld [vmem:[%s4 + $0x148] sm:$0xff]
    %v4195 = vld [vmem:[%s4 + $0x150] sm:$0xff]
    %v4196 = vld [vmem:[%s4 + $0x158] sm:$0xff]
    %v4197 = vld [vmem:[%s5 + $0x17] sm:$0x1]
    %v4198 = vlaneseq
    %v4199 = vshrl.u32 %v4198, 7
    %v4200 = vsub.s32 0, %v4199
    %v4201 = vrot.slane %v4197, %v4200
    %vm4202 = vcmask 523264
    %v4204 = vsel %vm4202, %v4187, 0
    %v4207 = vsel %vm4202, %v4188, 0
    %4209 = vmatprep.subr.mxu0 0.0
    %4210 = vmatpush1.msra.mxu0 %v4189
    %4211 = vmatprep.subr.mxu0 0.0
    %4212 = vmatpush1.msra.mxu0 %v4190
    %4213 = vmatprep.subr.mxu0 0.0
    %4214 = vmatpush1.msra.mxu0 %v4191
    %4215 = vmatprep.subr.mxu0 0.0
    %4216 = vmatpush1.msra.mxu0 %v4192
    %4217 = vmatprep.subr.mxu0 0.0
    %4218 = vmatpush1.msra.mxu0 %v4193
    %4219 = vmatprep.subr.mxu0 0.0
    %4220 = vmatpush1.msra.mxu0 %v4194
    %4221 = vmatprep.subr.mxu0 0.0
    %4222 = vmatpush1.msra.mxu0 %v4195
    %4223 = vmatprep.subr.mxu0 0.0
    %4224 = vmatpush1.msra.mxu0 %v4196
    %4225 = vmatprep.subr.mxu0 0.0
    %4226 = vmatpush1.msra.mxu0 0.0
    %4227 = vmatprep.subr.mxu0 0.0
    %4228 = vmatpush1.msra.mxu0 0.0
    %4229 = vmatprep.subr.mxu0 0.0
    %4230 = vmatpush1.msra.mxu0 0.0
    %4231 = vmatprep.subr.mxu0 0.0
    %4232 = vmatpush1.msra.mxu0 0.0
    %4233 = vmatprep.subr.mxu0 0.0
    %4234 = vmatpush1.msra.mxu0 0.0
    %4235 = vmatprep.subr.mxu0 0.0
    %4236 = vmatpush1.msra.mxu0 0.0
    %4237 = vmatprep.subr.mxu0 0.0
    %4238 = vmatpush1.msra.mxu0 0.0
    %4239 = vmatprep.subr.mxu0 0.0
    %4240 = vmatpush1.msra.mxu0 0.0
    %4241 = vmatprep.subr.mxu0 0.0
    %4242 = vmatpush1.msra.mxu0 0.0
    %4243 = vmatprep.subr.mxu0 0.0
    %4244 = vmatpush1.msra.mxu0 0.0
    %4245 = vmatprep.subr.mxu0 0.0
    %4246 = vmatpush1.msra.mxu0 0.0
    %4247 = vmatprep.subr.mxu0 0.0
    %4248 = vmatpush1.msra.mxu0 0.0
    %4249 = vmatprep.subr.mxu0 0.0
    %4250 = vmatpush1.msra.mxu0 0.0
    %4251 = vmatprep.subr.mxu0 0.0
    %4252 = vmatpush1.msra.mxu0 0.0
    %4253 = vmatprep.subr.mxu0 0.0
    %4254 = vmatpush1.msra.mxu0 0.0
    %4255 = vmatprep.subr.mxu0 0.0
    %4256 = vmatpush1.msra.mxu0 0.0
    %4257 = vmatprep.subr.mxu0 0.0
    %4258 = vmatpush1.msra.mxu0 0.0
    %4259 = vmatprep.subr.mxu0 0.0
    %4260 = vmatpush1.msra.mxu0 0.0
    %4261 = vmatprep.subr.mxu0 0.0
    %4262 = vmatpush1.msra.mxu0 0.0
    %4263 = vmatprep.subr.mxu0 0.0
    %4264 = vmatpush1.msra.mxu0 0.0
    %4265 = vmatprep.subr.mxu0 0.0
    %4266 = vmatpush1.msra.mxu0 0.0
    %4267 = vmatprep.subr.mxu0 0.0
    %4268 = vmatpush1.msra.mxu0 0.0
    %4269 = vmatprep.subr.mxu0 0.0
    %4270 = vmatpush1.msra.mxu0 0.0
    %4271 = vmatprep.subr.mxu0 0.0
    %4272 = vmatpush1.msra.mxu0 0.0
    %4273 = vmatprep.mubr.f32.mxu0 0.0
    %4274 = vmatmul.mubr.f32.gmra.mrb[0].mxu0 %v4204
    %v4275 = vpop.f32.mrb[0].mxu0
    %v4276 = vadd.f32 %v4201, %v4275
    %v4277 = vpop.f32.mrb[0].mxu0
    %4278 = vmatprep.mubr.f32.mxu0 0.0
    %4279 = vmatmul.mubr.f32.gmra.mrb[0].mxu0 %v4207
    %v4280 = vpop.f32.mrb[0].mxu0
    %v4281 = vadd.f32 %v4201, %v4280
    %v4282 = vpop.f32.mrb[0].mxu0
    %4283 = vdwg.mxu0
    %v4284 = vadd.f32 %v4276, %v4055
    %v4285 = vadd.f32 %v4281, %v4056
    %4286 = vst.msk [vmem:[#allocation2] sm:$0xff] %vm31, %v4284
    %4287 = vst.msk [vmem:[#allocation2 + $0x8] sm:$0xff] %vm31, %v4285
    // Predicated region
    $region26: #{tpu_custom_call.1} parent=1 // pred_check
      _
    $region27: #{tpu_custom_call.1} parent=1 // pred_check_branch
      %4289 = sbr.rel (0) target = $region29
    $region28: #{tpu_custom_call.1} parent=1 // pred_region
      %s4291 = ssub.s32 256, 256
      %4292 = vsyncadd [#allocation3], %s4291
      %s4293 = sshll.u32 [#allocation2], 4
      %s4294 = int_to_ptr.vmem [resolvable:$true] %s4293
      %4299 = dma.vmem_to_hbm [thread:$0]  %s4294, 256, %s6, [#allocation3], 128, 128, 8
    $region29: #{tpu_custom_call.1} parent=1 // pred_fallthru
      _
    // Predicated region
    $region30: #{tpu_custom_call.1} parent=1 // pred_check
      _
    $region31: #{tpu_custom_call.1} parent=1 // pred_check_branch
      %4301 = sbr.rel (0) target = $region33
    $region32: #{tpu_custom_call.1} parent=1 // pred_region
      %4302 = dma.done [#allocation3], 256
    $region33: #{tpu_custom_call.1} parent=1 // pred_fallthru
      _
    %4303 = vsyncpa [#allocation3], 1

</llo_original>
